<compile_context>
chip_gen: v5e
topology: v5e:2x2
jax: 0.10.0
libtpu: 0.0.40
codegen_flags: <defaults>
</compile_context>

<pallas_src>
import functools
import math

import jax
import jax.numpy as jnp
from jax.experimental import pallas as pl
from jax.experimental.pallas import tpu as pltpu


# -----------------------------------------------------------------------------
# Model configuration
# -----------------------------------------------------------------------------
IN_CH = 3
OUT_CH = 32          # backbone.out_channels
NUM_ANCHORS = 3
ANCHOR_SIZES = (4.0, 8.0, 16.0)
POOL = 2             # ROI pool resolution
HIDDEN = 64          # box head MLP dim
NUM_CLASSES = 6      # incl. background
TOPK = 16            # proposals per image

LANE = 128
_VMEM_LIMIT_BYTES = 32 * 1024 * 1024   # fits v5e/v6e (128 MiB) and v7x (64 MiB) comfortably


def _round_up(v, m):
    return (v + m - 1) // m * m


def _full_spec(shape):
    return pl.BlockSpec(shape, lambda i: tuple(0 for _ in shape))


# -----------------------------------------------------------------------------
# Kernel: tiled dense (matmul + bias + optional relu), bf16 inputs / f32 acc
# -----------------------------------------------------------------------------
def _dense_kernel(x_ref, w_ref, b_ref, o_ref, acc_ref, *, act, n_k):
    k = pl.program_id(1)

    @pl.when(k == 0)
    def _init():
        acc_ref[...] = jnp.zeros_like(acc_ref)

    acc_ref[...] += jnp.dot(x_ref[...], w_ref[...],
                            preferred_element_type=jnp.float32)

    @pl.when(k == n_k - 1)
    def _finalize():
        y = acc_ref[...] + b_ref[...]
        if act == "relu":
            y = jnp.maximum(y, 0.0)
        o_ref[...] = y


def pallas_dense(x, w, b, act="none", tm=256, tk=512):
    """y = act(x @ w + b).  x:(M,K) w:(K,N) b:(N,).  Tiled over M (and K)."""
    M, K = x.shape
    _, N = w.shape
    KP = _round_up(K, LANE)          # lane-align K (zero pad contributes nothing)
    NP = _round_up(N, LANE)          # lane-dense output stores
    TM = min(tm, _round_up(M, 8))
    MP = _round_up(M, TM)
    TK = min(tk, KP)
    n_m, n_k = MP // TM, KP // TK

    xp = jnp.pad(x, ((0, MP - M), (0, KP - K))).astype(jnp.bfloat16)
    wp = jnp.pad(w, ((0, KP - K), (0, NP - N))).astype(jnp.bfloat16)
    bp = jnp.pad(b.reshape(1, N), ((0, 0), (0, NP - N))).astype(jnp.float32)

    out = pl.pallas_call(
        functools.partial(_dense_kernel, act=act, n_k=n_k),
        out_shape=jax.ShapeDtypeStruct((MP, NP), jnp.float32),
        grid=(n_m, n_k),
        in_specs=[
            pl.BlockSpec((TM, TK), lambda i, k: (i, k)),
            pl.BlockSpec((TK, NP), lambda i, k: (k, 0)),
            pl.BlockSpec((1, NP), lambda i, k: (0, 0)),
        ],
        out_specs=pl.BlockSpec((TM, NP), lambda i, k: (i, 0)),
        scratch_shapes=[pltpu.VMEM((TM, NP), jnp.float32)],
        compiler_params=pltpu.CompilerParams(
            dimension_semantics=("parallel", "arbitrary"),
            vmem_limit_bytes=_VMEM_LIMIT_BYTES,
        ),
        cost_estimate=pl.CostEstimate(
            flops=2 * MP * KP * NP,
            transcendentals=0,
            bytes_accessed=MP * KP * 2 + KP * NP * 2 + NP * 4 + MP * NP * 4,
        ),
    )(xp, wp, bp)
    return out[:M, :N]


# -----------------------------------------------------------------------------
# Kernel: fused RPN head (3x3 conv + ReLU + concatenated cls/bbox 1x1 convs)
# -----------------------------------------------------------------------------
def _rpn_fused_kernel(cols_ref, cw_ref, cb_ref, hw_ref, hb_ref, o_ref):
    # 3x3 conv (matmul over im2col columns) + ReLU, intermediate stays in VMEM.
    feat = jnp.dot(cols_ref[...], cw_ref[...], preferred_element_type=jnp.float32)
    feat = jnp.maximum(feat + cb_ref[...], 0.0)
    # fused cls+bbox 1x1 heads; output padded to 128 lanes for unmasked stores.
    out = jnp.dot(feat.astype(jnp.bfloat16), hw_ref[...],
                  preferred_element_type=jnp.float32)
    o_ref[...] = out + hb_ref[...]


def pallas_rpn_fused(cols, conv_w, conv_b, head_w, head_b, tm=256):
    M, K = cols.shape
    C = conv_w.shape[1]
    NH = head_w.shape[1]
    KP = _round_up(K, LANE)
    CP = _round_up(C, LANE)
    NHP = _round_up(NH, LANE)
    TM = min(tm, _round_up(M, 8))
    MP = _round_up(M, TM)

    cols_p = jnp.pad(cols, ((0, MP - M), (0, KP - K))).astype(jnp.bfloat16)
    cw = jnp.pad(conv_w, ((0, KP - K), (0, CP - C))).astype(jnp.bfloat16)
    cb = jnp.pad(conv_b.reshape(1, C), ((0, 0), (0, CP - C))).astype(jnp.float32)
    hw = jnp.pad(head_w, ((0, CP - C), (0, NHP - NH))).astype(jnp.bfloat16)
    hb = jnp.pad(head_b.reshape(1, NH), ((0, 0), (0, NHP - NH))).astype(jnp.float32)

    out = pl.pallas_call(
        _rpn_fused_kernel,
        out_shape=jax.ShapeDtypeStruct((MP, NHP), jnp.float32),
        grid=(MP // TM,),
        in_specs=[
            pl.BlockSpec((TM, KP), lambda i: (i, 0)),
            pl.BlockSpec((KP, CP), lambda i: (0, 0)),
            pl.BlockSpec((1, CP), lambda i: (0, 0)),
            pl.BlockSpec((CP, NHP), lambda i: (0, 0)),
            pl.BlockSpec((1, NHP), lambda i: (0, 0)),
        ],
        out_specs=pl.BlockSpec((TM, NHP), lambda i: (i, 0)),
        compiler_params=pltpu.CompilerParams(
            dimension_semantics=("parallel",),
            vmem_limit_bytes=_VMEM_LIMIT_BYTES,
        ),
        cost_estimate=pl.CostEstimate(
            flops=2 * MP * KP * CP + 2 * MP * CP * NHP,
            transcendentals=0,
            bytes_accessed=(MP * KP * 2 + KP * CP * 2 + CP * NHP * 2
                            + MP * NHP * 4),
        ),
    )(cols_p, cw, cb, hw, hb)
    return out[:M, :NH]


# -----------------------------------------------------------------------------
# Kernel: fused ROI box head (fc1+relu, fc2+relu, cls+reg predictor, softmax)
# -----------------------------------------------------------------------------
def _roi_head_kernel(x_ref, w1_ref, b1_ref, w2_ref, b2_ref, wp_ref, bp_ref,
                     o_ref, *, num_classes):
    h1 = jnp.dot(x_ref[...], w1_ref[...], preferred_element_type=jnp.float32)
    h1 = jnp.maximum(h1 + b1_ref[...], 0.0)
    h2 = jnp.dot(h1, w2_ref[...], preferred_element_type=jnp.float32)
    h2 = jnp.maximum(h2 + b2_ref[...], 0.0)
    pred = jnp.dot(h2, wp_ref[...], preferred_element_type=jnp.float32) + bp_ref[...]
    # masked softmax over the first `num_classes` lanes only (the remaining
    # lanes hold bbox regression deltas + padding and pass through untouched).
    lane = jax.lax.broadcasted_iota(jnp.int32, pred.shape, 1)
    is_cls = lane < num_classes
    m = jnp.max(jnp.where(is_cls, pred, -jnp.inf), axis=-1, keepdims=True)
    e = jnp.where(is_cls, jnp.exp(pred - m), 0.0)
    probs = e / jnp.sum(e, axis=-1, keepdims=True)
    o_ref[...] = jnp.where(is_cls, probs, pred)


def pallas_roi_head(pooled, w1, b1, w2, b2, wp, bp, num_classes):
    R, D = pooled.shape
    H1 = w1.shape[1]
    H2 = w2.shape[1]
    NPRED = wp.shape[1]
    RP = _round_up(R, 8)
    NPP = _round_up(NPRED, LANE)

    xp = jnp.pad(pooled, ((0, RP - R), (0, 0))).astype(jnp.float32)
    wpp = jnp.pad(wp, ((0, 0), (0, NPP - NPRED))).astype(jnp.float32)
    bpp = jnp.pad(bp.reshape(1, NPRED), ((0, 0), (0, NPP - NPRED))).astype(jnp.float32)
    b1r = b1.reshape(1, H1).astype(jnp.float32)
    b2r = b2.reshape(1, H2).astype(jnp.float32)

    out = pl.pallas_call(
        functools.partial(_roi_head_kernel, num_classes=num_classes),
        out_shape=jax.ShapeDtypeStruct((RP, NPP), jnp.float32),
        grid=(1,),
        in_specs=[
            _full_spec((RP, D)),
            _full_spec(w1.shape),
            _full_spec((1, H1)),
            _full_spec(w2.shape),
            _full_spec((1, H2)),
            _full_spec((wp.shape[0], NPP)),
            _full_spec((1, NPP)),
        ],
        out_specs=_full_spec((RP, NPP)),
    )(xp, w1.astype(jnp.float32), b1r, w2.astype(jnp.float32), b2r, wpp, bpp)
    return out[:R, :NPRED]


# -----------------------------------------------------------------------------
# Kernel: box decode (anchors/proposals + deltas -> clipped boxes), (4, N) layout
# -----------------------------------------------------------------------------
def _decode_boxes_kernel(anc_ref, dlt_ref, o_ref, *, img_w, img_h, wx, wy, ww, wh):
    ax1 = anc_ref[0:1, :]
    ay1 = anc_ref[1:2, :]
    ax2 = anc_ref[2:3, :]
    ay2 = anc_ref[3:4, :]
    w = ax2 - ax1 + 1.0
    h = ay2 - ay1 + 1.0
    cx = ax1 + 0.5 * w
    cy = ay1 + 0.5 * h

    clip = math.log(1000.0 / 16.0)
    dx = dlt_ref[0:1, :] * (1.0 / wx)
    dy = dlt_ref[1:2, :] * (1.0 / wy)
    dw = jnp.minimum(dlt_ref[2:3, :] * (1.0 / ww), clip)
    dh = jnp.minimum(dlt_ref[3:4, :] * (1.0 / wh), clip)

    pcx = dx * w + cx
    pcy = dy * h + cy
    pw = jnp.exp(dw) * w
    ph = jnp.exp(dh) * h

    # direct sublane-row writes (no in-kernel concatenate temp)
    o_ref[0:1, :] = jnp.clip(pcx - 0.5 * pw, 0.0, img_w - 1.0)
    o_ref[1:2, :] = jnp.clip(pcy - 0.5 * ph, 0.0, img_h - 1.0)
    o_ref[2:3, :] = jnp.clip(pcx + 0.5 * pw - 1.0, 0.0, img_w - 1.0)
    o_ref[3:4, :] = jnp.clip(pcy + 0.5 * ph - 1.0, 0.0, img_h - 1.0)


def pallas_decode_boxes_t(anchors_t, deltas_t, img_w, img_h,
                          weights=(1.0, 1.0, 1.0, 1.0)):
    """anchors_t, deltas_t: (4, N) with rows = x1,y1,x2,y2 / dx,dy,dw,dh."""
    shape = anchors_t.shape
    return pl.pallas_call(
        functools.partial(
            _decode_boxes_kernel, img_w=float(img_w), img_h=float(img_h),
            wx=float(weights[0]), wy=float(weights[1]),
            ww=float(weights[2]), wh=float(weights[3])),
        out_shape=jax.ShapeDtypeStruct(shape, jnp.float32),
        grid=(1,),
        in_specs=[_full_spec(shape), _full_spec(shape)],
        out_specs=_full_spec(shape),
    )(anchors_t.astype(jnp.float32), deltas_t.astype(jnp.float32))


# -----------------------------------------------------------------------------
# JAX glue: im2col, anchors, ROI pooling
# -----------------------------------------------------------------------------
def im2col_3x3(x):
    """x: (B, H, W, C) -> (B*H*W, 9*C), 3x3 conv, stride 1, pad 1."""
    B, H, W, C = x.shape
    xp = jnp.pad(x, ((0, 0), (1, 1), (1, 1), (0, 0)))
    patches = []
    for dy in range(3):
        for dx in range(3):
            patches.append(xp[:, dy:dy + H, dx:dx + W, :])
    p = jnp.concatenate(patches, axis=-1)
    return p.reshape(B * H * W, 9 * C)


def make_anchors_t(H, W, sizes):
    """(4, H*W*A) anchors in (x1, y1, x2, y2) rows, stride-1 feature map."""
    ys, xs = jnp.meshgrid(jnp.arange(H, dtype=jnp.float32),
                          jnp.arange(W, dtype=jnp.float32), indexing="ij")
    ctr = jnp.stack([xs, ys, xs, ys], axis=-1)                       # (H, W, 4)
    half = jnp.array([[-s / 2.0, -s / 2.0, s / 2.0, s / 2.0] for s in sizes],
                     dtype=jnp.float32)                              # (A, 4)
    anc = ctr[:, :, None, :] + half[None, None, :, :]                # (H, W, A, 4)
    return anc.reshape(-1, 4).T                                      # (4, H*W*A)


def roi_pool_t(feat, boxes_t, P):
    """feat: (H, W, C); boxes_t: (4, R); nearest-neighbor P x P sampling."""
    # TODO(synk): true ROIAlign uses bilinear sampling; nearest-neighbor here.
    H, W, C = feat.shape
    x1, y1, x2, y2 = boxes_t[0], boxes_t[1], boxes_t[2], boxes_t[3]
    bw = jnp.maximum(x2 - x1 + 1.0, 1.0)
    bh = jnp.maximum(y2 - y1 + 1.0, 1.0)
    g = (jnp.arange(P, dtype=jnp.float32) + 0.5) / P
    gx = x1[:, None] + bw[:, None] * g[None, :]
    gy = y1[:, None] + bh[:, None] * g[None, :]
    gxi = jnp.clip(jnp.round(gx).astype(jnp.int32), 0, W - 1)
    gyi = jnp.clip(jnp.round(gy).astype(jnp.int32), 0, H - 1)
    sampled = feat[gyi[:, :, None], gxi[:, None, :], :]              # (R, P, P, C)
    return sampled.reshape(sampled.shape[0], -1)


# -----------------------------------------------------------------------------
# Parameters
# -----------------------------------------------------------------------------
def init_params(key):
    ks = jax.random.split(key, 12)

    def w(k, shape, std=0.05):
        return jax.random.normal(k, shape, dtype=jnp.float32) * std

    p = {}
    p["bb_w"] = w(ks[0], (9 * IN_CH, OUT_CH))
    p["bb_b"] = jnp.zeros((OUT_CH,), jnp.float32)
    p["rpn_conv_w"] = w(ks[1], (9 * OUT_CH, OUT_CH))
    p["rpn_conv_b"] = jnp.zeros((OUT_CH,), jnp.float32)
    p["rpn_cls_w"] = w(ks[2], (OUT_CH, NUM_ANCHORS))
    p["rpn_cls_b"] = jnp.zeros((NUM_ANCHORS,), jnp.float32)
    p["rpn_box_w"] = w(ks[3], (OUT_CH, NUM_ANCHORS * 4))
    p["rpn_box_b"] = jnp.zeros((NUM_ANCHORS * 4,), jnp.float32)
    p["fc1_w"] = w(ks[4], (OUT_CH * POOL * POOL, HIDDEN))
    p["fc1_b"] = jnp.zeros((HIDDEN,), jnp.float32)
    p["fc2_w"] = w(ks[5], (HIDDEN, HIDDEN))
    p["fc2_b"] = jnp.zeros((HIDDEN,), jnp.float32)
    p["cls_w"] = w(ks[6], (HIDDEN, NUM_CLASSES))
    p["cls_b"] = jnp.zeros((NUM_CLASSES,), jnp.float32)
    p["reg_w"] = w(ks[7], (HIDDEN, NUM_CLASSES * 4))
    p["reg_b"] = jnp.zeros((NUM_CLASSES * 4,), jnp.float32)
    return p


# -----------------------------------------------------------------------------
# GeneralizedRCNN forward (inference)
# -----------------------------------------------------------------------------
def generalized_rcnn_forward(params, images_nchw):
    B, C, H, W = images_nchw.shape
    x = jnp.transpose(images_nchw, (0, 2, 3, 1)).astype(jnp.float32)  # NHWC

    # ---------------- backbone (3x3 conv + ReLU, tiled dense) ----------------
    cols = im2col_3x3(x)                                              # (B*H*W, 27)
    feat_rows = pallas_dense(cols, params["bb_w"], params["bb_b"], act="relu")
    features = feat_rows.reshape(B, H, W, OUT_CH)

    # ---------------- RPN: fused conv + cls/bbox heads ----------------
    rpn_cols = im2col_3x3(features)                                   # (B*H*W, 288)
    head_w = jnp.concatenate([params["rpn_cls_w"], params["rpn_box_w"]], axis=1)
    head_b = jnp.concatenate([params["rpn_cls_b"], params["rpn_box_b"]], axis=0)
    rpn_out = pallas_rpn_fused(rpn_cols, params["rpn_conv_w"],
                               params["rpn_conv_b"], head_w, head_b)  # (B*H*W, 15)
    cls_logits = rpn_out[:, :NUM_ANCHORS]                             # (B*H*W, 3)
    bbox_deltas = rpn_out[:, NUM_ANCHORS:NUM_ANCHORS + 4 * NUM_ANCHORS]

    # anchor decode in (4, N) transposed layout
    anchors_t = make_anchors_t(H, W, ANCHOR_SIZES)                    # (4, H*W*A)
    anchors_all_t = jnp.tile(anchors_t, (1, B))                       # (4, B*H*W*A)
    deltas_t = bbox_deltas.reshape(B * H * W, NUM_ANCHORS, 4) \
                          .transpose(2, 0, 1).reshape(4, -1)          # (4, B*H*W*A)
    prop_t = pallas_decode_boxes_t(anchors_all_t, deltas_t, W, H,
                                   weights=(1.0, 1.0, 1.0, 1.0))
    prop_t = prop_t.reshape(4, B, H * W * NUM_ANCHORS)

    # top-k proposals; sigmoid skipped (monotonic -> same ranking as logits).
    # TODO(synk): NMS omitted (no clean Pallas equivalent for sort/suppress).
    obj = cls_logits.reshape(B, H * W * NUM_ANCHORS)
    _, top_idx = jax.lax.top_k(obj, TOPK)                             # (B, TOPK)
    idx = jnp.broadcast_to(top_idx[None, :, :], (4, B, TOPK))
    proposals_t = jnp.take_along_axis(prop_t, idx, axis=2)            # (4, B, TOPK)

    # ---------------- ROI heads ----------------
    pooled = jax.vmap(functools.partial(roi_pool_t, P=POOL),
                      in_axes=(0, 1))(features, proposals_t)          # (B, TOPK, 128)
    pooled = pooled.reshape(B * TOPK, -1)

    pred_w = jnp.concatenate([params["cls_w"], params["reg_w"]], axis=1)
    pred_b = jnp.concatenate([params["cls_b"], params["reg_b"]], axis=0)
    roi_out = pallas_roi_head(pooled, params["fc1_w"], params["fc1_b"],
                              params["fc2_w"], params["fc2_b"],
                              pred_w, pred_b, NUM_CLASSES)            # (B*TOPK, 30)
    probs = roi_out[:, :NUM_CLASSES]
    box_reg = roi_out[:, NUM_CLASSES:NUM_CLASSES + 4 * NUM_CLASSES]

    labels = jnp.argmax(probs, axis=-1)
    scores = jnp.max(probs, axis=-1)

    # per-class deltas of the predicted class, decoded with BoxCoder weights
    box_reg = box_reg.reshape(B * TOPK, NUM_CLASSES, 4)
    sel = jnp.take_along_axis(box_reg, labels[:, None, None], axis=1)[:, 0, :]
    prop_flat_t = proposals_t.reshape(4, B * TOPK)
    final_t = pallas_decode_boxes_t(prop_flat_t, sel.T, W, H,
                                    weights=(10.0, 10.0, 5.0, 5.0))
    final_boxes = final_t.reshape(4, B, TOPK).transpose(1, 2, 0)      # (B, TOPK, 4)

    scores_b = scores.reshape(B, TOPK)
    labels_b = labels.reshape(B, TOPK)
    result = []
    for b in range(B):
        result.append({"boxes": final_boxes[b],
                       "scores": scores_b[b],
                       "labels": labels_b[b]})
    return result


# -----------------------------------------------------------------------------
# main
# -----------------------------------------------------------------------------
if __name__ == "__main__":
    key = jax.random.PRNGKey(0)
    k_img, k_par = jax.random.split(key)

    images = jax.random.normal(k_img, (2, IN_CH, 16, 16), dtype=jnp.float32)  # NCHW
    params = init_params(k_par)

    fwd = jax.jit(generalized_rcnn_forward)
    result = fwd(params, images)

    for det in result:
        jax.block_until_ready(det["boxes"])
        jax.block_until_ready(det["scores"])
        jax.block_until_ready(det["labels"])

    print("KERNEL_OK")
</pallas_src>

<mosaic_0001>
module attributes {stable_mosaic.version = 11 : i64} {
  func.func @_dense_kernel(%arg0: i32, %arg1: i32, %arg2: memref<256x128xbf16, #tpu.memory_space<vmem>>, %arg3: memref<128x128xbf16, #tpu.memory_space<vmem>>, %arg4: memref<1x128xf32, #tpu.memory_space<vmem>>, %arg5: memref<256x128xf32, #tpu.memory_space<vmem>>, %arg6: memref<256x128xf32, #tpu.memory_space<vmem>>) attributes {dimension_semantics = [#tpu.dimension_semantics<parallel>, #tpu.dimension_semantics<arbitrary>], iteration_bounds = array<i64: 2, 1>, scalar_prefetch = 0 : i64, scratch_operands = 1 : i64, tpu.core_type = #tpu.core_type<tc>, window_params = [{transform_indices = @transform_0, window_bounds = array<i64: 256, 128>}, {transform_indices = @transform_1, window_bounds = array<i64: 128, 128>}, {pipeline_mode = #tpu.pipeline_mode<synchronous>, transform_indices = @transform_2, window_bounds = array<i64: 1, 128>}, {transform_indices = @transform_3, window_bounds = array<i64: 256, 128>}]} {
    %c0_i32 = arith.constant 0 : i32
    %0 = arith.cmpi eq, %arg1, %c0_i32 : i32
    %1 = arith.extui %0 : i1 to i32
    %c0_i32_0 = arith.constant 0 : i32
    %2 = arith.cmpi ne, %1, %c0_i32_0 : i32
    scf.if %2 {
      %cst_10 = arith.constant 0.000000e+00 : f32
      %12 = vector.broadcast %cst_10 : f32 to vector<256x128xf32>
      %c0_11 = arith.constant 0 : index
      %c0_12 = arith.constant 0 : index
      %13 = vector.load %arg6[%c0_11, %c0_12] : memref<256x128xf32, #tpu.memory_space<vmem>>, vector<256x128xf32>
      tpu.vector_store %arg6[%c0_11, %c0_12], %12 {strides = array<i32>} : memref<256x128xf32, #tpu.memory_space<vmem>>, vector<256x128xf32>,
    } else {
    }
    %c0 = arith.constant 0 : index
    %c0_1 = arith.constant 0 : index
    %3 = vector.load %arg6[%c0, %c0_1] : memref<256x128xf32, #tpu.memory_space<vmem>>, vector<256x128xf32>
    %c0_2 = arith.constant 0 : index
    %c0_3 = arith.constant 0 : index
    %4 = vector.load %arg2[%c0_2, %c0_3] : memref<256x128xbf16, #tpu.memory_space<vmem>>, vector<256x128xbf16>
    %c0_4 = arith.constant 0 : index
    %c0_5 = arith.constant 0 : index
    %5 = vector.load %arg3[%c0_4, %c0_5] : memref<128x128xbf16, #tpu.memory_space<vmem>>, vector<128x128xbf16>
    %cst = arith.constant dense<0.000000e+00> : vector<256x128xf32>
    %6 = tpu.matmul %4, %5, %cst {dimension_numbers = #tpu.dot_dimension_numbers<[1], [0], [0], [1], [0, 0, 1, 1], [], []>} : vector<256x128xbf16>, vector<128x128xbf16>, vector<256x128xf32> -> vector<256x128xf32>
    %7 = arith.addf %3, %6 : vector<256x128xf32>
    %c0_6 = arith.constant 0 : index
    %c0_7 = arith.constant 0 : index
    %8 = vector.load %arg6[%c0_6, %c0_7] : memref<256x128xf32, #tpu.memory_space<vmem>>, vector<256x128xf32>
    tpu.vector_store %arg6[%c0_6, %c0_7], %7 {strides = array<i32>} : memref<256x128xf32, #tpu.memory_space<vmem>>, vector<256x128xf32>,
    %c0_i32_8 = arith.constant 0 : i32
    %9 = arith.cmpi eq, %arg1, %c0_i32_8 : i32
    %10 = arith.extui %9 : i1 to i32
    %c0_i32_9 = arith.constant 0 : i32
    %11 = arith.cmpi ne, %10, %c0_i32_9 : i32
    scf.if %11 {
      %c0_10 = arith.constant 0 : index
      %c0_11 = arith.constant 0 : index
      %12 = vector.load %arg6[%c0_10, %c0_11] : memref<256x128xf32, #tpu.memory_space<vmem>>, vector<256x128xf32>
      %c0_12 = arith.constant 0 : index
      %c0_13 = arith.constant 0 : index
      %13 = vector.load %arg4[%c0_12, %c0_13] : memref<1x128xf32, #tpu.memory_space<vmem>>, vector<1x128xf32>
      %14 = vector.broadcast %13 : vector<1x128xf32> to vector<256x128xf32>
      %15 = arith.addf %12, %14 : vector<256x128xf32>
      %cst_14 = arith.constant 0.000000e+00 : f32
      %16 = vector.broadcast %cst_14 : f32 to vector<256x128xf32>
      %17 = arith.maximumf %15, %16 : vector<256x128xf32>
      %c0_15 = arith.constant 0 : index
      %c0_16 = arith.constant 0 : index
      %18 = vector.load %arg5[%c0_15, %c0_16] : memref<256x128xf32, #tpu.memory_space<vmem>>, vector<256x128xf32>
      tpu.vector_store %arg5[%c0_15, %c0_16], %17 {strides = array<i32>} : memref<256x128xf32, #tpu.memory_space<vmem>>, vector<256x128xf32>,
    } else {
    }
    return
  }
  func.func @transform_0(%arg0: i32, %arg1: i32) -> (i32, i32) {
    %c0_i32 = arith.constant 0 : i32
    return %arg0, %arg1 : i32, i32
  }
  func.func @transform_1(%arg0: i32, %arg1: i32) -> (i32, i32) {
    %c0_i32 = arith.constant 0 : i32
    %c0_i32_0 = arith.constant 0 : i32
    return %arg1, %c0_i32 : i32, i32
  }
  func.func @transform_2(%arg0: i32, %arg1: i32) -> (i32, i32) {
    %c0_i32 = arith.constant 0 : i32
    %c0_i32_0 = arith.constant 0 : i32
    %c0_i32_1 = arith.constant 0 : i32
    return %c0_i32, %c0_i32_0 : i32, i32
  }
  func.func @transform_3(%arg0: i32, %arg1: i32) -> (i32, i32) {
    %c0_i32 = arith.constant 0 : i32
    %c0_i32_0 = arith.constant 0 : i32
    return %arg0, %c0_i32 : i32, i32
  }
}

module attributes {stable_mosaic.version = 11 : i64} {
  func.func @_rpn_fused_kernel(%arg0: i32, %arg1: memref<256x384xbf16, #tpu.memory_space<vmem>>, %arg2: memref<384x128xbf16, #tpu.memory_space<vmem>>, %arg3: memref<1x128xf32, #tpu.memory_space<vmem>>, %arg4: memref<128x128xbf16, #tpu.memory_space<vmem>>, %arg5: memref<1x128xf32, #tpu.memory_space<vmem>>, %arg6: memref<256x128xf32, #tpu.memory_space<vmem>>) attributes {dimension_semantics = [#tpu.dimension_semantics<parallel>], iteration_bounds = array<i64: 2>, scalar_prefetch = 0 : i64, scratch_operands = 0 : i64, tpu.core_type = #tpu.core_type<tc>, window_params = [{transform_indices = @transform_0, window_bounds = array<i64: 256, 384>}, {pipeline_mode = #tpu.pipeline_mode<synchronous>, transform_indices = @transform_1, window_bounds = array<i64: 384, 128>}, {pipeline_mode = #tpu.pipeline_mode<synchronous>, transform_indices = @transform_2, window_bounds = array<i64: 1, 128>}, {pipeline_mode = #tpu.pipeline_mode<synchronous>, transform_indices = @transform_3, window_bounds = array<i64: 128, 128>}, {pipeline_mode = #tpu.pipeline_mode<synchronous>, transform_indices = @transform_4, window_bounds = array<i64: 1, 128>}, {transform_indices = @transform_5, window_bounds = array<i64: 256, 128>}]} {
    %c0 = arith.constant 0 : index
    %c0_0 = arith.constant 0 : index
    %0 = vector.load %arg1[%c0, %c0_0] : memref<256x384xbf16, #tpu.memory_space<vmem>>, vector<256x384xbf16>
    %c0_1 = arith.constant 0 : index
    %c0_2 = arith.constant 0 : index
    %1 = vector.load %arg2[%c0_1, %c0_2] : memref<384x128xbf16, #tpu.memory_space<vmem>>, vector<384x128xbf16>
    %cst = arith.constant dense<0.000000e+00> : vector<256x128xf32>
    %2 = tpu.matmul %0, %1, %cst {dimension_numbers = #tpu.dot_dimension_numbers<[1], [0], [0], [1], [0, 0, 1, 1], [], []>} : vector<256x384xbf16>, vector<384x128xbf16>, vector<256x128xf32> -> vector<256x128xf32>
    %c0_3 = arith.constant 0 : index
    %c0_4 = arith.constant 0 : index
    %3 = vector.load %arg3[%c0_3, %c0_4] : memref<1x128xf32, #tpu.memory_space<vmem>>, vector<1x128xf32>
    %4 = vector.broadcast %3 : vector<1x128xf32> to vector<256x128xf32>
    %5 = arith.addf %2, %4 : vector<256x128xf32>
    %cst_5 = arith.constant 0.000000e+00 : f32
    %6 = vector.broadcast %cst_5 : f32 to vector<256x128xf32>
    %7 = arith.maximumf %5, %6 : vector<256x128xf32>
    %8 = arith.truncf %7 : vector<256x128xf32> to vector<256x128xbf16>
    %c0_6 = arith.constant 0 : index
    %c0_7 = arith.constant 0 : index
    %9 = vector.load %arg4[%c0_6, %c0_7] : memref<128x128xbf16, #tpu.memory_space<vmem>>, vector<128x128xbf16>
    %cst_8 = arith.constant dense<0.000000e+00> : vector<256x128xf32>
    %10 = tpu.matmul %8, %9, %cst_8 {dimension_numbers = #tpu.dot_dimension_numbers<[1], [0], [0], [1], [0, 0, 1, 1], [], []>} : vector<256x128xbf16>, vector<128x128xbf16>, vector<256x128xf32> -> vector<256x128xf32>
    %c0_9 = arith.constant 0 : index
    %c0_10 = arith.constant 0 : index
    %11 = vector.load %arg5[%c0_9, %c0_10] : memref<1x128xf32, #tpu.memory_space<vmem>>, vector<1x128xf32>
    %12 = vector.broadcast %11 : vector<1x128xf32> to vector<256x128xf32>
    %13 = arith.addf %10, %12 : vector<256x128xf32>
    %c0_11 = arith.constant 0 : index
    %c0_12 = arith.constant 0 : index
    %14 = vector.load %arg6[%c0_11, %c0_12] : memref<256x128xf32, #tpu.memory_space<vmem>>, vector<256x128xf32>
    tpu.vector_store %arg6[%c0_11, %c0_12], %13 {strides = array<i32>} : memref<256x128xf32, #tpu.memory_space<vmem>>, vector<256x128xf32>,
    return
  }
  func.func @transform_0(%arg0: i32) -> (i32, i32) {
    %c0_i32 = arith.constant 0 : i32
    %c0_i32_0 = arith.constant 0 : i32
    return %arg0, %c0_i32 : i32, i32
  }
  func.func @transform_1(%arg0: i32) -> (i32, i32) {
    %c0_i32 = arith.constant 0 : i32
    %c0_i32_0 = arith.constant 0 : i32
    %c0_i32_1 = arith.constant 0 : i32
    return %c0_i32, %c0_i32_0 : i32, i32
  }
  func.func @transform_2(%arg0: i32) -> (i32, i32) {
    %c0_i32 = arith.constant 0 : i32
    %c0_i32_0 = arith.constant 0 : i32
    %c0_i32_1 = arith.constant 0 : i32
    return %c0_i32, %c0_i32_0 : i32, i32
  }
  func.func @transform_3(%arg0: i32) -> (i32, i32) {
    %c0_i32 = arith.constant 0 : i32
    %c0_i32_0 = arith.constant 0 : i32
    %c0_i32_1 = arith.constant 0 : i32
    return %c0_i32, %c0_i32_0 : i32, i32
  }
  func.func @transform_4(%arg0: i32) -> (i32, i32) {
    %c0_i32 = arith.constant 0 : i32
    %c0_i32_0 = arith.constant 0 : i32
    %c0_i32_1 = arith.constant 0 : i32
    return %c0_i32, %c0_i32_0 : i32, i32
  }
  func.func @transform_5(%arg0: i32) -> (i32, i32) {
    %c0_i32 = arith.constant 0 : i32
    %c0_i32_0 = arith.constant 0 : i32
    return %arg0, %c0_i32 : i32, i32
  }
}

module attributes {stable_mosaic.version = 11 : i64} {
  func.func @_decode_boxes_kernel(%arg0: i32, %arg1: memref<4x1536xf32, #tpu.memory_space<vmem>>, %arg2: memref<4x1536xf32, #tpu.memory_space<vmem>>, %arg3: memref<4x1536xf32, #tpu.memory_space<vmem>>) attributes {dimension_semantics = [#tpu.dimension_semantics<arbitrary>], iteration_bounds = array<i64: 1>, scalar_prefetch = 0 : i64, scratch_operands = 0 : i64, tpu.core_type = #tpu.core_type<tc>, window_params = [{pipeline_mode = #tpu.pipeline_mode<synchronous>, transform_indices = @transform_0, window_bounds = array<i64: 4, 1536>}, {pipeline_mode = #tpu.pipeline_mode<synchronous>, transform_indices = @transform_1, window_bounds = array<i64: 4, 1536>}, {pipeline_mode = #tpu.pipeline_mode<synchronous>, transform_indices = @transform_2, window_bounds = array<i64: 4, 1536>}]} {
    %c0 = arith.constant 0 : index
    %c0_0 = arith.constant 0 : index
    %0 = vector.load %arg1[%c0, %c0_0] : memref<4x1536xf32, #tpu.memory_space<vmem>>, vector<1x1536xf32>
    %c1 = arith.constant 1 : index
    %c0_1 = arith.constant 0 : index
    %1 = vector.load %arg1[%c1, %c0_1] : memref<4x1536xf32, #tpu.memory_space<vmem>>, vector<1x1536xf32>
    %c2 = arith.constant 2 : index
    %c0_2 = arith.constant 0 : index
    %2 = vector.load %arg1[%c2, %c0_2] : memref<4x1536xf32, #tpu.memory_space<vmem>>, vector<1x1536xf32>
    %c3 = arith.constant 3 : index
    %c0_3 = arith.constant 0 : index
    %3 = vector.load %arg1[%c3, %c0_3] : memref<4x1536xf32, #tpu.memory_space<vmem>>, vector<1x1536xf32>
    %4 = arith.subf %2, %0 : vector<1x1536xf32>
    %cst = arith.constant 1.000000e+00 : f32
    %5 = vector.broadcast %cst : f32 to vector<1x1536xf32>
    %6 = arith.addf %4, %5 : vector<1x1536xf32>
    %7 = arith.subf %3, %1 : vector<1x1536xf32>
    %cst_4 = arith.constant 1.000000e+00 : f32
    %8 = vector.broadcast %cst_4 : f32 to vector<1x1536xf32>
    %9 = arith.addf %7, %8 : vector<1x1536xf32>
    %cst_5 = arith.constant 5.000000e-01 : f32
    %10 = vector.broadcast %cst_5 : f32 to vector<1x1536xf32>
    %11 = arith.mulf %10, %6 : vector<1x1536xf32>
    %12 = arith.addf %0, %11 : vector<1x1536xf32>
    %cst_6 = arith.constant 5.000000e-01 : f32
    %13 = vector.broadcast %cst_6 : f32 to vector<1x1536xf32>
    %14 = arith.mulf %13, %9 : vector<1x1536xf32>
    %15 = arith.addf %1, %14 : vector<1x1536xf32>
    %c0_7 = arith.constant 0 : index
    %c0_8 = arith.constant 0 : index
    %16 = vector.load %arg2[%c0_7, %c0_8] : memref<4x1536xf32, #tpu.memory_space<vmem>>, vector<1x1536xf32>
    %cst_9 = arith.constant 1.000000e+00 : f32
    %17 = vector.broadcast %cst_9 : f32 to vector<1x1536xf32>
    %18 = arith.mulf %16, %17 : vector<1x1536xf32>
    %c1_10 = arith.constant 1 : index
    %c0_11 = arith.constant 0 : index
    %19 = vector.load %arg2[%c1_10, %c0_11] : memref<4x1536xf32, #tpu.memory_space<vmem>>, vector<1x1536xf32>
    %cst_12 = arith.constant 1.000000e+00 : f32
    %20 = vector.broadcast %cst_12 : f32 to vector<1x1536xf32>
    %21 = arith.mulf %19, %20 : vector<1x1536xf32>
    %c2_13 = arith.constant 2 : index
    %c0_14 = arith.constant 0 : index
    %22 = vector.load %arg2[%c2_13, %c0_14] : memref<4x1536xf32, #tpu.memory_space<vmem>>, vector<1x1536xf32>
    %cst_15 = arith.constant 1.000000e+00 : f32
    %23 = vector.broadcast %cst_15 : f32 to vector<1x1536xf32>
    %24 = arith.mulf %22, %23 : vector<1x1536xf32>
    %cst_16 = arith.constant 4.13516665 : f32
    %25 = vector.broadcast %cst_16 : f32 to vector<1x1536xf32>
    %26 = arith.minimumf %24, %25 : vector<1x1536xf32>
    %c3_17 = arith.constant 3 : index
    %c0_18 = arith.constant 0 : index
    %27 = vector.load %arg2[%c3_17, %c0_18] : memref<4x1536xf32, #tpu.memory_space<vmem>>, vector<1x1536xf32>
    %cst_19 = arith.constant 1.000000e+00 : f32
    %28 = vector.broadcast %cst_19 : f32 to vector<1x1536xf32>
    %29 = arith.mulf %27, %28 : vector<1x1536xf32>
    %cst_20 = arith.constant 4.13516665 : f32
    %30 = vector.broadcast %cst_20 : f32 to vector<1x1536xf32>
    %31 = arith.minimumf %29, %30 : vector<1x1536xf32>
    %32 = arith.mulf %18, %6 : vector<1x1536xf32>
    %33 = arith.addf %32, %12 : vector<1x1536xf32>
    %34 = arith.mulf %21, %9 : vector<1x1536xf32>
    %35 = arith.addf %34, %15 : vector<1x1536xf32>
    %36 = math.exp %26 : vector<1x1536xf32>
    %37 = arith.mulf %36, %6 : vector<1x1536xf32>
    %38 = math.exp %31 : vector<1x1536xf32>
    %39 = arith.mulf %38, %9 : vector<1x1536xf32>
    %cst_21 = arith.constant 5.000000e-01 : f32
    %40 = vector.broadcast %cst_21 : f32 to vector<1x1536xf32>
    %41 = arith.mulf %40, %37 : vector<1x1536xf32>
    %42 = arith.subf %33, %41 : vector<1x1536xf32>
    %cst_22 = arith.constant 0.000000e+00 : f32
    %cst_23 = arith.constant 1.500000e+01 : f32
    %43 = vector.broadcast %cst_22 : f32 to vector<1x1536xf32>
    %44 = arith.maximumf %43, %42 : vector<1x1536xf32>
    %45 = vector.broadcast %cst_23 : f32 to vector<1x1536xf32>
    %46 = arith.minimumf %45, %44 : vector<1x1536xf32>
    %c0_24 = arith.constant 0 : index
    %c0_25 = arith.constant 0 : index
    %47 = vector.load %arg3[%c0_24, %c0_25] : memref<4x1536xf32, #tpu.memory_space<vmem>>, vector<1x1536xf32>
    tpu.vector_store %arg3[%c0_24, %c0_25], %46 {strides = array<i32>} : memref<4x1536xf32, #tpu.memory_space<vmem>>, vector<1x1536xf32>,
    %cst_26 = arith.constant 5.000000e-01 : f32
    %48 = vector.broadcast %cst_26 : f32 to vector<1x1536xf32>
    %49 = arith.mulf %48, %39 : vector<1x1536xf32>
    %50 = arith.subf %35, %49 : vector<1x1536xf32>
    %cst_27 = arith.constant 0.000000e+00 : f32
    %cst_28 = arith.constant 1.500000e+01 : f32
    %51 = vector.broadcast %cst_27 : f32 to vector<1x1536xf32>
    %52 = arith.maximumf %51, %50 : vector<1x1536xf32>
    %53 = vector.broadcast %cst_28 : f32 to vector<1x1536xf32>
    %54 = arith.minimumf %53, %52 : vector<1x1536xf32>
    %c1_29 = arith.constant 1 : index
    %c0_30 = arith.constant 0 : index
    %55 = vector.load %arg3[%c1_29, %c0_30] : memref<4x1536xf32, #tpu.memory_space<vmem>>, vector<1x1536xf32>
    tpu.vector_store %arg3[%c1_29, %c0_30], %54 {strides = array<i32>} : memref<4x1536xf32, #tpu.memory_space<vmem>>, vector<1x1536xf32>,
    %cst_31 = arith.constant 5.000000e-01 : f32
    %56 = vector.broadcast %cst_31 : f32 to vector<1x1536xf32>
    %57 = arith.mulf %56, %37 : vector<1x1536xf32>
    %58 = arith.addf %33, %57 : vector<1x1536xf32>
    %cst_32 = arith.constant 1.000000e+00 : f32
    %59 = vector.broadcast %cst_32 : f32 to vector<1x1536xf32>
    %60 = arith.subf %58, %59 : vector<1x1536xf32>
    %cst_33 = arith.constant 0.000000e+00 : f32
    %cst_34 = arith.constant 1.500000e+01 : f32
    %61 = vector.broadcast %cst_33 : f32 to vector<1x1536xf32>
    %62 = arith.maximumf %61, %60 : vector<1x1536xf32>
    %63 = vector.broadcast %cst_34 : f32 to vector<1x1536xf32>
    %64 = arith.minimumf %63, %62 : vector<1x1536xf32>
    %c2_35 = arith.constant 2 : index
    %c0_36 = arith.constant 0 : index
    %65 = vector.load %arg3[%c2_35, %c0_36] : memref<4x1536xf32, #tpu.memory_space<vmem>>, vector<1x1536xf32>
    tpu.vector_store %arg3[%c2_35, %c0_36], %64 {strides = array<i32>} : memref<4x1536xf32, #tpu.memory_space<vmem>>, vector<1x1536xf32>,
    %cst_37 = arith.constant 5.000000e-01 : f32
    %66 = vector.broadcast %cst_37 : f32 to vector<1x1536xf32>
    %67 = arith.mulf %66, %39 : vector<1x1536xf32>
    %68 = arith.addf %35, %67 : vector<1x1536xf32>
    %cst_38 = arith.constant 1.000000e+00 : f32
    %69 = vector.broadcast %cst_38 : f32 to vector<1x1536xf32>
    %70 = arith.subf %68, %69 : vector<1x1536xf32>
    %cst_39 = arith.constant 0.000000e+00 : f32
    %cst_40 = arith.constant 1.500000e+01 : f32
    %71 = vector.broadcast %cst_39 : f32 to vector<1x1536xf32>
    %72 = arith.maximumf %71, %70 : vector<1x1536xf32>
    %73 = vector.broadcast %cst_40 : f32 to vector<1x1536xf32>
    %74 = arith.minimumf %73, %72 : vector<1x1536xf32>
    %c3_41 = arith.constant 3 : index
    %c0_42 = arith.constant 0 : index
    %75 = vector.load %arg3[%c3_41, %c0_42] : memref<4x1536xf32, #tpu.memory_space<vmem>>, vector<1x1536xf32>
    tpu.vector_store %arg3[%c3_41, %c0_42], %74 {strides = array<i32>} : memref<4x1536xf32, #tpu.memory_space<vmem>>, vector<1x1536xf32>,
    return
  }
  func.func @transform_0(%arg0: i32) -> (i32, i32) {
    %c0_i32 = arith.constant 0 : i32
    %c0_i32_0 = arith.constant 0 : i32
    %c0_i32_1 = arith.constant 0 : i32
    return %c0_i32, %c0_i32_0 : i32, i32
  }
  func.func @transform_1(%arg0: i32) -> (i32, i32) {
    %c0_i32 = arith.constant 0 : i32
    %c0_i32_0 = arith.constant 0 : i32
    %c0_i32_1 = arith.constant 0 : i32
    return %c0_i32, %c0_i32_0 : i32, i32
  }
  func.func @transform_2(%arg0: i32) -> (i32, i32) {
    %c0_i32 = arith.constant 0 : i32
    %c0_i32_0 = arith.constant 0 : i32
    %c0_i32_1 = arith.constant 0 : i32
    return %c0_i32, %c0_i32_0 : i32, i32
  }
}

module attributes {stable_mosaic.version = 11 : i64} {
  func.func @_roi_head_kernel(%arg0: i32, %arg1: memref<32x128xf32, #tpu.memory_space<vmem>>, %arg2: memref<128x64xf32, #tpu.memory_space<vmem>>, %arg3: memref<1x64xf32, #tpu.memory_space<vmem>>, %arg4: memref<64x64xf32, #tpu.memory_space<vmem>>, %arg5: memref<1x64xf32, #tpu.memory_space<vmem>>, %arg6: memref<64x128xf32, #tpu.memory_space<vmem>>, %arg7: memref<1x128xf32, #tpu.memory_space<vmem>>, %arg8: memref<32x128xf32, #tpu.memory_space<vmem>>) attributes {dimension_semantics = [#tpu.dimension_semantics<arbitrary>], iteration_bounds = array<i64: 1>, scalar_prefetch = 0 : i64, scratch_operands = 0 : i64, tpu.core_type = #tpu.core_type<tc>, window_params = [{pipeline_mode = #tpu.pipeline_mode<synchronous>, transform_indices = @transform_0, window_bounds = array<i64: 32, 128>}, {pipeline_mode = #tpu.pipeline_mode<synchronous>, transform_indices = @transform_1, window_bounds = array<i64: 128, 64>}, {pipeline_mode = #tpu.pipeline_mode<synchronous>, transform_indices = @transform_2, window_bounds = array<i64: 1, 64>}, {pipeline_mode = #tpu.pipeline_mode<synchronous>, transform_indices = @transform_3, window_bounds = array<i64: 64, 64>}, {pipeline_mode = #tpu.pipeline_mode<synchronous>, transform_indices = @transform_4, window_bounds = array<i64: 1, 64>}, {pipeline_mode = #tpu.pipeline_mode<synchronous>, transform_indices = @transform_5, window_bounds = array<i64: 64, 128>}, {pipeline_mode = #tpu.pipeline_mode<synchronous>, transform_indices = @transform_6, window_bounds = array<i64: 1, 128>}, {pipeline_mode = #tpu.pipeline_mode<synchronous>, transform_indices = @transform_7, window_bounds = array<i64: 32, 128>}]} {
    %c0 = arith.constant 0 : index
    %c0_0 = arith.constant 0 : index
    %0 = vector.load %arg1[%c0, %c0_0] : memref<32x128xf32, #tpu.memory_space<vmem>>, vector<32x128xf32>
    %c0_1 = arith.constant 0 : index
    %c0_2 = arith.constant 0 : index
    %1 = vector.load %arg2[%c0_1, %c0_2] : memref<128x64xf32, #tpu.memory_space<vmem>>, vector<128x64xf32>
    %cst = arith.constant dense<0.000000e+00> : vector<32x64xf32>
    %2 = tpu.matmul %0, %1, %cst {dimension_numbers = #tpu.dot_dimension_numbers<[1], [0], [0], [1], [0, 0, 1, 1], [], []>} : vector<32x128xf32>, vector<128x64xf32>, vector<32x64xf32> -> vector<32x64xf32>
    %c0_3 = arith.constant 0 : index
    %c0_4 = arith.constant 0 : index
    %3 = vector.load %arg3[%c0_3, %c0_4] : memref<1x64xf32, #tpu.memory_space<vmem>>, vector<1x64xf32>
    %4 = vector.broadcast %3 : vector<1x64xf32> to vector<32x64xf32>
    %5 = arith.addf %2, %4 : vector<32x64xf32>
    %cst_5 = arith.constant 0.000000e+00 : f32
    %6 = vector.broadcast %cst_5 : f32 to vector<32x64xf32>
    %7 = arith.maximumf %5, %6 : vector<32x64xf32>
    %c0_6 = arith.constant 0 : index
    %c0_7 = arith.constant 0 : index
    %8 = vector.load %arg4[%c0_6, %c0_7] : memref<64x64xf32, #tpu.memory_space<vmem>>, vector<64x64xf32>
    %cst_8 = arith.constant dense<0.000000e+00> : vector<32x64xf32>
    %9 = tpu.matmul %7, %8, %cst_8 {dimension_numbers = #tpu.dot_dimension_numbers<[1], [0], [0], [1], [0, 0, 1, 1], [], []>} : vector<32x64xf32>, vector<64x64xf32>, vector<32x64xf32> -> vector<32x64xf32>
    %c0_9 = arith.constant 0 : index
    %c0_10 = arith.constant 0 : index
    %10 = vector.load %arg5[%c0_9, %c0_10] : memref<1x64xf32, #tpu.memory_space<vmem>>, vector<1x64xf32>
    %11 = vector.broadcast %10 : vector<1x64xf32> to vector<32x64xf32>
    %12 = arith.addf %9, %11 : vector<32x64xf32>
    %cst_11 = arith.constant 0.000000e+00 : f32
    %13 = vector.broadcast %cst_11 : f32 to vector<32x64xf32>
    %14 = arith.maximumf %12, %13 : vector<32x64xf32>
    %c0_12 = arith.constant 0 : index
    %c0_13 = arith.constant 0 : index
    %15 = vector.load %arg6[%c0_12, %c0_13] : memref<64x128xf32, #tpu.memory_space<vmem>>, vector<64x128xf32>
    %cst_14 = arith.constant dense<0.000000e+00> : vector<32x128xf32>
    %16 = tpu.matmul %14, %15, %cst_14 {dimension_numbers = #tpu.dot_dimension_numbers<[1], [0], [0], [1], [0, 0, 1, 1], [], []>} : vector<32x64xf32>, vector<64x128xf32>, vector<32x128xf32> -> vector<32x128xf32>
    %c0_15 = arith.constant 0 : index
    %c0_16 = arith.constant 0 : index
    %17 = vector.load %arg7[%c0_15, %c0_16] : memref<1x128xf32, #tpu.memory_space<vmem>>, vector<1x128xf32>
    %18 = vector.broadcast %17 : vector<1x128xf32> to vector<32x128xf32>
    %19 = arith.addf %16, %18 : vector<32x128xf32>
    %20 = tpu.iota {dimensions = array<i32: 1>} : vector<32x128xi32>
    %c6_i32 = arith.constant 6 : i32
    %21 = vector.broadcast %c6_i32 : i32 to vector<32x128xi32>
    %22 = arith.cmpi slt, %20, %21 : vector<32x128xi32>
    %cst_17 = arith.constant 0xFF800000 : f32
    %23 = vector.broadcast %cst_17 : f32 to vector<32x128xf32>
    %24 = arith.select %22, %19, %23 : vector<32x128xi1>, vector<32x128xf32>
    %cst_18 = arith.constant dense<0xFF800000> : vector<32xf32>
    %25 = vector.multi_reduction <maximumf>, %24, %cst_18 [1] : vector<32x128xf32> to vector<32xf32>
    %26 = vector.shape_cast %25 : vector<32xf32> to vector<32x1xf32>
    %27 = vector.broadcast %26 : vector<32x1xf32> to vector<32x128xf32>
    %28 = arith.subf %19, %27 : vector<32x128xf32>
    %29 = math.exp %28 : vector<32x128xf32>
    %cst_19 = arith.constant 0.000000e+00 : f32
    %30 = vector.broadcast %cst_19 : f32 to vector<32x128xf32>
    %31 = arith.select %22, %29, %30 : vector<32x128xi1>, vector<32x128xf32>
    %cst_20 = arith.constant dense<0.000000e+00> : vector<32xf32>
    %32 = vector.multi_reduction <add>, %31, %cst_20 [1] : vector<32x128xf32> to vector<32xf32>
    %33 = vector.shape_cast %32 : vector<32xf32> to vector<32x1xf32>
    %34 = vector.broadcast %33 : vector<32x1xf32> to vector<32x128xf32>
    %35 = arith.divf %31, %34 : vector<32x128xf32>
    %36 = arith.select %22, %35, %19 : vector<32x128xi1>, vector<32x128xf32>
    %c0_21 = arith.constant 0 : index
    %c0_22 = arith.constant 0 : index
    %37 = vector.load %arg8[%c0_21, %c0_22] : memref<32x128xf32, #tpu.memory_space<vmem>>, vector<32x128xf32>
    tpu.vector_store %arg8[%c0_21, %c0_22], %36 {strides = array<i32>} : memref<32x128xf32, #tpu.memory_space<vmem>>, vector<32x128xf32>,
    return
  }
  func.func @transform_0(%arg0: i32) -> (i32, i32) {
    %c0_i32 = arith.constant 0 : i32
    %c0_i32_0 = arith.constant 0 : i32
    %c0_i32_1 = arith.constant 0 : i32
    return %c0_i32, %c0_i32_0 : i32, i32
  }
  func.func @transform_1(%arg0: i32) -> (i32, i32) {
    %c0_i32 = arith.constant 0 : i32
    %c0_i32_0 = arith.constant 0 : i32
    %c0_i32_1 = arith.constant 0 : i32
    return %c0_i32, %c0_i32_0 : i32, i32
  }
  func.func @transform_2(%arg0: i32) -> (i32, i32) {
    %c0_i32 = arith.constant 0 : i32
    %c0_i32_0 = arith.constant 0 : i32
    %c0_i32_1 = arith.constant 0 : i32
    return %c0_i32, %c0_i32_0 : i32, i32
  }
  func.func @transform_3(%arg0: i32) -> (i32, i32) {
    %c0_i32 = arith.constant 0 : i32
    %c0_i32_0 = arith.constant 0 : i32
    %c0_i32_1 = arith.constant 0 : i32
    return %c0_i32, %c0_i32_0 : i32, i32
  }
  func.func @transform_4(%arg0: i32) -> (i32, i32) {
    %c0_i32 = arith.constant 0 : i32
    %c0_i32_0 = arith.constant 0 : i32
    %c0_i32_1 = arith.constant 0 : i32
    return %c0_i32, %c0_i32_0 : i32, i32
  }
  func.func @transform_5(%arg0: i32) -> (i32, i32) {
    %c0_i32 = arith.constant 0 : i32
    %c0_i32_0 = arith.constant 0 : i32
    %c0_i32_1 = arith.constant 0 : i32
    return %c0_i32, %c0_i32_0 : i32, i32
  }
  func.func @transform_6(%arg0: i32) -> (i32, i32) {
    %c0_i32 = arith.constant 0 : i32
    %c0_i32_0 = arith.constant 0 : i32
    %c0_i32_1 = arith.constant 0 : i32
    return %c0_i32, %c0_i32_0 : i32, i32
  }
  func.func @transform_7(%arg0: i32) -> (i32, i32) {
    %c0_i32 = arith.constant 0 : i32
    %c0_i32_0 = arith.constant 0 : i32
    %c0_i32_1 = arith.constant 0 : i32
    return %c0_i32, %c0_i32_0 : i32, i32
  }
}

module attributes {stable_mosaic.version = 11 : i64} {
  func.func @_decode_boxes_kernel(%arg0: i32, %arg1: memref<4x32xf32, #tpu.memory_space<vmem>>, %arg2: memref<4x32xf32, #tpu.memory_space<vmem>>, %arg3: memref<4x32xf32, #tpu.memory_space<vmem>>) attributes {dimension_semantics = [#tpu.dimension_semantics<arbitrary>], iteration_bounds = array<i64: 1>, scalar_prefetch = 0 : i64, scratch_operands = 0 : i64, tpu.core_type = #tpu.core_type<tc>, window_params = [{pipeline_mode = #tpu.pipeline_mode<synchronous>, transform_indices = @transform_0, window_bounds = array<i64: 4, 32>}, {pipeline_mode = #tpu.pipeline_mode<synchronous>, transform_indices = @transform_1, window_bounds = array<i64: 4, 32>}, {pipeline_mode = #tpu.pipeline_mode<synchronous>, transform_indices = @transform_2, window_bounds = array<i64: 4, 32>}]} {
    %c0 = arith.constant 0 : index
    %c0_0 = arith.constant 0 : index
    %0 = vector.load %arg1[%c0, %c0_0] : memref<4x32xf32, #tpu.memory_space<vmem>>, vector<1x32xf32>
    %c1 = arith.constant 1 : index
    %c0_1 = arith.constant 0 : index
    %1 = vector.load %arg1[%c1, %c0_1] : memref<4x32xf32, #tpu.memory_space<vmem>>, vector<1x32xf32>
    %c2 = arith.constant 2 : index
    %c0_2 = arith.constant 0 : index
    %2 = vector.load %arg1[%c2, %c0_2] : memref<4x32xf32, #tpu.memory_space<vmem>>, vector<1x32xf32>
    %c3 = arith.constant 3 : index
    %c0_3 = arith.constant 0 : index
    %3 = vector.load %arg1[%c3, %c0_3] : memref<4x32xf32, #tpu.memory_space<vmem>>, vector<1x32xf32>
    %4 = arith.subf %2, %0 : vector<1x32xf32>
    %cst = arith.constant 1.000000e+00 : f32
    %5 = vector.broadcast %cst : f32 to vector<1x32xf32>
    %6 = arith.addf %4, %5 : vector<1x32xf32>
    %7 = arith.subf %3, %1 : vector<1x32xf32>
    %cst_4 = arith.constant 1.000000e+00 : f32
    %8 = vector.broadcast %cst_4 : f32 to vector<1x32xf32>
    %9 = arith.addf %7, %8 : vector<1x32xf32>
    %cst_5 = arith.constant 5.000000e-01 : f32
    %10 = vector.broadcast %cst_5 : f32 to vector<1x32xf32>
    %11 = arith.mulf %10, %6 : vector<1x32xf32>
    %12 = arith.addf %0, %11 : vector<1x32xf32>
    %cst_6 = arith.constant 5.000000e-01 : f32
    %13 = vector.broadcast %cst_6 : f32 to vector<1x32xf32>
    %14 = arith.mulf %13, %9 : vector<1x32xf32>
    %15 = arith.addf %1, %14 : vector<1x32xf32>
    %c0_7 = arith.constant 0 : index
    %c0_8 = arith.constant 0 : index
    %16 = vector.load %arg2[%c0_7, %c0_8] : memref<4x32xf32, #tpu.memory_space<vmem>>, vector<1x32xf32>
    %cst_9 = arith.constant 1.000000e-01 : f32
    %17 = vector.broadcast %cst_9 : f32 to vector<1x32xf32>
    %18 = arith.mulf %16, %17 : vector<1x32xf32>
    %c1_10 = arith.constant 1 : index
    %c0_11 = arith.constant 0 : index
    %19 = vector.load %arg2[%c1_10, %c0_11] : memref<4x32xf32, #tpu.memory_space<vmem>>, vector<1x32xf32>
    %cst_12 = arith.constant 1.000000e-01 : f32
    %20 = vector.broadcast %cst_12 : f32 to vector<1x32xf32>
    %21 = arith.mulf %19, %20 : vector<1x32xf32>
    %c2_13 = arith.constant 2 : index
    %c0_14 = arith.constant 0 : index
    %22 = vector.load %arg2[%c2_13, %c0_14] : memref<4x32xf32, #tpu.memory_space<vmem>>, vector<1x32xf32>
    %cst_15 = arith.constant 2.000000e-01 : f32
    %23 = vector.broadcast %cst_15 : f32 to vector<1x32xf32>
    %24 = arith.mulf %22, %23 : vector<1x32xf32>
    %cst_16 = arith.constant 4.13516665 : f32
    %25 = vector.broadcast %cst_16 : f32 to vector<1x32xf32>
    %26 = arith.minimumf %24, %25 : vector<1x32xf32>
    %c3_17 = arith.constant 3 : index
    %c0_18 = arith.constant 0 : index
    %27 = vector.load %arg2[%c3_17, %c0_18] : memref<4x32xf32, #tpu.memory_space<vmem>>, vector<1x32xf32>
    %cst_19 = arith.constant 2.000000e-01 : f32
    %28 = vector.broadcast %cst_19 : f32 to vector<1x32xf32>
    %29 = arith.mulf %27, %28 : vector<1x32xf32>
    %cst_20 = arith.constant 4.13516665 : f32
    %30 = vector.broadcast %cst_20 : f32 to vector<1x32xf32>
    %31 = arith.minimumf %29, %30 : vector<1x32xf32>
    %32 = arith.mulf %18, %6 : vector<1x32xf32>
    %33 = arith.addf %32, %12 : vector<1x32xf32>
    %34 = arith.mulf %21, %9 : vector<1x32xf32>
    %35 = arith.addf %34, %15 : vector<1x32xf32>
    %36 = math.exp %26 : vector<1x32xf32>
    %37 = arith.mulf %36, %6 : vector<1x32xf32>
    %38 = math.exp %31 : vector<1x32xf32>
    %39 = arith.mulf %38, %9 : vector<1x32xf32>
    %cst_21 = arith.constant 5.000000e-01 : f32
    %40 = vector.broadcast %cst_21 : f32 to vector<1x32xf32>
    %41 = arith.mulf %40, %37 : vector<1x32xf32>
    %42 = arith.subf %33, %41 : vector<1x32xf32>
    %cst_22 = arith.constant 0.000000e+00 : f32
    %cst_23 = arith.constant 1.500000e+01 : f32
    %43 = vector.broadcast %cst_22 : f32 to vector<1x32xf32>
    %44 = arith.maximumf %43, %42 : vector<1x32xf32>
    %45 = vector.broadcast %cst_23 : f32 to vector<1x32xf32>
    %46 = arith.minimumf %45, %44 : vector<1x32xf32>
    %c0_24 = arith.constant 0 : index
    %c0_25 = arith.constant 0 : index
    %47 = vector.load %arg3[%c0_24, %c0_25] : memref<4x32xf32, #tpu.memory_space<vmem>>, vector<1x32xf32>
    tpu.vector_store %arg3[%c0_24, %c0_25], %46 {strides = array<i32>} : memref<4x32xf32, #tpu.memory_space<vmem>>, vector<1x32xf32>,
    %cst_26 = arith.constant 5.000000e-01 : f32
    %48 = vector.broadcast %cst_26 : f32 to vector<1x32xf32>
    %49 = arith.mulf %48, %39 : vector<1x32xf32>
    %50 = arith.subf %35, %49 : vector<1x32xf32>
    %cst_27 = arith.constant 0.000000e+00 : f32
    %cst_28 = arith.constant 1.500000e+01 : f32
    %51 = vector.broadcast %cst_27 : f32 to vector<1x32xf32>
    %52 = arith.maximumf %51, %50 : vector<1x32xf32>
    %53 = vector.broadcast %cst_28 : f32 to vector<1x32xf32>
    %54 = arith.minimumf %53, %52 : vector<1x32xf32>
    %c1_29 = arith.constant 1 : index
    %c0_30 = arith.constant 0 : index
    %55 = vector.load %arg3[%c1_29, %c0_30] : memref<4x32xf32, #tpu.memory_space<vmem>>, vector<1x32xf32>
    tpu.vector_store %arg3[%c1_29, %c0_30], %54 {strides = array<i32>} : memref<4x32xf32, #tpu.memory_space<vmem>>, vector<1x32xf32>,
    %cst_31 = arith.constant 5.000000e-01 : f32
    %56 = vector.broadcast %cst_31 : f32 to vector<1x32xf32>
    %57 = arith.mulf %56, %37 : vector<1x32xf32>
    %58 = arith.addf %33, %57 : vector<1x32xf32>
    %cst_32 = arith.constant 1.000000e+00 : f32
    %59 = vector.broadcast %cst_32 : f32 to vector<1x32xf32>
    %60 = arith.subf %58, %59 : vector<1x32xf32>
    %cst_33 = arith.constant 0.000000e+00 : f32
    %cst_34 = arith.constant 1.500000e+01 : f32
    %61 = vector.broadcast %cst_33 : f32 to vector<1x32xf32>
    %62 = arith.maximumf %61, %60 : vector<1x32xf32>
    %63 = vector.broadcast %cst_34 : f32 to vector<1x32xf32>
    %64 = arith.minimumf %63, %62 : vector<1x32xf32>
    %c2_35 = arith.constant 2 : index
    %c0_36 = arith.constant 0 : index
    %65 = vector.load %arg3[%c2_35, %c0_36] : memref<4x32xf32, #tpu.memory_space<vmem>>, vector<1x32xf32>
    tpu.vector_store %arg3[%c2_35, %c0_36], %64 {strides = array<i32>} : memref<4x32xf32, #tpu.memory_space<vmem>>, vector<1x32xf32>,
    %cst_37 = arith.constant 5.000000e-01 : f32
    %66 = vector.broadcast %cst_37 : f32 to vector<1x32xf32>
    %67 = arith.mulf %66, %39 : vector<1x32xf32>
    %68 = arith.addf %35, %67 : vector<1x32xf32>
    %cst_38 = arith.constant 1.000000e+00 : f32
    %69 = vector.broadcast %cst_38 : f32 to vector<1x32xf32>
    %70 = arith.subf %68, %69 : vector<1x32xf32>
    %cst_39 = arith.constant 0.000000e+00 : f32
    %cst_40 = arith.constant 1.500000e+01 : f32
    %71 = vector.broadcast %cst_39 : f32 to vector<1x32xf32>
    %72 = arith.maximumf %71, %70 : vector<1x32xf32>
    %73 = vector.broadcast %cst_40 : f32 to vector<1x32xf32>
    %74 = arith.minimumf %73, %72 : vector<1x32xf32>
    %c3_41 = arith.constant 3 : index
    %c0_42 = arith.constant 0 : index
    %75 = vector.load %arg3[%c3_41, %c0_42] : memref<4x32xf32, #tpu.memory_space<vmem>>, vector<1x32xf32>
    tpu.vector_store %arg3[%c3_41, %c0_42], %74 {strides = array<i32>} : memref<4x32xf32, #tpu.memory_space<vmem>>, vector<1x32xf32>,
    return
  }
  func.func @transform_0(%arg0: i32) -> (i32, i32) {
    %c0_i32 = arith.constant 0 : i32
    %c0_i32_0 = arith.constant 0 : i32
    %c0_i32_1 = arith.constant 0 : i32
    return %c0_i32, %c0_i32_0 : i32, i32
  }
  func.func @transform_1(%arg0: i32) -> (i32, i32) {
    %c0_i32 = arith.constant 0 : i32
    %c0_i32_0 = arith.constant 0 : i32
    %c0_i32_1 = arith.constant 0 : i32
    return %c0_i32, %c0_i32_0 : i32, i32
  }
  func.func @transform_2(%arg0: i32) -> (i32, i32) {
    %c0_i32 = arith.constant 0 : i32
    %c0_i32_0 = arith.constant 0 : i32
    %c0_i32_1 = arith.constant 0 : i32
    return %c0_i32, %c0_i32_0 : i32, i32
  }
}

</mosaic_0001>

<llo_original>
// kernel: generalized_rcnn_forward.5
$region0: #{generalized_rcnn_forward.5}
  #allocation0 [shape = 'u32[]', space=smem, size = 0x4, offset = 0x4, fixed_abs, tag = 'smem constant byte address 0x4 - core index']
  #allocation1 [shape = 'u32[72,128]{1,0:T(1,128)}', space=vmem, size = 0x9000, scoped, tag = 'internal scratch']
  #allocation2 [shape = 'f32[256,128]{1,0:T(8,128)}', space=vmem, size = 0x20000, scoped, tag = 'scratch operand']
  %s0 = inlined_call_operand.vmem [shape: bf16[512,128], index: 0, kind: input, shape index: {}]
  %s1 = inlined_call_operand.vmem [shape: bf16[128,128], index: 1, kind: input, shape index: {}]
  %s2 = inlined_call_operand.vmem [shape: f32[1,128], index: 2, kind: input, shape index: {}]
  %s3 = inlined_call_operand.vmem [shape: f32[512,128], index: 3, kind: output, shape index: {}]
  %s4 = sld [smem:[#allocation0]]
  $region53: #{generalized_rcnn_forward.5} parent=0
    _
  %s6 = ssub.s32 1, %s4
  %s7 = scalar_select 0, %s6, %s4
  loop: start=0, step=1, limit=4
  $region2: #{generalized_rcnn_forward.5} parent=0 // loop_pre_header
    _
  $region3: #{generalized_rcnn_forward.5} parent=0 // loop_header
    %s9 = sphi 0, %s13
    %p10 = scmp.ge.s32.totalorder %s9, 4
    %s16 = sphi 0, %s28
    %s17 = sphi 0, %s24
    %s18 = sphi 0, %s16
    %s19 = sphi 0, %s17
    %s20 = sphi 0, %s18
    %s21 = sphi 0, %s19
    %s33 = sphi 0, %s35
    %s36 = sphi 0, %s33
    %s37 = sphi 0, %s36
    %s53 = sphi 0, %s37
    %s59 = sphi 0, %s61
    %s62 = sphi 0, %s59
    %s63 = sphi 0, %s62
    %s79 = sphi 0, %s63
    %s83 = sphi 0, %s83
    %s85 = sphi 0, %s83
    %s86 = sphi 0, %s85
    %s100 = sphi 0, %s86
    %s106 = sphi 0, %s108
    %s109 = sphi 0, %s106
    %s110 = sphi 0, %s109
    %s126 = sphi 0, %s110
  $region4: #{generalized_rcnn_forward.5} parent=0 // loop_header_branch
    %12 = sbr.rel (%p10) target = $region8
  $region5: #{generalized_rcnn_forward.5} parent=0 // loop_body
    %s14 = ssub.s32 %s9, 1
    %s15 = ssub.s32 %s9, 2
    %s22 = sadd.s32 1, %s17
    %p23 = scmp.ge.s32.totalorder %s22, 1
    %s24 = scalar_select %p23, 0, %s22
    %s25 = sadd.s32 1, %s16
    %s26 = scalar_select %p23, %s25, %s16
    %p27 = scmp.ge.s32.totalorder %s26, 2
    %s28 = scalar_select %p27, 0, %s26
    %s29 = ssub.s32 %s16, %s28
    %s30 = ssub.s32 %s17, %s24
    %s31 = sor.u32 %s29, %s30
    %p32 = scmp.eq.s32.totalorder %s31, 0
    %s34 = sadd.s32 %s33, 1
    %s35 = scalar_select %p32, %s33, %s34
    %p38 = pneg %p32
    %p39 = scmp.eq.s32.totalorder %s9, 1
    %p40 = por %p38, %p39
    %p41 = scmp.ne.s32.totalorder %s33, %s36
    %p42 = scmp.eq.s32.totalorder %s9, 0
    %p43 = por %p41, %p42
    %p44 = scmp.ne.s32.totalorder %s33, %s36
    %p45 = scmp.eq.s32.totalorder %s14, 1
    %p46 = por %p44, %p45
    %p47 = scmp.ne.s32.totalorder %s36, %s37
    %p48 = scmp.eq.s32.totalorder %s14, 0
    %p49 = por %p47, %p48
    %p50 = scmp.ne.s32.totalorder %s36, %s37
    %p51 = scmp.eq.s32.totalorder %s15, 1
    %p52 = por %p50, %p51
    %p54 = scmp.ne.s32.totalorder %s37, %s53
    %p55 = scmp.eq.s32.totalorder %s15, 0
    %p56 = por %p54, %p55
    %s57 = ssub.s32 %s17, %s24
    %p58 = scmp.eq.s32.totalorder %s57, 0
    %s60 = sadd.s32 %s59, 1
    %s61 = scalar_select %p58, %s59, %s60
    %p64 = pneg %p58
    %p65 = scmp.eq.s32.totalorder %s9, 1
    %p66 = por %p64, %p65
    %p67 = scmp.ne.s32.totalorder %s59, %s62
    %p68 = scmp.eq.s32.totalorder %s9, 0
    %p69 = por %p67, %p68
    %p70 = scmp.ne.s32.totalorder %s59, %s62
    %p71 = scmp.eq.s32.totalorder %s14, 1
    %p72 = por %p70, %p71
    %p73 = scmp.ne.s32.totalorder %s62, %s63
    %p74 = scmp.eq.s32.totalorder %s14, 0
    %p75 = por %p73, %p74
    %p76 = scmp.ne.s32.totalorder %s62, %s63
    %p77 = scmp.eq.s32.totalorder %s15, 1
    %p78 = por %p76, %p77
    %p80 = scmp.ne.s32.totalorder %s63, %s79
    %p81 = scmp.eq.s32.totalorder %s15, 0
    %p82 = por %p80, %p81
    %s84 = sadd.s32 %s83, 1
    %p87 = scmp.eq.s32.totalorder %s9, 1
    %p88 = scmp.ne.s32.totalorder %s83, %s85
    %p89 = scmp.eq.s32.totalorder %s9, 0
    %p90 = por %p88, %p89
    %p91 = scmp.ne.s32.totalorder %s83, %s85
    %p92 = scmp.eq.s32.totalorder %s14, 1
    %p93 = por %p91, %p92
    %p94 = scmp.ne.s32.totalorder %s85, %s86
    %p95 = scmp.eq.s32.totalorder %s14, 0
    %p96 = por %p94, %p95
    %p97 = scmp.ne.s32.totalorder %s85, %s86
    %p98 = scmp.eq.s32.totalorder %s15, 1
    %p99 = por %p97, %p98
    %p101 = scmp.ne.s32.totalorder %s86, %s100
    %p102 = scmp.eq.s32.totalorder %s15, 0
    %p103 = por %p101, %p102
    %s104 = ssub.s32 %s16, %s28
    %p105 = scmp.eq.s32.totalorder %s104, 0
    %s107 = sadd.s32 %s106, 1
    %s108 = scalar_select %p105, %s106, %s107
    %p111 = pneg %p105
    %p112 = scmp.eq.s32.totalorder %s9, 1
    %p113 = por %p111, %p112
    %p114 = scmp.ne.s32.totalorder %s106, %s109
    %p115 = scmp.eq.s32.totalorder %s9, 0
    %p116 = por %p114, %p115
    %p117 = scmp.ne.s32.totalorder %s106, %s109
    %p118 = scmp.eq.s32.totalorder %s14, 1
    %p119 = por %p117, %p118
    %p120 = scmp.ne.s32.totalorder %s109, %s110
    %p121 = scmp.eq.s32.totalorder %s14, 0
    %p122 = por %p120, %p121
    %p123 = scmp.ne.s32.totalorder %s109, %s110
    %p124 = scmp.eq.s32.totalorder %s15, 1
    %p125 = por %p123, %p124
    %p127 = scmp.ne.s32.totalorder %s110, %s126
    %p128 = scmp.eq.s32.totalorder %s15, 0
    %p129 = por %p127, %p128
    %p130 = scmp.le.s32.totalorder 1, %s9
    %p131 = scmp.lt.s32.totalorder %s9, 3
    %p132 = pnand %p130, %p131
    %p133 = pneg %p132
    // Predicated region
    $region9: #{generalized_rcnn_forward.5} parent=5 // pred_check
      _
    $region10: #{generalized_rcnn_forward.5} parent=5 // pred_check_branch
      %135 = sbr.rel (%p132) target = $region12
    $region11: #{generalized_rcnn_forward.5} parent=5 // pred_region
      %s136 = ssub.s32 %s9, 1
      // Predicated region
      $region13: #{generalized_rcnn_forward.5} parent=11 // pred_check
        %p137 = pneg %p75
      $region14: #{generalized_rcnn_forward.5} parent=11 // pred_check_branch
        %139 = sbr.rel (%p137) target = $region16
      $region15: #{generalized_rcnn_forward.5} parent=11 // pred_region
        %s140 = smul.u32 16, %s19
        %p141 = scmp.lt.s32.totalorder %s140, 15
        %s142 = scalar_select %p141, %s140, 15
        %s143 = smul.addr %s142, 4
        %s144 = scalar_lea.vmem %s1, %s143
        %s145 = smul.u32 16, %s19
      $region16: #{generalized_rcnn_forward.5} parent=11 // pred_fallthru
        _
      // Predicated region
      $region17: #{generalized_rcnn_forward.5} parent=11 // pred_check
        %p146 = pneg %p96
      $region18: #{generalized_rcnn_forward.5} parent=11 // pred_check_branch
        %148 = sbr.rel (%p146) target = $region20
      $region19: #{generalized_rcnn_forward.5} parent=11 // pred_region
        _
      $region20: #{generalized_rcnn_forward.5} parent=11 // pred_fallthru
        _
    $region12: #{generalized_rcnn_forward.5} parent=5 // pred_fallthru
      _
    %p149 = scmp.lt.s32.totalorder %s9, 2
    // Predicated region
    $region21: #{generalized_rcnn_forward.5} parent=5 // pred_check
      %p150 = pneg %p149
    $region22: #{generalized_rcnn_forward.5} parent=5 // pred_check_branch
      %152 = sbr.rel (%p150) target = $region24
    $region23: #{generalized_rcnn_forward.5} parent=5 // pred_region
      // Predicated region
      $region25: #{generalized_rcnn_forward.5} parent=23 // pred_check
        %p153 = pneg %p43
      $region26: #{generalized_rcnn_forward.5} parent=23 // pred_check_branch
        %155 = sbr.rel (%p153) target = $region28
      $region27: #{generalized_rcnn_forward.5} parent=23 // pred_region
        %s156 = smul.u32 32, %s16
        %p157 = scmp.lt.s32.totalorder %s156, 63
        %s158 = scalar_select %p157, %s156, 63
        %p159 = scmp.lt.s32.totalorder %s17, 0
        %s160 = scalar_select %p159, %s17, 0
        %s161 = sadd.s32 %s160, %s158
        %s162 = smul.addr %s161, 4
        %s163 = scalar_lea.vmem %s0, %s162
        %s164 = smul.u32 32, %s16
      $region28: #{generalized_rcnn_forward.5} parent=23 // pred_fallthru
        _
    $region24: #{generalized_rcnn_forward.5} parent=5 // pred_fallthru
      _
    %p165 = scmp.le.s32.totalorder 1, %s9
    %p166 = scmp.lt.s32.totalorder %s9, 3
    %p167 = pnand %p165, %p166
    %p168 = pneg %p167
    // Predicated region
    $region29: #{generalized_rcnn_forward.5} parent=5 // pred_check
      _
    $region30: #{generalized_rcnn_forward.5} parent=5 // pred_check_branch
      %170 = sbr.rel (%p167) target = $region32
    $region31: #{generalized_rcnn_forward.5} parent=5 // pred_region
      %s171 = ssub.s32 %s9, 1
      %s172 = smul.u32 32, %s18
      %p173 = scmp.lt.s32.totalorder %s172, 63
      %s174 = scalar_select %p173, %s172, 63
      %p175 = scmp.lt.s32.totalorder %s19, 0
      %s176 = scalar_select %p175, %s19, 0
      %s177 = sadd.s32 %s176, %s174
      %s178 = smul.addr %s177, 4
      %s179 = scalar_lea.vmem %s0, %s178
      %p180 = pneg %p49
      %p181 = pneg %p46
      %s182 = smul.u32 16, %s19
      %p183 = scmp.lt.s32.totalorder %s182, 15
      %s184 = scalar_select %p183, %s182, 15
      %s185 = smul.addr %s184, 4
      %s186 = scalar_lea.vmem %s1, %s185
      %p187 = pneg %p75
      %p188 = pneg %p72
      %p189 = pneg %p96
      %p190 = pneg %p93
      %p191 = pneg %p122
      %p192 = pneg %p119
      %s193 = smul.u32 32, %s18
      %p194 = scmp.lt.s32.totalorder %s193, 63
      %s195 = scalar_select %p194, %s193, 63
      %s196 = smul.addr %s195, 8
      %s197 = scalar_lea.vmem %s3, %s196
      %s198 = smul.u32 32, %s18
      %p199 = scmp.lt.s32.totalorder %s198, 63
      %s200 = scalar_select %p199, %s198, 63
      %p201 = scmp.lt.s32.totalorder %s19, 0
      %s202 = scalar_select %p201, %s19, 0
      %s203 = sadd.s32 %s202, %s200
      %s204 = smul.addr %s203, 4
      %s205 = scalar_lea.vmem %s0, %s204
      %s206 = smul.u32 32, %s18
      %s207 = smul.u32 16, %s19
      %p208 = scmp.lt.s32.totalorder %s207, 15
      %s209 = scalar_select %p208, %s207, 15
      %s210 = smul.addr %s209, 4
      %s211 = scalar_lea.vmem %s1, %s210
      %s212 = smul.u32 16, %s19
      %s213 = smul.u32 32, %s18
      %p214 = scmp.lt.s32.totalorder %s213, 63
      %s215 = scalar_select %p214, %s213, 63
      %s216 = smul.addr %s215, 8
      %s217 = scalar_lea.vmem %s3, %s216
      %s218 = smul.u32 32, %s18
      %p219 = scmp.eq.s32.totalorder %s19, 0
      // Predicated region
      $region33: #{generalized_rcnn_forward.5} parent=31 // pred_check
        %p220 = pneg %p219
      $region34: #{generalized_rcnn_forward.5} parent=31 // pred_check_branch
        %222 = sbr.rel (%p220) target = $region36
      $region35: #{generalized_rcnn_forward.5} parent=31 // pred_region
        %223 = vst [vmem:[#allocation2] sm:$0xff] 0.0
        %224 = vst [vmem:[#allocation2 + $0x8] sm:$0xff] 0.0
        %225 = vst [vmem:[#allocation2 + $0x10] sm:$0xff] 0.0
        %226 = vst [vmem:[#allocation2 + $0x18] sm:$0xff] 0.0
        %227 = vst [vmem:[#allocation2 + $0x20] sm:$0xff] 0.0
        %228 = vst [vmem:[#allocation2 + $0x28] sm:$0xff] 0.0
        %229 = vst [vmem:[#allocation2 + $0x30] sm:$0xff] 0.0
        %230 = vst [vmem:[#allocation2 + $0x38] sm:$0xff] 0.0
        %231 = vst [vmem:[#allocation2 + $0x40] sm:$0xff] 0.0
        %232 = vst [vmem:[#allocation2 + $0x48] sm:$0xff] 0.0
        %233 = vst [vmem:[#allocation2 + $0x50] sm:$0xff] 0.0
        %234 = vst [vmem:[#allocation2 + $0x58] sm:$0xff] 0.0
        %235 = vst [vmem:[#allocation2 + $0x60] sm:$0xff] 0.0
        %236 = vst [vmem:[#allocation2 + $0x68] sm:$0xff] 0.0
        %237 = vst [vmem:[#allocation2 + $0x70] sm:$0xff] 0.0
        %238 = vst [vmem:[#allocation2 + $0x78] sm:$0xff] 0.0
        %239 = vst [vmem:[#allocation2 + $0x80] sm:$0xff] 0.0
        %240 = vst [vmem:[#allocation2 + $0x88] sm:$0xff] 0.0
        %241 = vst [vmem:[#allocation2 + $0x90] sm:$0xff] 0.0
        %242 = vst [vmem:[#allocation2 + $0x98] sm:$0xff] 0.0
        %243 = vst [vmem:[#allocation2 + $0xa0] sm:$0xff] 0.0
        %244 = vst [vmem:[#allocation2 + $0xa8] sm:$0xff] 0.0
        %245 = vst [vmem:[#allocation2 + $0xb0] sm:$0xff] 0.0
        %246 = vst [vmem:[#allocation2 + $0xb8] sm:$0xff] 0.0
        %247 = vst [vmem:[#allocation2 + $0xc0] sm:$0xff] 0.0
        %248 = vst [vmem:[#allocation2 + $0xc8] sm:$0xff] 0.0
        %249 = vst [vmem:[#allocation2 + $0xd0] sm:$0xff] 0.0
        %250 = vst [vmem:[#allocation2 + $0xd8] sm:$0xff] 0.0
        %251 = vst [vmem:[#allocation2 + $0xe0] sm:$0xff] 0.0
        %252 = vst [vmem:[#allocation2 + $0xe8] sm:$0xff] 0.0
        %253 = vst [vmem:[#allocation2 + $0xf0] sm:$0xff] 0.0
        %254 = vst [vmem:[#allocation2 + $0xf8] sm:$0xff] 0.0
      $region36: #{generalized_rcnn_forward.5} parent=31 // pred_fallthru
        _
      %v255 = vld [vmem:[#allocation2] sm:$0xff]
      %v256 = vld [vmem:[#allocation2 + $0x8] sm:$0xff]
      %v257 = vld [vmem:[#allocation2 + $0x10] sm:$0xff]
      %v258 = vld [vmem:[#allocation2 + $0x18] sm:$0xff]
      %v259 = vld [vmem:[#allocation2 + $0x20] sm:$0xff]
      %v260 = vld [vmem:[#allocation2 + $0x28] sm:$0xff]
      %v261 = vld [vmem:[#allocation2 + $0x30] sm:$0xff]
      %v262 = vld [vmem:[#allocation2 + $0x38] sm:$0xff]
      %v263 = vld [vmem:[#allocation2 + $0x40] sm:$0xff]
      %v264 = vld [vmem:[#allocation2 + $0x48] sm:$0xff]
      %v265 = vld [vmem:[#allocation2 + $0x50] sm:$0xff]
      %v266 = vld [vmem:[#allocation2 + $0x58] sm:$0xff]
      %v267 = vld [vmem:[#allocation2 + $0x60] sm:$0xff]
      %v268 = vld [vmem:[#allocation2 + $0x68] sm:$0xff]
      %v269 = vld [vmem:[#allocation2 + $0x70] sm:$0xff]
      %v270 = vld [vmem:[#allocation2 + $0x78] sm:$0xff]
      %v271 = vld [vmem:[#allocation2 + $0x80] sm:$0xff]
      %v272 = vld [vmem:[#allocation2 + $0x88] sm:$0xff]
      %v273 = vld [vmem:[#allocation2 + $0x90] sm:$0xff]
      %v274 = vld [vmem:[#allocation2 + $0x98] sm:$0xff]
      %v275 = vld [vmem:[#allocation2 + $0xa0] sm:$0xff]
      %v276 = vld [vmem:[#allocation2 + $0xa8] sm:$0xff]
      %v277 = vld [vmem:[#allocation2 + $0xb0] sm:$0xff]
      %v278 = vld [vmem:[#allocation2 + $0xb8] sm:$0xff]
      %v279 = vld [vmem:[#allocation2 + $0xc0] sm:$0xff]
      %v280 = vld [vmem:[#allocation2 + $0xc8] sm:$0xff]
      %v281 = vld [vmem:[#allocation2 + $0xd0] sm:$0xff]
      %v282 = vld [vmem:[#allocation2 + $0xd8] sm:$0xff]
      %v283 = vld [vmem:[#allocation2 + $0xe0] sm:$0xff]
      %v284 = vld [vmem:[#allocation2 + $0xe8] sm:$0xff]
      %v285 = vld [vmem:[#allocation2 + $0xf0] sm:$0xff]
      %v286 = vld [vmem:[#allocation2 + $0xf8] sm:$0xff]
      %v287 = vld [vmem:[%s205] sm:$0xf]
      %v288 = vld [vmem:[%s205 + $0x4] sm:$0xf]
      %v289 = vld [vmem:[%s205 + $0x8] sm:$0xf]
      %v290 = vld [vmem:[%s205 + $0xc] sm:$0xf]
      %v291 = vld [vmem:[%s205 + $0x10] sm:$0xf]
      %v292 = vld [vmem:[%s205 + $0x14] sm:$0xf]
      %v293 = vld [vmem:[%s205 + $0x18] sm:$0xf]
      %v294 = vld [vmem:[%s205 + $0x1c] sm:$0xf]
      %v295 = vld [vmem:[%s205 + $0x20] sm:$0xf]
      %v296 = vld [vmem:[%s205 + $0x24] sm:$0xf]
      %v297 = vld [vmem:[%s205 + $0x28] sm:$0xf]
      %v298 = vld [vmem:[%s205 + $0x2c] sm:$0xf]
      %v299 = vld [vmem:[%s205 + $0x30] sm:$0xf]
      %v300 = vld [vmem:[%s205 + $0x34] sm:$0xf]
      %v301 = vld [vmem:[%s205 + $0x38] sm:$0xf]
      %v302 = vld [vmem:[%s205 + $0x3c] sm:$0xf]
      %v303 = vld [vmem:[%s205 + $0x40] sm:$0xf]
      %v304 = vld [vmem:[%s205 + $0x44] sm:$0xf]
      %v305 = vld [vmem:[%s205 + $0x48] sm:$0xf]
      %v306 = vld [vmem:[%s205 + $0x4c] sm:$0xf]
      %v307 = vld [vmem:[%s205 + $0x50] sm:$0xf]
      %v308 = vld [vmem:[%s205 + $0x54] sm:$0xf]
      %v309 = vld [vmem:[%s205 + $0x58] sm:$0xf]
      %v310 = vld [vmem:[%s205 + $0x5c] sm:$0xf]
      %v311 = vld [vmem:[%s205 + $0x60] sm:$0xf]
      %v312 = vld [vmem:[%s205 + $0x64] sm:$0xf]
      %v313 = vld [vmem:[%s205 + $0x68] sm:$0xf]
      %v314 = vld [vmem:[%s205 + $0x6c] sm:$0xf]
      %v315 = vld [vmem:[%s205 + $0x70] sm:$0xf]
      %v316 = vld [vmem:[%s205 + $0x74] sm:$0xf]
      %v317 = vld [vmem:[%s205 + $0x78] sm:$0xf]
      %v318 = vld [vmem:[%s205 + $0x7c] sm:$0xf]
      %v319 = vld [vmem:[%s211] sm:$0xf]
      %v320 = vld [vmem:[%s211 + $0x4] sm:$0xf]
      %v321 = vld [vmem:[%s211 + $0x8] sm:$0xf]
      %v322 = vld [vmem:[%s211 + $0xc] sm:$0xf]
      %v323 = vld [vmem:[%s211 + $0x10] sm:$0xf]
      %v324 = vld [vmem:[%s211 + $0x14] sm:$0xf]
      %v325 = vld [vmem:[%s211 + $0x18] sm:$0xf]
      %v326 = vld [vmem:[%s211 + $0x1c] sm:$0xf]
      %v327 = vld [vmem:[%s211 + $0x20] sm:$0xf]
      %v328 = vld [vmem:[%s211 + $0x24] sm:$0xf]
      %v329 = vld [vmem:[%s211 + $0x28] sm:$0xf]
      %v330 = vld [vmem:[%s211 + $0x2c] sm:$0xf]
      %v331 = vld [vmem:[%s211 + $0x30] sm:$0xf]
      %v332 = vld [vmem:[%s211 + $0x34] sm:$0xf]
      %v333 = vld [vmem:[%s211 + $0x38] sm:$0xf]
      %v334 = vld [vmem:[%s211 + $0x3c] sm:$0xf]
      %v367 = vunpack.c.l.b16 %v287
      %v368 = vunpack.c.l.b16 %v288
      %v369 = vunpack.c.l.b16 %v289
      %v370 = vunpack.c.l.b16 %v290
      %v371 = vunpack.c.l.b16 %v291
      %v372 = vunpack.c.l.b16 %v292
      %v373 = vunpack.c.l.b16 %v293
      %v374 = vunpack.c.l.b16 %v294
      %v375 = vunpack.c.l.b16 %v295
      %v376 = vunpack.c.l.b16 %v296
      %v377 = vunpack.c.l.b16 %v297
      %v378 = vunpack.c.l.b16 %v298
      %v379 = vunpack.c.l.b16 %v299
      %v380 = vunpack.c.l.b16 %v300
      %v381 = vunpack.c.l.b16 %v301
      %v382 = vunpack.c.l.b16 %v302
      %v383 = vunpack.c.l.b16 %v303
      %v384 = vunpack.c.l.b16 %v304
      %v385 = vunpack.c.l.b16 %v305
      %v386 = vunpack.c.l.b16 %v306
      %v387 = vunpack.c.l.b16 %v307
      %v388 = vunpack.c.l.b16 %v308
      %v389 = vunpack.c.l.b16 %v309
      %v390 = vunpack.c.l.b16 %v310
      %v391 = vunpack.c.l.b16 %v311
      %v392 = vunpack.c.l.b16 %v312
      %v393 = vunpack.c.l.b16 %v313
      %v394 = vunpack.c.l.b16 %v314
      %v395 = vunpack.c.l.b16 %v315
      %v396 = vunpack.c.l.b16 %v316
      %v397 = vunpack.c.l.b16 %v317
      %v398 = vunpack.c.l.b16 %v318
      %v399 = vpack.c.b16 %v368, %v367
      %v400 = vpack.c.b16 %v370, %v369
      %v401 = vpack.c.b16 %v372, %v371
      %v402 = vpack.c.b16 %v374, %v373
      %v403 = vpack.c.b16 %v376, %v375
      %v404 = vpack.c.b16 %v378, %v377
      %v405 = vpack.c.b16 %v380, %v379
      %v406 = vpack.c.b16 %v382, %v381
      %v407 = vpack.c.b16 %v384, %v383
      %v408 = vpack.c.b16 %v386, %v385
      %v409 = vpack.c.b16 %v388, %v387
      %v410 = vpack.c.b16 %v390, %v389
      %v411 = vpack.c.b16 %v392, %v391
      %v412 = vpack.c.b16 %v394, %v393
      %v413 = vpack.c.b16 %v396, %v395
      %v414 = vpack.c.b16 %v398, %v397
      %v447 = vunpack.c.l.b16 %v319
      %v448 = vunpack.c.l.b16 %v320
      %v449 = vunpack.c.l.b16 %v321
      %v450 = vunpack.c.l.b16 %v322
      %v451 = vunpack.c.l.b16 %v323
      %v452 = vunpack.c.l.b16 %v324
      %v453 = vunpack.c.l.b16 %v325
      %v454 = vunpack.c.l.b16 %v326
      %v455 = vunpack.c.l.b16 %v327
      %v456 = vunpack.c.l.b16 %v328
      %v457 = vunpack.c.l.b16 %v329
      %v458 = vunpack.c.l.b16 %v330
      %v459 = vunpack.c.l.b16 %v331
      %v460 = vunpack.c.l.b16 %v332
      %v461 = vunpack.c.l.b16 %v333
      %v462 = vunpack.c.l.b16 %v334
      %v463 = vpack.c.b16 %v448, %v447
      %v464 = vpack.c.b16 %v450, %v449
      %v465 = vpack.c.b16 %v452, %v451
      %v466 = vpack.c.b16 %v454, %v453
      %v467 = vpack.c.b16 %v456, %v455
      %v468 = vpack.c.b16 %v458, %v457
      %v469 = vpack.c.b16 %v460, %v459
      %v470 = vpack.c.b16 %v462, %v461
      %479 = vmatpush.bf16.msra.mxu0 %v470
      %480 = vmatpush.bf16.msra.mxu0 %v469
      %481 = vmatpush.bf16.msra.mxu0 %v468
      %482 = vmatpush.bf16.msra.mxu0 %v467
      %483 = vmatpush.bf16.msra.mxu0 %v466
      %484 = vmatpush.bf16.msra.mxu0 %v465
      %485 = vmatpush.bf16.msra.mxu0 %v464
      %486 = vmatpush.bf16.msra.mxu0 %v463
      %487 = vmatmul.bf16.gmra.mxu0 %v399
      %v488 = vpop.f32.mrf.mxu0
      %v489 = vadd.f32 0.0, %v488
      %v490 = vpop.f32.mrf.mxu0
      %v491 = vadd.f32 0.0, %v490
      %492 = vmatmul.bf16.gmra.mxu0 %v400
      %v493 = vpop.f32.mrf.mxu0
      %v494 = vadd.f32 0.0, %v493
      %v495 = vpop.f32.mrf.mxu0
      %v496 = vadd.f32 0.0, %v495
      %497 = vmatmul.bf16.gmra.mxu0 %v401
      %v498 = vpop.f32.mrf.mxu0
      %v499 = vadd.f32 0.0, %v498
      %v500 = vpop.f32.mrf.mxu0
      %v501 = vadd.f32 0.0, %v500
      %502 = vmatmul.bf16.gmra.mxu0 %v402
      %v503 = vpop.f32.mrf.mxu0
      %v504 = vadd.f32 0.0, %v503
      %v505 = vpop.f32.mrf.mxu0
      %v506 = vadd.f32 0.0, %v505
      %507 = vmatmul.bf16.gmra.mxu0 %v403
      %v508 = vpop.f32.mrf.mxu0
      %v509 = vadd.f32 0.0, %v508
      %v510 = vpop.f32.mrf.mxu0
      %v511 = vadd.f32 0.0, %v510
      %512 = vmatmul.bf16.gmra.mxu0 %v404
      %v513 = vpop.f32.mrf.mxu0
      %v514 = vadd.f32 0.0, %v513
      %v515 = vpop.f32.mrf.mxu0
      %v516 = vadd.f32 0.0, %v515
      %517 = vmatmul.bf16.gmra.mxu0 %v405
      %v518 = vpop.f32.mrf.mxu0
      %v519 = vadd.f32 0.0, %v518
      %v520 = vpop.f32.mrf.mxu0
      %v521 = vadd.f32 0.0, %v520
      %522 = vmatmul.bf16.gmra.mxu0 %v406
      %v523 = vpop.f32.mrf.mxu0
      %v524 = vadd.f32 0.0, %v523
      %v525 = vpop.f32.mrf.mxu0
      %v526 = vadd.f32 0.0, %v525
      %527 = vmatmul.bf16.gmra.mxu0 %v407
      %v528 = vpop.f32.mrf.mxu0
      %v529 = vadd.f32 0.0, %v528
      %v530 = vpop.f32.mrf.mxu0
      %v531 = vadd.f32 0.0, %v530
      %532 = vmatmul.bf16.gmra.mxu0 %v408
      %v533 = vpop.f32.mrf.mxu0
      %v534 = vadd.f32 0.0, %v533
      %v535 = vpop.f32.mrf.mxu0
      %v536 = vadd.f32 0.0, %v535
      %537 = vmatmul.bf16.gmra.mxu0 %v409
      %v538 = vpop.f32.mrf.mxu0
      %v539 = vadd.f32 0.0, %v538
      %v540 = vpop.f32.mrf.mxu0
      %v541 = vadd.f32 0.0, %v540
      %542 = vmatmul.bf16.gmra.mxu0 %v410
      %v543 = vpop.f32.mrf.mxu0
      %v544 = vadd.f32 0.0, %v543
      %v545 = vpop.f32.mrf.mxu0
      %v546 = vadd.f32 0.0, %v545
      %547 = vmatmul.bf16.gmra.mxu0 %v411
      %v548 = vpop.f32.mrf.mxu0
      %v549 = vadd.f32 0.0, %v548
      %v550 = vpop.f32.mrf.mxu0
      %v551 = vadd.f32 0.0, %v550
      %552 = vmatmul.bf16.gmra.mxu0 %v412
      %v553 = vpop.f32.mrf.mxu0
      %v554 = vadd.f32 0.0, %v553
      %v555 = vpop.f32.mrf.mxu0
      %v556 = vadd.f32 0.0, %v555
      %557 = vmatmul.bf16.gmra.mxu0 %v413
      %v558 = vpop.f32.mrf.mxu0
      %v559 = vadd.f32 0.0, %v558
      %v560 = vpop.f32.mrf.mxu0
      %v561 = vadd.f32 0.0, %v560
      %562 = vmatmul.bf16.gmra.mxu0 %v414
      %v563 = vpop.f32.mrf.mxu0
      %v564 = vadd.f32 0.0, %v563
      %v565 = vpop.f32.mrf.mxu0
      %v566 = vadd.f32 0.0, %v565
      %567 = vdwg.mxu0
      %v568 = vadd.f32 %v255, %v489
      %v569 = vadd.f32 %v256, %v491
      %v570 = vadd.f32 %v257, %v494
      %v571 = vadd.f32 %v258, %v496
      %v572 = vadd.f32 %v259, %v499
      %v573 = vadd.f32 %v260, %v501
      %v574 = vadd.f32 %v261, %v504
      %v575 = vadd.f32 %v262, %v506
      %v576 = vadd.f32 %v263, %v509
      %v577 = vadd.f32 %v264, %v511
      %v578 = vadd.f32 %v265, %v514
      %v579 = vadd.f32 %v266, %v516
      %v580 = vadd.f32 %v267, %v519
      %v581 = vadd.f32 %v268, %v521
      %v582 = vadd.f32 %v269, %v524
      %v583 = vadd.f32 %v270, %v526
      %v584 = vadd.f32 %v271, %v529
      %v585 = vadd.f32 %v272, %v531
      %v586 = vadd.f32 %v273, %v534
      %v587 = vadd.f32 %v274, %v536
      %v588 = vadd.f32 %v275, %v539
      %v589 = vadd.f32 %v276, %v541
      %v590 = vadd.f32 %v277, %v544
      %v591 = vadd.f32 %v278, %v546
      %v592 = vadd.f32 %v279, %v549
      %v593 = vadd.f32 %v280, %v551
      %v594 = vadd.f32 %v281, %v554
      %v595 = vadd.f32 %v282, %v556
      %v596 = vadd.f32 %v283, %v559
      %v597 = vadd.f32 %v284, %v561
      %v598 = vadd.f32 %v285, %v564
      %v599 = vadd.f32 %v286, %v566
      %600 = vst [vmem:[#allocation2] sm:$0xff] %v568
      %601 = vst [vmem:[#allocation2 + $0x8] sm:$0xff] %v569
      %602 = vst [vmem:[#allocation2 + $0x10] sm:$0xff] %v570
      %603 = vst [vmem:[#allocation2 + $0x18] sm:$0xff] %v571
      %604 = vst [vmem:[#allocation2 + $0x20] sm:$0xff] %v572
      %605 = vst [vmem:[#allocation2 + $0x28] sm:$0xff] %v573
      %606 = vst [vmem:[#allocation2 + $0x30] sm:$0xff] %v574
      %607 = vst [vmem:[#allocation2 + $0x38] sm:$0xff] %v575
      %608 = vst [vmem:[#allocation2 + $0x40] sm:$0xff] %v576
      %609 = vst [vmem:[#allocation2 + $0x48] sm:$0xff] %v577
      %610 = vst [vmem:[#allocation2 + $0x50] sm:$0xff] %v578
      %611 = vst [vmem:[#allocation2 + $0x58] sm:$0xff] %v579
      %612 = vst [vmem:[#allocation2 + $0x60] sm:$0xff] %v580
      %613 = vst [vmem:[#allocation2 + $0x68] sm:$0xff] %v581
      %614 = vst [vmem:[#allocation2 + $0x70] sm:$0xff] %v582
      %615 = vst [vmem:[#allocation2 + $0x78] sm:$0xff] %v583
      %616 = vst [vmem:[#allocation2 + $0x80] sm:$0xff] %v584
      %617 = vst [vmem:[#allocation2 + $0x88] sm:$0xff] %v585
      %618 = vst [vmem:[#allocation2 + $0x90] sm:$0xff] %v586
      %619 = vst [vmem:[#allocation2 + $0x98] sm:$0xff] %v587
      %620 = vst [vmem:[#allocation2 + $0xa0] sm:$0xff] %v588
      %621 = vst [vmem:[#allocation2 + $0xa8] sm:$0xff] %v589
      %622 = vst [vmem:[#allocation2 + $0xb0] sm:$0xff] %v590
      %623 = vst [vmem:[#allocation2 + $0xb8] sm:$0xff] %v591
      %624 = vst [vmem:[#allocation2 + $0xc0] sm:$0xff] %v592
      %625 = vst [vmem:[#allocation2 + $0xc8] sm:$0xff] %v593
      %626 = vst [vmem:[#allocation2 + $0xd0] sm:$0xff] %v594
      %627 = vst [vmem:[#allocation2 + $0xd8] sm:$0xff] %v595
      %628 = vst [vmem:[#allocation2 + $0xe0] sm:$0xff] %v596
      %629 = vst [vmem:[#allocation2 + $0xe8] sm:$0xff] %v597
      %630 = vst [vmem:[#allocation2 + $0xf0] sm:$0xff] %v598
      %631 = vst [vmem:[#allocation2 + $0xf8] sm:$0xff] %v599
      // Predicated region
      $region37: #{generalized_rcnn_forward.5} parent=31 // pred_check
        %p632 = pneg %p219
      $region38: #{generalized_rcnn_forward.5} parent=31 // pred_check_branch
        %634 = sbr.rel (%p632) target = $region40
      $region39: #{generalized_rcnn_forward.5} parent=31 // pred_region
        %v635 = vld [vmem:[#allocation2] sm:$0xff]
        %v636 = vld [vmem:[#allocation2 + $0x8] sm:$0xff]
        %v637 = vld [vmem:[#allocation2 + $0x10] sm:$0xff]
        %v638 = vld [vmem:[#allocation2 + $0x18] sm:$0xff]
        %v639 = vld [vmem:[#allocation2 + $0x20] sm:$0xff]
        %v640 = vld [vmem:[#allocation2 + $0x28] sm:$0xff]
        %v641 = vld [vmem:[#allocation2 + $0x30] sm:$0xff]
        %v642 = vld [vmem:[#allocation2 + $0x38] sm:$0xff]
        %v643 = vld [vmem:[#allocation2 + $0x40] sm:$0xff]
        %v644 = vld [vmem:[#allocation2 + $0x48] sm:$0xff]
        %v645 = vld [vmem:[#allocation2 + $0x50] sm:$0xff]
        %v646 = vld [vmem:[#allocation2 + $0x58] sm:$0xff]
        %v647 = vld [vmem:[#allocation2 + $0x60] sm:$0xff]
        %v648 = vld [vmem:[#allocation2 + $0x68] sm:$0xff]
        %v649 = vld [vmem:[#allocation2 + $0x70] sm:$0xff]
        %v650 = vld [vmem:[#allocation2 + $0x78] sm:$0xff]
        %v651 = vld [vmem:[#allocation2 + $0x80] sm:$0xff]
        %v652 = vld [vmem:[#allocation2 + $0x88] sm:$0xff]
        %v653 = vld [vmem:[#allocation2 + $0x90] sm:$0xff]
        %v654 = vld [vmem:[#allocation2 + $0x98] sm:$0xff]
        %v655 = vld [vmem:[#allocation2 + $0xa0] sm:$0xff]
        %v656 = vld [vmem:[#allocation2 + $0xa8] sm:$0xff]
        %v657 = vld [vmem:[#allocation2 + $0xb0] sm:$0xff]
        %v658 = vld [vmem:[#allocation2 + $0xb8] sm:$0xff]
        %v659 = vld [vmem:[#allocation2 + $0xc0] sm:$0xff]
        %v660 = vld [vmem:[#allocation2 + $0xc8] sm:$0xff]
        %v661 = vld [vmem:[#allocation2 + $0xd0] sm:$0xff]
        %v662 = vld [vmem:[#allocation2 + $0xd8] sm:$0xff]
        %v663 = vld [vmem:[#allocation2 + $0xe0] sm:$0xff]
        %v664 = vld [vmem:[#allocation2 + $0xe8] sm:$0xff]
        %v665 = vld [vmem:[#allocation2 + $0xf0] sm:$0xff]
        %v666 = vld [vmem:[#allocation2 + $0xf8] sm:$0xff]
        %v667 = vld [vmem:[%s2] sm:$0x1]
        %v669 = vperm.slane %v667, 0
        %v671 = vadd.f32 %v635, %v669
        %v672 = vadd.f32 %v636, %v669
        %v673 = vadd.f32 %v637, %v669
        %v674 = vadd.f32 %v638, %v669
        %v675 = vadd.f32 %v639, %v669
        %v676 = vadd.f32 %v640, %v669
        %v677 = vadd.f32 %v641, %v669
        %v678 = vadd.f32 %v642, %v669
        %v679 = vadd.f32 %v643, %v669
        %v680 = vadd.f32 %v644, %v669
        %v681 = vadd.f32 %v645, %v669
        %v682 = vadd.f32 %v646, %v669
        %v683 = vadd.f32 %v647, %v669
        %v684 = vadd.f32 %v648, %v669
        %v685 = vadd.f32 %v649, %v669
        %v686 = vadd.f32 %v650, %v669
        %v687 = vadd.f32 %v651, %v669
        %v688 = vadd.f32 %v652, %v669
        %v689 = vadd.f32 %v653, %v669
        %v690 = vadd.f32 %v654, %v669
        %v691 = vadd.f32 %v655, %v669
        %v692 = vadd.f32 %v656, %v669
        %v693 = vadd.f32 %v657, %v669
        %v694 = vadd.f32 %v658, %v669
        %v695 = vadd.f32 %v659, %v669
        %v696 = vadd.f32 %v660, %v669
        %v697 = vadd.f32 %v661, %v669
        %v698 = vadd.f32 %v662, %v669
        %v699 = vadd.f32 %v663, %v669
        %v700 = vadd.f32 %v664, %v669
        %v701 = vadd.f32 %v665, %v669
        %v702 = vadd.f32 %v666, %v669
        %v703 = vmax.f32 %v671, 0.0
        %v704 = vmax.f32 %v672, 0.0
        %v705 = vmax.f32 %v673, 0.0
        %v706 = vmax.f32 %v674, 0.0
        %v707 = vmax.f32 %v675, 0.0
        %v708 = vmax.f32 %v676, 0.0
        %v709 = vmax.f32 %v677, 0.0
        %v710 = vmax.f32 %v678, 0.0
        %v711 = vmax.f32 %v679, 0.0
        %v712 = vmax.f32 %v680, 0.0
        %v713 = vmax.f32 %v681, 0.0
        %v714 = vmax.f32 %v682, 0.0
        %v715 = vmax.f32 %v683, 0.0
        %v716 = vmax.f32 %v684, 0.0
        %v717 = vmax.f32 %v685, 0.0
        %v718 = vmax.f32 %v686, 0.0
        %v719 = vmax.f32 %v687, 0.0
        %v720 = vmax.f32 %v688, 0.0
        %v721 = vmax.f32 %v689, 0.0
        %v722 = vmax.f32 %v690, 0.0
        %v723 = vmax.f32 %v691, 0.0
        %v724 = vmax.f32 %v692, 0.0
        %v725 = vmax.f32 %v693, 0.0
        %v726 = vmax.f32 %v694, 0.0
        %v727 = vmax.f32 %v695, 0.0
        %v728 = vmax.f32 %v696, 0.0
        %v729 = vmax.f32 %v697, 0.0
        %v730 = vmax.f32 %v698, 0.0
        %v731 = vmax.f32 %v699, 0.0
        %v732 = vmax.f32 %v700, 0.0
        %v733 = vmax.f32 %v701, 0.0
        %v734 = vmax.f32 %v702, 0.0
        %735 = vst [vmem:[%s217] sm:$0xff] %v703
        %736 = vst [vmem:[%s217 + $0x8] sm:$0xff] %v704
        %737 = vst [vmem:[%s217 + $0x10] sm:$0xff] %v705
        %738 = vst [vmem:[%s217 + $0x18] sm:$0xff] %v706
        %739 = vst [vmem:[%s217 + $0x20] sm:$0xff] %v707
        %740 = vst [vmem:[%s217 + $0x28] sm:$0xff] %v708
        %741 = vst [vmem:[%s217 + $0x30] sm:$0xff] %v709
        %742 = vst [vmem:[%s217 + $0x38] sm:$0xff] %v710
        %743 = vst [vmem:[%s217 + $0x40] sm:$0xff] %v711
        %744 = vst [vmem:[%s217 + $0x48] sm:$0xff] %v712
        %745 = vst [vmem:[%s217 + $0x50] sm:$0xff] %v713
        %746 = vst [vmem:[%s217 + $0x58] sm:$0xff] %v714
        %747 = vst [vmem:[%s217 + $0x60] sm:$0xff] %v715
        %748 = vst [vmem:[%s217 + $0x68] sm:$0xff] %v716
        %749 = vst [vmem:[%s217 + $0x70] sm:$0xff] %v717
        %750 = vst [vmem:[%s217 + $0x78] sm:$0xff] %v718
        %751 = vst [vmem:[%s217 + $0x80] sm:$0xff] %v719
        %752 = vst [vmem:[%s217 + $0x88] sm:$0xff] %v720
        %753 = vst [vmem:[%s217 + $0x90] sm:$0xff] %v721
        %754 = vst [vmem:[%s217 + $0x98] sm:$0xff] %v722
        %755 = vst [vmem:[%s217 + $0xa0] sm:$0xff] %v723
        %756 = vst [vmem:[%s217 + $0xa8] sm:$0xff] %v724
        %757 = vst [vmem:[%s217 + $0xb0] sm:$0xff] %v725
        %758 = vst [vmem:[%s217 + $0xb8] sm:$0xff] %v726
        %759 = vst [vmem:[%s217 + $0xc0] sm:$0xff] %v727
        %760 = vst [vmem:[%s217 + $0xc8] sm:$0xff] %v728
        %761 = vst [vmem:[%s217 + $0xd0] sm:$0xff] %v729
        %762 = vst [vmem:[%s217 + $0xd8] sm:$0xff] %v730
        %763 = vst [vmem:[%s217 + $0xe0] sm:$0xff] %v731
        %764 = vst [vmem:[%s217 + $0xe8] sm:$0xff] %v732
        %765 = vst [vmem:[%s217 + $0xf0] sm:$0xff] %v733
        %766 = vst [vmem:[%s217 + $0xf8] sm:$0xff] %v734
      $region40: #{generalized_rcnn_forward.5} parent=31 // pred_fallthru
        _
      %s767 = smul.u32 32, %s18
      %p768 = scmp.lt.s32.totalorder %s767, 63
      %s769 = scalar_select %p768, %s767, 63
      %s770 = smul.addr %s769, 8
      %s771 = scalar_lea.vmem %s3, %s770
      // Predicated region
      $region41: #{generalized_rcnn_forward.5} parent=31 // pred_check
        %p772 = pneg %p119
      $region42: #{generalized_rcnn_forward.5} parent=31 // pred_check_branch
        %774 = sbr.rel (%p772) target = $region44
      $region43: #{generalized_rcnn_forward.5} parent=31 // pred_region
        %s775 = smul.u32 32, %s18
      $region44: #{generalized_rcnn_forward.5} parent=31 // pred_fallthru
        _
    $region32: #{generalized_rcnn_forward.5} parent=5 // pred_fallthru
      _
    %p776 = scmp.le.s32.totalorder 2, %s9
    // Predicated region
    $region45: #{generalized_rcnn_forward.5} parent=5 // pred_check
      %p777 = pneg %p776
    $region46: #{generalized_rcnn_forward.5} parent=5 // pred_check_branch
      %779 = sbr.rel (%p777) target = $region48
    $region47: #{generalized_rcnn_forward.5} parent=5 // pred_region
      %s780 = ssub.s32 %s9, 2
      // Predicated region
      $region49: #{generalized_rcnn_forward.5} parent=47 // pred_check
        %p781 = pneg %p125
      $region50: #{generalized_rcnn_forward.5} parent=47 // pred_check_branch
        %783 = sbr.rel (%p781) target = $region52
      $region51: #{generalized_rcnn_forward.5} parent=47 // pred_region
        %s784 = smul.u32 32, %s20
        %p785 = scmp.lt.s32.totalorder %s784, 63
        %s786 = scalar_select %p785, %s784, 63
        %s787 = smul.addr %s786, 8
        %s788 = scalar_lea.vmem %s3, %s787
      $region52: #{generalized_rcnn_forward.5} parent=47 // pred_fallthru
        _
    $region48: #{generalized_rcnn_forward.5} parent=5 // pred_fallthru
      _
  $region6: #{generalized_rcnn_forward.5} parent=0 // loop_footer
    %s13 = sadd.s32 1, %s9
  $region7: #{generalized_rcnn_forward.5} parent=0 // loop_footer_branch
    %8 = sbr.rel target = $region3
  $region8: #{generalized_rcnn_forward.5} parent=0 // loop_exit
    _

// kernel: generalized_rcnn_forward.6
$region0: #{generalized_rcnn_forward.6}
  #allocation0 [shape = 'u32[]', space=smem, size = 0x4, offset = 0x4, fixed_abs, tag = 'smem constant byte address 0x4 - core index']
  #allocation1 [shape = 'u32[72,128]{1,0:T(1,128)}', space=vmem, size = 0x9000, scoped, tag = 'internal scratch']
  %s0 = inlined_call_operand.vmem [shape: bf16[512,384], index: 0, kind: input, shape index: {}]
  %s1 = inlined_call_operand.vmem [shape: bf16[384,128], index: 1, kind: input, shape index: {}]
  %s2 = inlined_call_operand.vmem [shape: f32[1,128], index: 2, kind: input, shape index: {}]
  %s3 = inlined_call_operand.vmem [shape: bf16[128,128], index: 3, kind: input, shape index: {}]
  %s4 = inlined_call_operand.vmem [shape: f32[1,128], index: 4, kind: input, shape index: {}]
  %s5 = inlined_call_operand.vmem [shape: f32[512,128], index: 5, kind: output, shape index: {}]
  %s6 = sld [smem:[#allocation0]]
  $region53: #{generalized_rcnn_forward.6} parent=0
    _
  %s8 = ssub.s32 1, %s6
  %s9 = scalar_select 0, %s8, %s6
  loop: start=0, step=1, limit=4
  $region2: #{generalized_rcnn_forward.6} parent=0 // loop_pre_header
    _
  $region3: #{generalized_rcnn_forward.6} parent=0 // loop_header
    %s11 = sphi 0, %s15
    %p12 = scmp.ge.s32.totalorder %s11, 4
    %s21 = sphi 0, %s23
    %s24 = sphi 0, %s21
    %s25 = sphi 0, %s24
    %s41 = sphi 0, %s25
    %s45 = sphi 0, %s45
    %s47 = sphi 0, %s45
    %s48 = sphi 0, %s47
    %s62 = sphi 0, %s48
    %s66 = sphi 0, %s66
    %s68 = sphi 0, %s66
    %s69 = sphi 0, %s68
    %s83 = sphi 0, %s69
    %s87 = sphi 0, %s87
    %s89 = sphi 0, %s87
    %s90 = sphi 0, %s89
    %s104 = sphi 0, %s90
    %s108 = sphi 0, %s108
    %s110 = sphi 0, %s108
    %s111 = sphi 0, %s110
    %s125 = sphi 0, %s111
    %s131 = sphi 0, %s133
    %s134 = sphi 0, %s131
    %s135 = sphi 0, %s134
    %s151 = sphi 0, %s135
  $region4: #{generalized_rcnn_forward.6} parent=0 // loop_header_branch
    %14 = sbr.rel (%p12) target = $region8
  $region5: #{generalized_rcnn_forward.6} parent=0 // loop_body
    %s16 = ssub.s32 %s11, 1
    %s17 = ssub.s32 %s11, 2
    %s18 = sadd.s32 %s11, 1
    %s19 = ssub.s32 %s11, %s18
    %p20 = scmp.eq.s32.totalorder %s19, 0
    %s22 = sadd.s32 %s21, 1
    %s23 = scalar_select %p20, %s21, %s22
    %p26 = pneg %p20
    %p27 = scmp.eq.s32.totalorder %s11, 1
    %p28 = por %p26, %p27
    %p29 = scmp.ne.s32.totalorder %s21, %s24
    %p30 = scmp.eq.s32.totalorder %s11, 0
    %p31 = por %p29, %p30
    %p32 = scmp.ne.s32.totalorder %s21, %s24
    %p33 = scmp.eq.s32.totalorder %s16, 1
    %p34 = por %p32, %p33
    %p35 = scmp.ne.s32.totalorder %s24, %s25
    %p36 = scmp.eq.s32.totalorder %s16, 0
    %p37 = por %p35, %p36
    %p38 = scmp.ne.s32.totalorder %s24, %s25
    %p39 = scmp.eq.s32.totalorder %s17, 1
    %p40 = por %p38, %p39
    %p42 = scmp.ne.s32.totalorder %s25, %s41
    %p43 = scmp.eq.s32.totalorder %s17, 0
    %p44 = por %p42, %p43
    %s46 = sadd.s32 %s45, 1
    %p49 = scmp.eq.s32.totalorder %s11, 1
    %p50 = scmp.ne.s32.totalorder %s45, %s47
    %p51 = scmp.eq.s32.totalorder %s11, 0
    %p52 = por %p50, %p51
    %p53 = scmp.ne.s32.totalorder %s45, %s47
    %p54 = scmp.eq.s32.totalorder %s16, 1
    %p55 = por %p53, %p54
    %p56 = scmp.ne.s32.totalorder %s47, %s48
    %p57 = scmp.eq.s32.totalorder %s16, 0
    %p58 = por %p56, %p57
    %p59 = scmp.ne.s32.totalorder %s47, %s48
    %p60 = scmp.eq.s32.totalorder %s17, 1
    %p61 = por %p59, %p60
    %p63 = scmp.ne.s32.totalorder %s48, %s62
    %p64 = scmp.eq.s32.totalorder %s17, 0
    %p65 = por %p63, %p64
    %s67 = sadd.s32 %s66, 1
    %p70 = scmp.eq.s32.totalorder %s11, 1
    %p71 = scmp.ne.s32.totalorder %s66, %s68
    %p72 = scmp.eq.s32.totalorder %s11, 0
    %p73 = por %p71, %p72
    %p74 = scmp.ne.s32.totalorder %s66, %s68
    %p75 = scmp.eq.s32.totalorder %s16, 1
    %p76 = por %p74, %p75
    %p77 = scmp.ne.s32.totalorder %s68, %s69
    %p78 = scmp.eq.s32.totalorder %s16, 0
    %p79 = por %p77, %p78
    %p80 = scmp.ne.s32.totalorder %s68, %s69
    %p81 = scmp.eq.s32.totalorder %s17, 1
    %p82 = por %p80, %p81
    %p84 = scmp.ne.s32.totalorder %s69, %s83
    %p85 = scmp.eq.s32.totalorder %s17, 0
    %p86 = por %p84, %p85
    %s88 = sadd.s32 %s87, 1
    %p91 = scmp.eq.s32.totalorder %s11, 1
    %p92 = scmp.ne.s32.totalorder %s87, %s89
    %p93 = scmp.eq.s32.totalorder %s11, 0
    %p94 = por %p92, %p93
    %p95 = scmp.ne.s32.totalorder %s87, %s89
    %p96 = scmp.eq.s32.totalorder %s16, 1
    %p97 = por %p95, %p96
    %p98 = scmp.ne.s32.totalorder %s89, %s90
    %p99 = scmp.eq.s32.totalorder %s16, 0
    %p100 = por %p98, %p99
    %p101 = scmp.ne.s32.totalorder %s89, %s90
    %p102 = scmp.eq.s32.totalorder %s17, 1
    %p103 = por %p101, %p102
    %p105 = scmp.ne.s32.totalorder %s90, %s104
    %p106 = scmp.eq.s32.totalorder %s17, 0
    %p107 = por %p105, %p106
    %s109 = sadd.s32 %s108, 1
    %p112 = scmp.eq.s32.totalorder %s11, 1
    %p113 = scmp.ne.s32.totalorder %s108, %s110
    %p114 = scmp.eq.s32.totalorder %s11, 0
    %p115 = por %p113, %p114
    %p116 = scmp.ne.s32.totalorder %s108, %s110
    %p117 = scmp.eq.s32.totalorder %s16, 1
    %p118 = por %p116, %p117
    %p119 = scmp.ne.s32.totalorder %s110, %s111
    %p120 = scmp.eq.s32.totalorder %s16, 0
    %p121 = por %p119, %p120
    %p122 = scmp.ne.s32.totalorder %s110, %s111
    %p123 = scmp.eq.s32.totalorder %s17, 1
    %p124 = por %p122, %p123
    %p126 = scmp.ne.s32.totalorder %s111, %s125
    %p127 = scmp.eq.s32.totalorder %s17, 0
    %p128 = por %p126, %p127
    %s129 = ssub.s32 %s11, %s18
    %p130 = scmp.eq.s32.totalorder %s129, 0
    %s132 = sadd.s32 %s131, 1
    %s133 = scalar_select %p130, %s131, %s132
    %p136 = pneg %p130
    %p137 = scmp.eq.s32.totalorder %s11, 1
    %p138 = por %p136, %p137
    %p139 = scmp.ne.s32.totalorder %s131, %s134
    %p140 = scmp.eq.s32.totalorder %s11, 0
    %p141 = por %p139, %p140
    %p142 = scmp.ne.s32.totalorder %s131, %s134
    %p143 = scmp.eq.s32.totalorder %s16, 1
    %p144 = por %p142, %p143
    %p145 = scmp.ne.s32.totalorder %s134, %s135
    %p146 = scmp.eq.s32.totalorder %s16, 0
    %p147 = por %p145, %p146
    %p148 = scmp.ne.s32.totalorder %s134, %s135
    %p149 = scmp.eq.s32.totalorder %s17, 1
    %p150 = por %p148, %p149
    %p152 = scmp.ne.s32.totalorder %s135, %s151
    %p153 = scmp.eq.s32.totalorder %s17, 0
    %p154 = por %p152, %p153
    %p155 = scmp.le.s32.totalorder 1, %s11
    %p156 = scmp.lt.s32.totalorder %s11, 3
    %p157 = pnand %p155, %p156
    %p158 = pneg %p157
    // Predicated region
    $region9: #{generalized_rcnn_forward.6} parent=5 // pred_check
      _
    $region10: #{generalized_rcnn_forward.6} parent=5 // pred_check_branch
      %160 = sbr.rel (%p157) target = $region12
    $region11: #{generalized_rcnn_forward.6} parent=5 // pred_region
      %s161 = ssub.s32 %s11, 1
      // Predicated region
      $region13: #{generalized_rcnn_forward.6} parent=11 // pred_check
        %p162 = pneg %p58
      $region14: #{generalized_rcnn_forward.6} parent=11 // pred_check_branch
        %164 = sbr.rel (%p162) target = $region16
      $region15: #{generalized_rcnn_forward.6} parent=11 // pred_region
        _
      $region16: #{generalized_rcnn_forward.6} parent=11 // pred_fallthru
        _
      // Predicated region
      $region17: #{generalized_rcnn_forward.6} parent=11 // pred_check
        %p165 = pneg %p79
      $region18: #{generalized_rcnn_forward.6} parent=11 // pred_check_branch
        %167 = sbr.rel (%p165) target = $region20
      $region19: #{generalized_rcnn_forward.6} parent=11 // pred_region
        _
      $region20: #{generalized_rcnn_forward.6} parent=11 // pred_fallthru
        _
      // Predicated region
      $region21: #{generalized_rcnn_forward.6} parent=11 // pred_check
        %p168 = pneg %p100
      $region22: #{generalized_rcnn_forward.6} parent=11 // pred_check_branch
        %170 = sbr.rel (%p168) target = $region24
      $region23: #{generalized_rcnn_forward.6} parent=11 // pred_region
        _
      $region24: #{generalized_rcnn_forward.6} parent=11 // pred_fallthru
        _
      // Predicated region
      $region25: #{generalized_rcnn_forward.6} parent=11 // pred_check
        %p171 = pneg %p121
      $region26: #{generalized_rcnn_forward.6} parent=11 // pred_check_branch
        %173 = sbr.rel (%p171) target = $region28
      $region27: #{generalized_rcnn_forward.6} parent=11 // pred_region
        _
      $region28: #{generalized_rcnn_forward.6} parent=11 // pred_fallthru
        _
    $region12: #{generalized_rcnn_forward.6} parent=5 // pred_fallthru
      _
    %p174 = scmp.lt.s32.totalorder %s11, 2
    // Predicated region
    $region29: #{generalized_rcnn_forward.6} parent=5 // pred_check
      %p175 = pneg %p174
    $region30: #{generalized_rcnn_forward.6} parent=5 // pred_check_branch
      %177 = sbr.rel (%p175) target = $region32
    $region31: #{generalized_rcnn_forward.6} parent=5 // pred_region
      // Predicated region
      $region33: #{generalized_rcnn_forward.6} parent=31 // pred_check
        %p178 = pneg %p31
      $region34: #{generalized_rcnn_forward.6} parent=31 // pred_check_branch
        %180 = sbr.rel (%p178) target = $region36
      $region35: #{generalized_rcnn_forward.6} parent=31 // pred_region
        %s181 = smul.u32 32, %s11
        %p182 = scmp.lt.s32.totalorder %s181, 63
        %s183 = scalar_select %p182, %s181, 63
        %s184 = smul.addr %s183, 3
        %s185 = smul.addr %s184, 4
        %s186 = scalar_lea.vmem %s0, %s185
        %s187 = smul.u32 32, %s11
      $region36: #{generalized_rcnn_forward.6} parent=31 // pred_fallthru
        _
    $region32: #{generalized_rcnn_forward.6} parent=5 // pred_fallthru
      _
    %p188 = scmp.le.s32.totalorder 1, %s11
    %p189 = scmp.lt.s32.totalorder %s11, 3
    %p190 = pnand %p188, %p189
    %p191 = pneg %p190
    // Predicated region
    $region37: #{generalized_rcnn_forward.6} parent=5 // pred_check
      _
    $region38: #{generalized_rcnn_forward.6} parent=5 // pred_check_branch
      %193 = sbr.rel (%p190) target = $region40
    $region39: #{generalized_rcnn_forward.6} parent=5 // pred_region
      %s194 = ssub.s32 %s11, 1
      %s195 = smul.u32 32, %s16
      %p196 = scmp.lt.s32.totalorder %s195, 63
      %s197 = scalar_select %p196, %s195, 63
      %s198 = smul.addr %s197, 3
      %s199 = smul.addr %s198, 4
      %s200 = scalar_lea.vmem %s0, %s199
      %p201 = pneg %p37
      %p202 = pneg %p34
      %p203 = pneg %p58
      %p204 = pneg %p55
      %p205 = pneg %p79
      %p206 = pneg %p76
      %p207 = pneg %p100
      %p208 = pneg %p97
      %p209 = pneg %p121
      %p210 = pneg %p118
      %p211 = pneg %p147
      %p212 = pneg %p144
      %s213 = smul.u32 32, %s16
      %p214 = scmp.lt.s32.totalorder %s213, 63
      %s215 = scalar_select %p214, %s213, 63
      %s216 = smul.addr %s215, 8
      %s217 = scalar_lea.vmem %s5, %s216
      %s218 = smul.u32 32, %s16
      %p219 = scmp.lt.s32.totalorder %s218, 63
      %s220 = scalar_select %p219, %s218, 63
      %s221 = smul.addr %s220, 3
      %s222 = smul.addr %s221, 4
      %s223 = scalar_lea.vmem %s0, %s222
      %s224 = smul.u32 32, %s16
      %s225 = smul.u32 32, %s16
      %p226 = scmp.lt.s32.totalorder %s225, 63
      %s227 = scalar_select %p226, %s225, 63
      %s228 = smul.addr %s227, 8
      %s229 = scalar_lea.vmem %s5, %s228
      %s230 = smul.u32 32, %s16
      %v231 = vld [vmem:[%s223] sm:$0xff]
      %v232 = vld [vmem:[%s223 + $0x8] sm:$0xf]
      %v233 = vld [vmem:[%s223 + $0xc] sm:$0xff]
      %v234 = vld [vmem:[%s223 + $0x14] sm:$0xf]
      %v235 = vld [vmem:[%s223 + $0x18] sm:$0xff]
      %v236 = vld [vmem:[%s223 + $0x20] sm:$0xf]
      %v237 = vld [vmem:[%s223 + $0x24] sm:$0xff]
      %v238 = vld [vmem:[%s223 + $0x2c] sm:$0xf]
      %v239 = vld [vmem:[%s223 + $0x30] sm:$0xff]
      %v240 = vld [vmem:[%s223 + $0x38] sm:$0xf]
      %v241 = vld [vmem:[%s223 + $0x3c] sm:$0xff]
      %v242 = vld [vmem:[%s223 + $0x44] sm:$0xf]
      %v243 = vld [vmem:[%s223 + $0x48] sm:$0xff]
      %v244 = vld [vmem:[%s223 + $0x50] sm:$0xf]
      %v245 = vld [vmem:[%s223 + $0x54] sm:$0xff]
      %v246 = vld [vmem:[%s223 + $0x5c] sm:$0xf]
      %v247 = vld [vmem:[%s223 + $0x60] sm:$0xff]
      %v248 = vld [vmem:[%s223 + $0x68] sm:$0xf]
      %v249 = vld [vmem:[%s223 + $0x6c] sm:$0xff]
      %v250 = vld [vmem:[%s223 + $0x74] sm:$0xf]
      %v251 = vld [vmem:[%s223 + $0x78] sm:$0xff]
      %v252 = vld [vmem:[%s223 + $0x80] sm:$0xf]
      %v253 = vld [vmem:[%s223 + $0x84] sm:$0xff]
      %v254 = vld [vmem:[%s223 + $0x8c] sm:$0xf]
      %v255 = vld [vmem:[%s223 + $0x90] sm:$0xff]
      %v256 = vld [vmem:[%s223 + $0x98] sm:$0xf]
      %v257 = vld [vmem:[%s223 + $0x9c] sm:$0xff]
      %v258 = vld [vmem:[%s223 + $0xa4] sm:$0xf]
      %v259 = vld [vmem:[%s223 + $0xa8] sm:$0xff]
      %v260 = vld [vmem:[%s223 + $0xb0] sm:$0xf]
      %v261 = vld [vmem:[%s223 + $0xb4] sm:$0xff]
      %v262 = vld [vmem:[%s223 + $0xbc] sm:$0xf]
      %v263 = vld [vmem:[%s223 + $0xc0] sm:$0xff]
      %v264 = vld [vmem:[%s223 + $0xc8] sm:$0xf]
      %v265 = vld [vmem:[%s223 + $0xcc] sm:$0xff]
      %v266 = vld [vmem:[%s223 + $0xd4] sm:$0xf]
      %v267 = vld [vmem:[%s223 + $0xd8] sm:$0xff]
      %v268 = vld [vmem:[%s223 + $0xe0] sm:$0xf]
      %v269 = vld [vmem:[%s223 + $0xe4] sm:$0xff]
      %v270 = vld [vmem:[%s223 + $0xec] sm:$0xf]
      %v271 = vld [vmem:[%s223 + $0xf0] sm:$0xff]
      %v272 = vld [vmem:[%s223 + $0xf8] sm:$0xf]
      %v273 = vld [vmem:[%s223 + $0xfc] sm:$0xff]
      %v274 = vld [vmem:[%s223 + $0x104] sm:$0xf]
      %v275 = vld [vmem:[%s223 + $0x108] sm:$0xff]
      %v276 = vld [vmem:[%s223 + $0x110] sm:$0xf]
      %v277 = vld [vmem:[%s223 + $0x114] sm:$0xff]
      %v278 = vld [vmem:[%s223 + $0x11c] sm:$0xf]
      %v279 = vld [vmem:[%s223 + $0x120] sm:$0xff]
      %v280 = vld [vmem:[%s223 + $0x128] sm:$0xf]
      %v281 = vld [vmem:[%s223 + $0x12c] sm:$0xff]
      %v282 = vld [vmem:[%s223 + $0x134] sm:$0xf]
      %v283 = vld [vmem:[%s223 + $0x138] sm:$0xff]
      %v284 = vld [vmem:[%s223 + $0x140] sm:$0xf]
      %v285 = vld [vmem:[%s223 + $0x144] sm:$0xff]
      %v286 = vld [vmem:[%s223 + $0x14c] sm:$0xf]
      %v287 = vld [vmem:[%s223 + $0x150] sm:$0xff]
      %v288 = vld [vmem:[%s223 + $0x158] sm:$0xf]
      %v289 = vld [vmem:[%s223 + $0x15c] sm:$0xff]
      %v290 = vld [vmem:[%s223 + $0x164] sm:$0xf]
      %v291 = vld [vmem:[%s223 + $0x168] sm:$0xff]
      %v292 = vld [vmem:[%s223 + $0x170] sm:$0xf]
      %v293 = vld [vmem:[%s223 + $0x174] sm:$0xff]
      %v294 = vld [vmem:[%s223 + $0x17c] sm:$0xf]
      %v295 = vld [vmem:[%s1] sm:$0xf]
      %v296 = vld [vmem:[%s1 + $0x4] sm:$0xf]
      %v297 = vld [vmem:[%s1 + $0x8] sm:$0xf]
      %v298 = vld [vmem:[%s1 + $0xc] sm:$0xf]
      %v299 = vld [vmem:[%s1 + $0x10] sm:$0xf]
      %v300 = vld [vmem:[%s1 + $0x14] sm:$0xf]
      %v301 = vld [vmem:[%s1 + $0x18] sm:$0xf]
      %v302 = vld [vmem:[%s1 + $0x1c] sm:$0xf]
      %v303 = vld [vmem:[%s1 + $0x20] sm:$0xf]
      %v304 = vld [vmem:[%s1 + $0x24] sm:$0xf]
      %v305 = vld [vmem:[%s1 + $0x28] sm:$0xf]
      %v306 = vld [vmem:[%s1 + $0x2c] sm:$0xf]
      %v307 = vld [vmem:[%s1 + $0x30] sm:$0xf]
      %v308 = vld [vmem:[%s1 + $0x34] sm:$0xf]
      %v309 = vld [vmem:[%s1 + $0x38] sm:$0xf]
      %v310 = vld [vmem:[%s1 + $0x3c] sm:$0xf]
      %v311 = vld [vmem:[%s1 + $0x40] sm:$0xf]
      %v312 = vld [vmem:[%s1 + $0x44] sm:$0xf]
      %v313 = vld [vmem:[%s1 + $0x48] sm:$0xf]
      %v314 = vld [vmem:[%s1 + $0x4c] sm:$0xf]
      %v315 = vld [vmem:[%s1 + $0x50] sm:$0xf]
      %v316 = vld [vmem:[%s1 + $0x54] sm:$0xf]
      %v317 = vld [vmem:[%s1 + $0x58] sm:$0xf]
      %v318 = vld [vmem:[%s1 + $0x5c] sm:$0xf]
      %v319 = vld [vmem:[%s1 + $0x60] sm:$0xf]
      %v320 = vld [vmem:[%s1 + $0x64] sm:$0xf]
      %v321 = vld [vmem:[%s1 + $0x68] sm:$0xf]
      %v322 = vld [vmem:[%s1 + $0x6c] sm:$0xf]
      %v323 = vld [vmem:[%s1 + $0x70] sm:$0xf]
      %v324 = vld [vmem:[%s1 + $0x74] sm:$0xf]
      %v325 = vld [vmem:[%s1 + $0x78] sm:$0xf]
      %v326 = vld [vmem:[%s1 + $0x7c] sm:$0xf]
      %v327 = vld [vmem:[%s1 + $0x80] sm:$0xf]
      %v328 = vld [vmem:[%s1 + $0x84] sm:$0xf]
      %v329 = vld [vmem:[%s1 + $0x88] sm:$0xf]
      %v330 = vld [vmem:[%s1 + $0x8c] sm:$0xf]
      %v331 = vld [vmem:[%s1 + $0x90] sm:$0xf]
      %v332 = vld [vmem:[%s1 + $0x94] sm:$0xf]
      %v333 = vld [vmem:[%s1 + $0x98] sm:$0xf]
      %v334 = vld [vmem:[%s1 + $0x9c] sm:$0xf]
      %v335 = vld [vmem:[%s1 + $0xa0] sm:$0xf]
      %v336 = vld [vmem:[%s1 + $0xa4] sm:$0xf]
      %v337 = vld [vmem:[%s1 + $0xa8] sm:$0xf]
      %v338 = vld [vmem:[%s1 + $0xac] sm:$0xf]
      %v339 = vld [vmem:[%s1 + $0xb0] sm:$0xf]
      %v340 = vld [vmem:[%s1 + $0xb4] sm:$0xf]
      %v341 = vld [vmem:[%s1 + $0xb8] sm:$0xf]
      %v342 = vld [vmem:[%s1 + $0xbc] sm:$0xf]
      %v343 = vld [vmem:[%s2] sm:$0x1]
      %v345 = vperm.slane %v343, 0
      %v411 = vunpack.c.l.b16 %v231
      %v412 = vunpack.c.h.b16 %v231
      %v413 = vunpack.c.l.b16 %v232
      %v414 = vunpack.c.l.b16 %v233
      %v415 = vunpack.c.h.b16 %v233
      %v416 = vunpack.c.l.b16 %v234
      %v417 = vunpack.c.l.b16 %v235
      %v418 = vunpack.c.h.b16 %v235
      %v419 = vunpack.c.l.b16 %v236
      %v420 = vunpack.c.l.b16 %v237
      %v421 = vunpack.c.h.b16 %v237
      %v422 = vunpack.c.l.b16 %v238
      %v423 = vunpack.c.l.b16 %v239
      %v424 = vunpack.c.h.b16 %v239
      %v425 = vunpack.c.l.b16 %v240
      %v426 = vunpack.c.l.b16 %v241
      %v427 = vunpack.c.h.b16 %v241
      %v428 = vunpack.c.l.b16 %v242
      %v429 = vunpack.c.l.b16 %v243
      %v430 = vunpack.c.h.b16 %v243
      %v431 = vunpack.c.l.b16 %v244
      %v432 = vunpack.c.l.b16 %v245
      %v433 = vunpack.c.h.b16 %v245
      %v434 = vunpack.c.l.b16 %v246
      %v435 = vunpack.c.l.b16 %v247
      %v436 = vunpack.c.h.b16 %v247
      %v437 = vunpack.c.l.b16 %v248
      %v438 = vunpack.c.l.b16 %v249
      %v439 = vunpack.c.h.b16 %v249
      %v440 = vunpack.c.l.b16 %v250
      %v441 = vunpack.c.l.b16 %v251
      %v442 = vunpack.c.h.b16 %v251
      %v443 = vunpack.c.l.b16 %v252
      %v444 = vunpack.c.l.b16 %v253
      %v445 = vunpack.c.h.b16 %v253
      %v446 = vunpack.c.l.b16 %v254
      %v447 = vunpack.c.l.b16 %v255
      %v448 = vunpack.c.h.b16 %v255
      %v449 = vunpack.c.l.b16 %v256
      %v450 = vunpack.c.l.b16 %v257
      %v451 = vunpack.c.h.b16 %v257
      %v452 = vunpack.c.l.b16 %v258
      %v453 = vunpack.c.l.b16 %v259
      %v454 = vunpack.c.h.b16 %v259
      %v455 = vunpack.c.l.b16 %v260
      %v456 = vunpack.c.l.b16 %v261
      %v457 = vunpack.c.h.b16 %v261
      %v458 = vunpack.c.l.b16 %v262
      %v459 = vunpack.c.l.b16 %v263
      %v460 = vunpack.c.h.b16 %v263
      %v461 = vunpack.c.l.b16 %v264
      %v462 = vunpack.c.l.b16 %v265
      %v463 = vunpack.c.h.b16 %v265
      %v464 = vunpack.c.l.b16 %v266
      %v465 = vunpack.c.l.b16 %v267
      %v466 = vunpack.c.h.b16 %v267
      %v467 = vunpack.c.l.b16 %v268
      %v468 = vunpack.c.l.b16 %v269
      %v469 = vunpack.c.h.b16 %v269
      %v470 = vunpack.c.l.b16 %v270
      %v471 = vunpack.c.l.b16 %v271
      %v472 = vunpack.c.h.b16 %v271
      %v473 = vunpack.c.l.b16 %v272
      %v474 = vunpack.c.l.b16 %v273
      %v475 = vunpack.c.h.b16 %v273
      %v476 = vunpack.c.l.b16 %v274
      %v477 = vunpack.c.l.b16 %v275
      %v478 = vunpack.c.h.b16 %v275
      %v479 = vunpack.c.l.b16 %v276
      %v480 = vunpack.c.l.b16 %v277
      %v481 = vunpack.c.h.b16 %v277
      %v482 = vunpack.c.l.b16 %v278
      %v483 = vunpack.c.l.b16 %v279
      %v484 = vunpack.c.h.b16 %v279
      %v485 = vunpack.c.l.b16 %v280
      %v486 = vunpack.c.l.b16 %v281
      %v487 = vunpack.c.h.b16 %v281
      %v488 = vunpack.c.l.b16 %v282
      %v489 = vunpack.c.l.b16 %v283
      %v490 = vunpack.c.h.b16 %v283
      %v491 = vunpack.c.l.b16 %v284
      %v492 = vunpack.c.l.b16 %v285
      %v493 = vunpack.c.h.b16 %v285
      %v494 = vunpack.c.l.b16 %v286
      %v495 = vunpack.c.l.b16 %v287
      %v496 = vunpack.c.h.b16 %v287
      %v497 = vunpack.c.l.b16 %v288
      %v498 = vunpack.c.l.b16 %v289
      %v499 = vunpack.c.h.b16 %v289
      %v500 = vunpack.c.l.b16 %v290
      %v501 = vunpack.c.l.b16 %v291
      %v502 = vunpack.c.h.b16 %v291
      %v503 = vunpack.c.l.b16 %v292
      %v504 = vunpack.c.l.b16 %v293
      %v505 = vunpack.c.h.b16 %v293
      %v506 = vunpack.c.l.b16 %v294
      %v507 = vpack.c.b16 %v414, %v411
      %v508 = vpack.c.b16 %v415, %v412
      %v509 = vpack.c.b16 %v416, %v413
      %v510 = vpack.c.b16 %v420, %v417
      %v511 = vpack.c.b16 %v421, %v418
      %v512 = vpack.c.b16 %v422, %v419
      %v513 = vpack.c.b16 %v426, %v423
      %v514 = vpack.c.b16 %v427, %v424
      %v515 = vpack.c.b16 %v428, %v425
      %v516 = vpack.c.b16 %v432, %v429
      %v517 = vpack.c.b16 %v433, %v430
      %v518 = vpack.c.b16 %v434, %v431
      %v519 = vpack.c.b16 %v438, %v435
      %v520 = vpack.c.b16 %v439, %v436
      %v521 = vpack.c.b16 %v440, %v437
      %v522 = vpack.c.b16 %v444, %v441
      %v523 = vpack.c.b16 %v445, %v442
      %v524 = vpack.c.b16 %v446, %v443
      %v525 = vpack.c.b16 %v450, %v447
      %v526 = vpack.c.b16 %v451, %v448
      %v527 = vpack.c.b16 %v452, %v449
      %v528 = vpack.c.b16 %v456, %v453
      %v529 = vpack.c.b16 %v457, %v454
      %v530 = vpack.c.b16 %v458, %v455
      %v531 = vpack.c.b16 %v462, %v459
      %v532 = vpack.c.b16 %v463, %v460
      %v533 = vpack.c.b16 %v464, %v461
      %v534 = vpack.c.b16 %v468, %v465
      %v535 = vpack.c.b16 %v469, %v466
      %v536 = vpack.c.b16 %v470, %v467
      %v537 = vpack.c.b16 %v474, %v471
      %v538 = vpack.c.b16 %v475, %v472
      %v539 = vpack.c.b16 %v476, %v473
      %v540 = vpack.c.b16 %v480, %v477
      %v541 = vpack.c.b16 %v481, %v478
      %v542 = vpack.c.b16 %v482, %v479
      %v543 = vpack.c.b16 %v486, %v483
      %v544 = vpack.c.b16 %v487, %v484
      %v545 = vpack.c.b16 %v488, %v485
      %v546 = vpack.c.b16 %v492, %v489
      %v547 = vpack.c.b16 %v493, %v490
      %v548 = vpack.c.b16 %v494, %v491
      %v549 = vpack.c.b16 %v498, %v495
      %v550 = vpack.c.b16 %v499, %v496
      %v551 = vpack.c.b16 %v500, %v497
      %v552 = vpack.c.b16 %v504, %v501
      %v553 = vpack.c.b16 %v505, %v502
      %v554 = vpack.c.b16 %v506, %v503
      %v651 = vunpack.c.l.b16 %v295
      %v652 = vunpack.c.l.b16 %v296
      %v653 = vunpack.c.l.b16 %v297
      %v654 = vunpack.c.l.b16 %v298
      %v655 = vunpack.c.l.b16 %v299
      %v656 = vunpack.c.l.b16 %v300
      %v657 = vunpack.c.l.b16 %v301
      %v658 = vunpack.c.l.b16 %v302
      %v659 = vunpack.c.l.b16 %v303
      %v660 = vunpack.c.l.b16 %v304
      %v661 = vunpack.c.l.b16 %v305
      %v662 = vunpack.c.l.b16 %v306
      %v663 = vunpack.c.l.b16 %v307
      %v664 = vunpack.c.l.b16 %v308
      %v665 = vunpack.c.l.b16 %v309
      %v666 = vunpack.c.l.b16 %v310
      %v667 = vunpack.c.l.b16 %v311
      %v668 = vunpack.c.l.b16 %v312
      %v669 = vunpack.c.l.b16 %v313
      %v670 = vunpack.c.l.b16 %v314
      %v671 = vunpack.c.l.b16 %v315
      %v672 = vunpack.c.l.b16 %v316
      %v673 = vunpack.c.l.b16 %v317
      %v674 = vunpack.c.l.b16 %v318
      %v675 = vunpack.c.l.b16 %v319
      %v676 = vunpack.c.l.b16 %v320
      %v677 = vunpack.c.l.b16 %v321
      %v678 = vunpack.c.l.b16 %v322
      %v679 = vunpack.c.l.b16 %v323
      %v680 = vunpack.c.l.b16 %v324
      %v681 = vunpack.c.l.b16 %v325
      %v682 = vunpack.c.l.b16 %v326
      %v683 = vunpack.c.l.b16 %v327
      %v684 = vunpack.c.l.b16 %v328
      %v685 = vunpack.c.l.b16 %v329
      %v686 = vunpack.c.l.b16 %v330
      %v687 = vunpack.c.l.b16 %v331
      %v688 = vunpack.c.l.b16 %v332
      %v689 = vunpack.c.l.b16 %v333
      %v690 = vunpack.c.l.b16 %v334
      %v691 = vunpack.c.l.b16 %v335
      %v692 = vunpack.c.l.b16 %v336
      %v693 = vunpack.c.l.b16 %v337
      %v694 = vunpack.c.l.b16 %v338
      %v695 = vunpack.c.l.b16 %v339
      %v696 = vunpack.c.l.b16 %v340
      %v697 = vunpack.c.l.b16 %v341
      %v698 = vunpack.c.l.b16 %v342
      %v699 = vpack.c.b16 %v652, %v651
      %v700 = vpack.c.b16 %v654, %v653
      %v701 = vpack.c.b16 %v656, %v655
      %v702 = vpack.c.b16 %v658, %v657
      %v703 = vpack.c.b16 %v660, %v659
      %v704 = vpack.c.b16 %v662, %v661
      %v705 = vpack.c.b16 %v664, %v663
      %v706 = vpack.c.b16 %v666, %v665
      %v707 = vpack.c.b16 %v668, %v667
      %v708 = vpack.c.b16 %v670, %v669
      %v709 = vpack.c.b16 %v672, %v671
      %v710 = vpack.c.b16 %v674, %v673
      %v711 = vpack.c.b16 %v676, %v675
      %v712 = vpack.c.b16 %v678, %v677
      %v713 = vpack.c.b16 %v680, %v679
      %v714 = vpack.c.b16 %v682, %v681
      %v715 = vpack.c.b16 %v684, %v683
      %v716 = vpack.c.b16 %v686, %v685
      %v717 = vpack.c.b16 %v688, %v687
      %v718 = vpack.c.b16 %v690, %v689
      %v719 = vpack.c.b16 %v692, %v691
      %v720 = vpack.c.b16 %v694, %v693
      %v721 = vpack.c.b16 %v696, %v695
      %v722 = vpack.c.b16 %v698, %v697
      %747 = vmatpush.bf16.msra.mxu0 %v706
      %748 = vmatpush.bf16.msra.mxu0 %v705
      %749 = vmatpush.bf16.msra.mxu0 %v704
      %750 = vmatpush.bf16.msra.mxu0 %v703
      %751 = vmatpush.bf16.msra.mxu0 %v702
      %752 = vmatpush.bf16.msra.mxu0 %v701
      %753 = vmatpush.bf16.msra.mxu0 %v700
      %754 = vmatpush.bf16.msra.mxu0 %v699
      %755 = vmatmul.bf16.gmra.mxu0 %v507
      %v756 = vpop.f32.mrf.mxu0
      %v757 = vadd.f32 %v345, %v756
      %v758 = vpop.f32.mrf.mxu0
      %v759 = vadd.f32 %v345, %v758
      %760 = vmatmul.bf16.gmra.mxu0 %v510
      %v761 = vpop.f32.mrf.mxu0
      %v762 = vadd.f32 %v345, %v761
      %v763 = vpop.f32.mrf.mxu0
      %v764 = vadd.f32 %v345, %v763
      %765 = vmatmul.bf16.gmra.mxu0 %v513
      %v766 = vpop.f32.mrf.mxu0
      %v767 = vadd.f32 %v345, %v766
      %v768 = vpop.f32.mrf.mxu0
      %v769 = vadd.f32 %v345, %v768
      %770 = vmatmul.bf16.gmra.mxu0 %v516
      %v771 = vpop.f32.mrf.mxu0
      %v772 = vadd.f32 %v345, %v771
      %v773 = vpop.f32.mrf.mxu0
      %v774 = vadd.f32 %v345, %v773
      %775 = vmatmul.bf16.gmra.mxu0 %v519
      %v776 = vpop.f32.mrf.mxu0
      %v777 = vadd.f32 %v345, %v776
      %v778 = vpop.f32.mrf.mxu0
      %v779 = vadd.f32 %v345, %v778
      %780 = vmatmul.bf16.gmra.mxu0 %v522
      %v781 = vpop.f32.mrf.mxu0
      %v782 = vadd.f32 %v345, %v781
      %v783 = vpop.f32.mrf.mxu0
      %v784 = vadd.f32 %v345, %v783
      %785 = vmatmul.bf16.gmra.mxu0 %v525
      %v786 = vpop.f32.mrf.mxu0
      %v787 = vadd.f32 %v345, %v786
      %v788 = vpop.f32.mrf.mxu0
      %v789 = vadd.f32 %v345, %v788
      %790 = vmatmul.bf16.gmra.mxu0 %v528
      %v791 = vpop.f32.mrf.mxu0
      %v792 = vadd.f32 %v345, %v791
      %v793 = vpop.f32.mrf.mxu0
      %v794 = vadd.f32 %v345, %v793
      %795 = vmatmul.bf16.gmra.mxu0 %v531
      %v796 = vpop.f32.mrf.mxu0
      %v797 = vadd.f32 %v345, %v796
      %v798 = vpop.f32.mrf.mxu0
      %v799 = vadd.f32 %v345, %v798
      %800 = vmatmul.bf16.gmra.mxu0 %v534
      %v801 = vpop.f32.mrf.mxu0
      %v802 = vadd.f32 %v345, %v801
      %v803 = vpop.f32.mrf.mxu0
      %v804 = vadd.f32 %v345, %v803
      %805 = vmatmul.bf16.gmra.mxu0 %v537
      %v806 = vpop.f32.mrf.mxu0
      %v807 = vadd.f32 %v345, %v806
      %v808 = vpop.f32.mrf.mxu0
      %v809 = vadd.f32 %v345, %v808
      %810 = vmatmul.bf16.gmra.mxu0 %v540
      %v811 = vpop.f32.mrf.mxu0
      %v812 = vadd.f32 %v345, %v811
      %v813 = vpop.f32.mrf.mxu0
      %v814 = vadd.f32 %v345, %v813
      %815 = vmatmul.bf16.gmra.mxu0 %v543
      %v816 = vpop.f32.mrf.mxu0
      %v817 = vadd.f32 %v345, %v816
      %v818 = vpop.f32.mrf.mxu0
      %v819 = vadd.f32 %v345, %v818
      %820 = vmatmul.bf16.gmra.mxu0 %v546
      %v821 = vpop.f32.mrf.mxu0
      %v822 = vadd.f32 %v345, %v821
      %v823 = vpop.f32.mrf.mxu0
      %v824 = vadd.f32 %v345, %v823
      %825 = vmatmul.bf16.gmra.mxu0 %v549
      %v826 = vpop.f32.mrf.mxu0
      %v827 = vadd.f32 %v345, %v826
      %v828 = vpop.f32.mrf.mxu0
      %v829 = vadd.f32 %v345, %v828
      %830 = vmatmul.bf16.gmra.mxu0 %v552
      %v831 = vpop.f32.mrf.mxu0
      %v832 = vadd.f32 %v345, %v831
      %v833 = vpop.f32.mrf.mxu0
      %v834 = vadd.f32 %v345, %v833
      %835 = vdwg.mxu0
      %836 = vmatpush.bf16.msra.mxu0 %v714
      %837 = vmatpush.bf16.msra.mxu0 %v713
      %838 = vmatpush.bf16.msra.mxu0 %v712
      %839 = vmatpush.bf16.msra.mxu0 %v711
      %840 = vmatpush.bf16.msra.mxu0 %v710
      %841 = vmatpush.bf16.msra.mxu0 %v709
      %842 = vmatpush.bf16.msra.mxu0 %v708
      %843 = vmatpush.bf16.msra.mxu0 %v707
      %844 = vmatmul.bf16.gmra.mxu0 %v508
      %v845 = vpop.f32.mrf.mxu0
      %v846 = vadd.f32 %v757, %v845
      %v847 = vpop.f32.mrf.mxu0
      %v848 = vadd.f32 %v759, %v847
      %849 = vmatmul.bf16.gmra.mxu0 %v511
      %v850 = vpop.f32.mrf.mxu0
      %v851 = vadd.f32 %v762, %v850
      %v852 = vpop.f32.mrf.mxu0
      %v853 = vadd.f32 %v764, %v852
      %854 = vmatmul.bf16.gmra.mxu0 %v514
      %v855 = vpop.f32.mrf.mxu0
      %v856 = vadd.f32 %v767, %v855
      %v857 = vpop.f32.mrf.mxu0
      %v858 = vadd.f32 %v769, %v857
      %859 = vmatmul.bf16.gmra.mxu0 %v517
      %v860 = vpop.f32.mrf.mxu0
      %v861 = vadd.f32 %v772, %v860
      %v862 = vpop.f32.mrf.mxu0
      %v863 = vadd.f32 %v774, %v862
      %864 = vmatmul.bf16.gmra.mxu0 %v520
      %v865 = vpop.f32.mrf.mxu0
      %v866 = vadd.f32 %v777, %v865
      %v867 = vpop.f32.mrf.mxu0
      %v868 = vadd.f32 %v779, %v867
      %869 = vmatmul.bf16.gmra.mxu0 %v523
      %v870 = vpop.f32.mrf.mxu0
      %v871 = vadd.f32 %v782, %v870
      %v872 = vpop.f32.mrf.mxu0
      %v873 = vadd.f32 %v784, %v872
      %874 = vmatmul.bf16.gmra.mxu0 %v526
      %v875 = vpop.f32.mrf.mxu0
      %v876 = vadd.f32 %v787, %v875
      %v877 = vpop.f32.mrf.mxu0
      %v878 = vadd.f32 %v789, %v877
      %879 = vmatmul.bf16.gmra.mxu0 %v529
      %v880 = vpop.f32.mrf.mxu0
      %v881 = vadd.f32 %v792, %v880
      %v882 = vpop.f32.mrf.mxu0
      %v883 = vadd.f32 %v794, %v882
      %884 = vmatmul.bf16.gmra.mxu0 %v532
      %v885 = vpop.f32.mrf.mxu0
      %v886 = vadd.f32 %v797, %v885
      %v887 = vpop.f32.mrf.mxu0
      %v888 = vadd.f32 %v799, %v887
      %889 = vmatmul.bf16.gmra.mxu0 %v535
      %v890 = vpop.f32.mrf.mxu0
      %v891 = vadd.f32 %v802, %v890
      %v892 = vpop.f32.mrf.mxu0
      %v893 = vadd.f32 %v804, %v892
      %894 = vmatmul.bf16.gmra.mxu0 %v538
      %v895 = vpop.f32.mrf.mxu0
      %v896 = vadd.f32 %v807, %v895
      %v897 = vpop.f32.mrf.mxu0
      %v898 = vadd.f32 %v809, %v897
      %899 = vmatmul.bf16.gmra.mxu0 %v541
      %v900 = vpop.f32.mrf.mxu0
      %v901 = vadd.f32 %v812, %v900
      %v902 = vpop.f32.mrf.mxu0
      %v903 = vadd.f32 %v814, %v902
      %904 = vmatmul.bf16.gmra.mxu0 %v544
      %v905 = vpop.f32.mrf.mxu0
      %v906 = vadd.f32 %v817, %v905
      %v907 = vpop.f32.mrf.mxu0
      %v908 = vadd.f32 %v819, %v907
      %909 = vmatmul.bf16.gmra.mxu0 %v547
      %v910 = vpop.f32.mrf.mxu0
      %v911 = vadd.f32 %v822, %v910
      %v912 = vpop.f32.mrf.mxu0
      %v913 = vadd.f32 %v824, %v912
      %914 = vmatmul.bf16.gmra.mxu0 %v550
      %v915 = vpop.f32.mrf.mxu0
      %v916 = vadd.f32 %v827, %v915
      %v917 = vpop.f32.mrf.mxu0
      %v918 = vadd.f32 %v829, %v917
      %919 = vmatmul.bf16.gmra.mxu0 %v553
      %v920 = vpop.f32.mrf.mxu0
      %v921 = vadd.f32 %v832, %v920
      %v922 = vpop.f32.mrf.mxu0
      %v923 = vadd.f32 %v834, %v922
      %924 = vdwg.mxu0
      %925 = vmatpush.bf16.msra.mxu0 %v722
      %926 = vmatpush.bf16.msra.mxu0 %v721
      %927 = vmatpush.bf16.msra.mxu0 %v720
      %928 = vmatpush.bf16.msra.mxu0 %v719
      %929 = vmatpush.bf16.msra.mxu0 %v718
      %930 = vmatpush.bf16.msra.mxu0 %v717
      %931 = vmatpush.bf16.msra.mxu0 %v716
      %932 = vmatpush.bf16.msra.mxu0 %v715
      %933 = vmatmul.bf16.gmra.mxu0 %v509
      %v934 = vpop.f32.mrf.mxu0
      %v935 = vadd.f32 %v846, %v934
      %v936 = vpop.f32.mrf.mxu0
      %v937 = vadd.f32 %v848, %v936
      %938 = vmatmul.bf16.gmra.mxu0 %v512
      %v939 = vpop.f32.mrf.mxu0
      %v940 = vadd.f32 %v851, %v939
      %v941 = vpop.f32.mrf.mxu0
      %v942 = vadd.f32 %v853, %v941
      %943 = vmatmul.bf16.gmra.mxu0 %v515
      %v944 = vpop.f32.mrf.mxu0
      %v945 = vadd.f32 %v856, %v944
      %v946 = vpop.f32.mrf.mxu0
      %v947 = vadd.f32 %v858, %v946
      %948 = vmatmul.bf16.gmra.mxu0 %v518
      %v949 = vpop.f32.mrf.mxu0
      %v950 = vadd.f32 %v861, %v949
      %v951 = vpop.f32.mrf.mxu0
      %v952 = vadd.f32 %v863, %v951
      %953 = vmatmul.bf16.gmra.mxu0 %v521
      %v954 = vpop.f32.mrf.mxu0
      %v955 = vadd.f32 %v866, %v954
      %v956 = vpop.f32.mrf.mxu0
      %v957 = vadd.f32 %v868, %v956
      %958 = vmatmul.bf16.gmra.mxu0 %v524
      %v959 = vpop.f32.mrf.mxu0
      %v960 = vadd.f32 %v871, %v959
      %v961 = vpop.f32.mrf.mxu0
      %v962 = vadd.f32 %v873, %v961
      %963 = vmatmul.bf16.gmra.mxu0 %v527
      %v964 = vpop.f32.mrf.mxu0
      %v965 = vadd.f32 %v876, %v964
      %v966 = vpop.f32.mrf.mxu0
      %v967 = vadd.f32 %v878, %v966
      %968 = vmatmul.bf16.gmra.mxu0 %v530
      %v969 = vpop.f32.mrf.mxu0
      %v970 = vadd.f32 %v881, %v969
      %v971 = vpop.f32.mrf.mxu0
      %v972 = vadd.f32 %v883, %v971
      %973 = vmatmul.bf16.gmra.mxu0 %v533
      %v974 = vpop.f32.mrf.mxu0
      %v975 = vadd.f32 %v886, %v974
      %v976 = vpop.f32.mrf.mxu0
      %v977 = vadd.f32 %v888, %v976
      %978 = vmatmul.bf16.gmra.mxu0 %v536
      %v979 = vpop.f32.mrf.mxu0
      %v980 = vadd.f32 %v891, %v979
      %v981 = vpop.f32.mrf.mxu0
      %v982 = vadd.f32 %v893, %v981
      %983 = vmatmul.bf16.gmra.mxu0 %v539
      %v984 = vpop.f32.mrf.mxu0
      %v985 = vadd.f32 %v896, %v984
      %v986 = vpop.f32.mrf.mxu0
      %v987 = vadd.f32 %v898, %v986
      %988 = vmatmul.bf16.gmra.mxu0 %v542
      %v989 = vpop.f32.mrf.mxu0
      %v990 = vadd.f32 %v901, %v989
      %v991 = vpop.f32.mrf.mxu0
      %v992 = vadd.f32 %v903, %v991
      %993 = vmatmul.bf16.gmra.mxu0 %v545
      %v994 = vpop.f32.mrf.mxu0
      %v995 = vadd.f32 %v906, %v994
      %v996 = vpop.f32.mrf.mxu0
      %v997 = vadd.f32 %v908, %v996
      %998 = vmatmul.bf16.gmra.mxu0 %v548
      %v999 = vpop.f32.mrf.mxu0
      %v1000 = vadd.f32 %v911, %v999
      %v1001 = vpop.f32.mrf.mxu0
      %v1002 = vadd.f32 %v913, %v1001
      %1003 = vmatmul.bf16.gmra.mxu0 %v551
      %v1004 = vpop.f32.mrf.mxu0
      %v1005 = vadd.f32 %v916, %v1004
      %v1006 = vpop.f32.mrf.mxu0
      %v1007 = vadd.f32 %v918, %v1006
      %1008 = vmatmul.bf16.gmra.mxu0 %v554
      %v1009 = vpop.f32.mrf.mxu0
      %v1010 = vadd.f32 %v921, %v1009
      %v1011 = vpop.f32.mrf.mxu0
      %v1012 = vadd.f32 %v923, %v1011
      %1013 = vdwg.mxu0
      %v1014 = vmax.f32 %v935, 0.0
      %v1015 = vmax.f32 %v937, 0.0
      %v1016 = vmax.f32 %v940, 0.0
      %v1017 = vmax.f32 %v942, 0.0
      %v1018 = vmax.f32 %v945, 0.0
      %v1019 = vmax.f32 %v947, 0.0
      %v1020 = vmax.f32 %v950, 0.0
      %v1021 = vmax.f32 %v952, 0.0
      %v1022 = vmax.f32 %v955, 0.0
      %v1023 = vmax.f32 %v957, 0.0
      %v1024 = vmax.f32 %v960, 0.0
      %v1025 = vmax.f32 %v962, 0.0
      %v1026 = vmax.f32 %v965, 0.0
      %v1027 = vmax.f32 %v967, 0.0
      %v1028 = vmax.f32 %v970, 0.0
      %v1029 = vmax.f32 %v972, 0.0
      %v1030 = vmax.f32 %v975, 0.0
      %v1031 = vmax.f32 %v977, 0.0
      %v1032 = vmax.f32 %v980, 0.0
      %v1033 = vmax.f32 %v982, 0.0
      %v1034 = vmax.f32 %v985, 0.0
      %v1035 = vmax.f32 %v987, 0.0
      %v1036 = vmax.f32 %v990, 0.0
      %v1037 = vmax.f32 %v992, 0.0
      %v1038 = vmax.f32 %v995, 0.0
      %v1039 = vmax.f32 %v997, 0.0
      %v1040 = vmax.f32 %v1000, 0.0
      %v1041 = vmax.f32 %v1002, 0.0
      %v1042 = vmax.f32 %v1005, 0.0
      %v1043 = vmax.f32 %v1007, 0.0
      %v1044 = vmax.f32 %v1010, 0.0
      %v1045 = vmax.f32 %v1012, 0.0
      %v1046 = vpack.c.bf16 %v1015, %v1014
      %v1047 = vpack.c.bf16 %v1017, %v1016
      %v1048 = vpack.c.bf16 %v1019, %v1018
      %v1049 = vpack.c.bf16 %v1021, %v1020
      %v1050 = vpack.c.bf16 %v1023, %v1022
      %v1051 = vpack.c.bf16 %v1025, %v1024
      %v1052 = vpack.c.bf16 %v1027, %v1026
      %v1053 = vpack.c.bf16 %v1029, %v1028
      %v1054 = vpack.c.bf16 %v1031, %v1030
      %v1055 = vpack.c.bf16 %v1033, %v1032
      %v1056 = vpack.c.bf16 %v1035, %v1034
      %v1057 = vpack.c.bf16 %v1037, %v1036
      %v1058 = vpack.c.bf16 %v1039, %v1038
      %v1059 = vpack.c.bf16 %v1041, %v1040
      %v1060 = vpack.c.bf16 %v1043, %v1042
      %v1061 = vpack.c.bf16 %v1045, %v1044
      %v1062 = vld [vmem:[%s3] sm:$0xf]
      %v1063 = vld [vmem:[%s3 + $0x4] sm:$0xf]
      %v1064 = vld [vmem:[%s3 + $0x8] sm:$0xf]
      %v1065 = vld [vmem:[%s3 + $0xc] sm:$0xf]
      %v1066 = vld [vmem:[%s3 + $0x10] sm:$0xf]
      %v1067 = vld [vmem:[%s3 + $0x14] sm:$0xf]
      %v1068 = vld [vmem:[%s3 + $0x18] sm:$0xf]
      %v1069 = vld [vmem:[%s3 + $0x1c] sm:$0xf]
      %v1070 = vld [vmem:[%s3 + $0x20] sm:$0xf]
      %v1071 = vld [vmem:[%s3 + $0x24] sm:$0xf]
      %v1072 = vld [vmem:[%s3 + $0x28] sm:$0xf]
      %v1073 = vld [vmem:[%s3 + $0x2c] sm:$0xf]
      %v1074 = vld [vmem:[%s3 + $0x30] sm:$0xf]
      %v1075 = vld [vmem:[%s3 + $0x34] sm:$0xf]
      %v1076 = vld [vmem:[%s3 + $0x38] sm:$0xf]
      %v1077 = vld [vmem:[%s3 + $0x3c] sm:$0xf]
      %v1078 = vld [vmem:[%s4] sm:$0x1]
      %v1080 = vperm.slane %v1078, 0
      %v1098 = vunpack.c.l.b16 %v1062
      %v1099 = vunpack.c.l.b16 %v1063
      %v1100 = vunpack.c.l.b16 %v1064
      %v1101 = vunpack.c.l.b16 %v1065
      %v1102 = vunpack.c.l.b16 %v1066
      %v1103 = vunpack.c.l.b16 %v1067
      %v1104 = vunpack.c.l.b16 %v1068
      %v1105 = vunpack.c.l.b16 %v1069
      %v1106 = vunpack.c.l.b16 %v1070
      %v1107 = vunpack.c.l.b16 %v1071
      %v1108 = vunpack.c.l.b16 %v1072
      %v1109 = vunpack.c.l.b16 %v1073
      %v1110 = vunpack.c.l.b16 %v1074
      %v1111 = vunpack.c.l.b16 %v1075
      %v1112 = vunpack.c.l.b16 %v1076
      %v1113 = vunpack.c.l.b16 %v1077
      %v1114 = vpack.c.b16 %v1099, %v1098
      %v1115 = vpack.c.b16 %v1101, %v1100
      %v1116 = vpack.c.b16 %v1103, %v1102
      %v1117 = vpack.c.b16 %v1105, %v1104
      %v1118 = vpack.c.b16 %v1107, %v1106
      %v1119 = vpack.c.b16 %v1109, %v1108
      %v1120 = vpack.c.b16 %v1111, %v1110
      %v1121 = vpack.c.b16 %v1113, %v1112
      %1130 = vmatpush.bf16.msra.mxu0 %v1121
      %1131 = vmatpush.bf16.msra.mxu0 %v1120
      %1132 = vmatpush.bf16.msra.mxu0 %v1119
      %1133 = vmatpush.bf16.msra.mxu0 %v1118
      %1134 = vmatpush.bf16.msra.mxu0 %v1117
      %1135 = vmatpush.bf16.msra.mxu0 %v1116
      %1136 = vmatpush.bf16.msra.mxu0 %v1115
      %1137 = vmatpush.bf16.msra.mxu0 %v1114
      %1138 = vmatmul.bf16.gmra.mxu0 %v1046
      %v1139 = vpop.f32.mrf.mxu0
      %v1140 = vadd.f32 %v1080, %v1139
      %v1141 = vpop.f32.mrf.mxu0
      %v1142 = vadd.f32 %v1080, %v1141
      %1143 = vmatmul.bf16.gmra.mxu0 %v1047
      %v1144 = vpop.f32.mrf.mxu0
      %v1145 = vadd.f32 %v1080, %v1144
      %v1146 = vpop.f32.mrf.mxu0
      %v1147 = vadd.f32 %v1080, %v1146
      %1148 = vmatmul.bf16.gmra.mxu0 %v1048
      %v1149 = vpop.f32.mrf.mxu0
      %v1150 = vadd.f32 %v1080, %v1149
      %v1151 = vpop.f32.mrf.mxu0
      %v1152 = vadd.f32 %v1080, %v1151
      %1153 = vmatmul.bf16.gmra.mxu0 %v1049
      %v1154 = vpop.f32.mrf.mxu0
      %v1155 = vadd.f32 %v1080, %v1154
      %v1156 = vpop.f32.mrf.mxu0
      %v1157 = vadd.f32 %v1080, %v1156
      %1158 = vmatmul.bf16.gmra.mxu0 %v1050
      %v1159 = vpop.f32.mrf.mxu0
      %v1160 = vadd.f32 %v1080, %v1159
      %v1161 = vpop.f32.mrf.mxu0
      %v1162 = vadd.f32 %v1080, %v1161
      %1163 = vmatmul.bf16.gmra.mxu0 %v1051
      %v1164 = vpop.f32.mrf.mxu0
      %v1165 = vadd.f32 %v1080, %v1164
      %v1166 = vpop.f32.mrf.mxu0
      %v1167 = vadd.f32 %v1080, %v1166
      %1168 = vmatmul.bf16.gmra.mxu0 %v1052
      %v1169 = vpop.f32.mrf.mxu0
      %v1170 = vadd.f32 %v1080, %v1169
      %v1171 = vpop.f32.mrf.mxu0
      %v1172 = vadd.f32 %v1080, %v1171
      %1173 = vmatmul.bf16.gmra.mxu0 %v1053
      %v1174 = vpop.f32.mrf.mxu0
      %v1175 = vadd.f32 %v1080, %v1174
      %v1176 = vpop.f32.mrf.mxu0
      %v1177 = vadd.f32 %v1080, %v1176
      %1178 = vmatmul.bf16.gmra.mxu0 %v1054
      %v1179 = vpop.f32.mrf.mxu0
      %v1180 = vadd.f32 %v1080, %v1179
      %v1181 = vpop.f32.mrf.mxu0
      %v1182 = vadd.f32 %v1080, %v1181
      %1183 = vmatmul.bf16.gmra.mxu0 %v1055
      %v1184 = vpop.f32.mrf.mxu0
      %v1185 = vadd.f32 %v1080, %v1184
      %v1186 = vpop.f32.mrf.mxu0
      %v1187 = vadd.f32 %v1080, %v1186
      %1188 = vmatmul.bf16.gmra.mxu0 %v1056
      %v1189 = vpop.f32.mrf.mxu0
      %v1190 = vadd.f32 %v1080, %v1189
      %v1191 = vpop.f32.mrf.mxu0
      %v1192 = vadd.f32 %v1080, %v1191
      %1193 = vmatmul.bf16.gmra.mxu0 %v1057
      %v1194 = vpop.f32.mrf.mxu0
      %v1195 = vadd.f32 %v1080, %v1194
      %v1196 = vpop.f32.mrf.mxu0
      %v1197 = vadd.f32 %v1080, %v1196
      %1198 = vmatmul.bf16.gmra.mxu0 %v1058
      %v1199 = vpop.f32.mrf.mxu0
      %v1200 = vadd.f32 %v1080, %v1199
      %v1201 = vpop.f32.mrf.mxu0
      %v1202 = vadd.f32 %v1080, %v1201
      %1203 = vmatmul.bf16.gmra.mxu0 %v1059
      %v1204 = vpop.f32.mrf.mxu0
      %v1205 = vadd.f32 %v1080, %v1204
      %v1206 = vpop.f32.mrf.mxu0
      %v1207 = vadd.f32 %v1080, %v1206
      %1208 = vmatmul.bf16.gmra.mxu0 %v1060
      %v1209 = vpop.f32.mrf.mxu0
      %v1210 = vadd.f32 %v1080, %v1209
      %v1211 = vpop.f32.mrf.mxu0
      %v1212 = vadd.f32 %v1080, %v1211
      %1213 = vmatmul.bf16.gmra.mxu0 %v1061
      %v1214 = vpop.f32.mrf.mxu0
      %v1215 = vadd.f32 %v1080, %v1214
      %v1216 = vpop.f32.mrf.mxu0
      %v1217 = vadd.f32 %v1080, %v1216
      %1218 = vdwg.mxu0
      %1219 = vst [vmem:[%s229] sm:$0xff] %v1140
      %1220 = vst [vmem:[%s229 + $0x8] sm:$0xff] %v1142
      %1221 = vst [vmem:[%s229 + $0x10] sm:$0xff] %v1145
      %1222 = vst [vmem:[%s229 + $0x18] sm:$0xff] %v1147
      %1223 = vst [vmem:[%s229 + $0x20] sm:$0xff] %v1150
      %1224 = vst [vmem:[%s229 + $0x28] sm:$0xff] %v1152
      %1225 = vst [vmem:[%s229 + $0x30] sm:$0xff] %v1155
      %1226 = vst [vmem:[%s229 + $0x38] sm:$0xff] %v1157
      %1227 = vst [vmem:[%s229 + $0x40] sm:$0xff] %v1160
      %1228 = vst [vmem:[%s229 + $0x48] sm:$0xff] %v1162
      %1229 = vst [vmem:[%s229 + $0x50] sm:$0xff] %v1165
      %1230 = vst [vmem:[%s229 + $0x58] sm:$0xff] %v1167
      %1231 = vst [vmem:[%s229 + $0x60] sm:$0xff] %v1170
      %1232 = vst [vmem:[%s229 + $0x68] sm:$0xff] %v1172
      %1233 = vst [vmem:[%s229 + $0x70] sm:$0xff] %v1175
      %1234 = vst [vmem:[%s229 + $0x78] sm:$0xff] %v1177
      %1235 = vst [vmem:[%s229 + $0x80] sm:$0xff] %v1180
      %1236 = vst [vmem:[%s229 + $0x88] sm:$0xff] %v1182
      %1237 = vst [vmem:[%s229 + $0x90] sm:$0xff] %v1185
      %1238 = vst [vmem:[%s229 + $0x98] sm:$0xff] %v1187
      %1239 = vst [vmem:[%s229 + $0xa0] sm:$0xff] %v1190
      %1240 = vst [vmem:[%s229 + $0xa8] sm:$0xff] %v1192
      %1241 = vst [vmem:[%s229 + $0xb0] sm:$0xff] %v1195
      %1242 = vst [vmem:[%s229 + $0xb8] sm:$0xff] %v1197
      %1243 = vst [vmem:[%s229 + $0xc0] sm:$0xff] %v1200
      %1244 = vst [vmem:[%s229 + $0xc8] sm:$0xff] %v1202
      %1245 = vst [vmem:[%s229 + $0xd0] sm:$0xff] %v1205
      %1246 = vst [vmem:[%s229 + $0xd8] sm:$0xff] %v1207
      %1247 = vst [vmem:[%s229 + $0xe0] sm:$0xff] %v1210
      %1248 = vst [vmem:[%s229 + $0xe8] sm:$0xff] %v1212
      %1249 = vst [vmem:[%s229 + $0xf0] sm:$0xff] %v1215
      %1250 = vst [vmem:[%s229 + $0xf8] sm:$0xff] %v1217
      %s1251 = smul.u32 32, %s16
      %p1252 = scmp.lt.s32.totalorder %s1251, 63
      %s1253 = scalar_select %p1252, %s1251, 63
      %s1254 = smul.addr %s1253, 8
      %s1255 = scalar_lea.vmem %s5, %s1254
      // Predicated region
      $region41: #{generalized_rcnn_forward.6} parent=39 // pred_check
        %p1256 = pneg %p144
      $region42: #{generalized_rcnn_forward.6} parent=39 // pred_check_branch
        %1258 = sbr.rel (%p1256) target = $region44
      $region43: #{generalized_rcnn_forward.6} parent=39 // pred_region
        %s1259 = smul.u32 32, %s16
      $region44: #{generalized_rcnn_forward.6} parent=39 // pred_fallthru
        _
    $region40: #{generalized_rcnn_forward.6} parent=5 // pred_fallthru
      _
    %p1260 = scmp.le.s32.totalorder 2, %s11
    // Predicated region
    $region45: #{generalized_rcnn_forward.6} parent=5 // pred_check
      %p1261 = pneg %p1260
    $region46: #{generalized_rcnn_forward.6} parent=5 // pred_check_branch
      %1263 = sbr.rel (%p1261) target = $region48
    $region47: #{generalized_rcnn_forward.6} parent=5 // pred_region
      %s1264 = ssub.s32 %s11, 2
      // Predicated region
      $region49: #{generalized_rcnn_forward.6} parent=47 // pred_check
        %p1265 = pneg %p150
      $region50: #{generalized_rcnn_forward.6} parent=47 // pred_check_branch
        %1267 = sbr.rel (%p1265) target = $region52
      $region51: #{generalized_rcnn_forward.6} parent=47 // pred_region
        %s1268 = smul.u32 32, %s17
        %p1269 = scmp.lt.s32.totalorder %s1268, 63
        %s1270 = scalar_select %p1269, %s1268, 63
        %s1271 = smul.addr %s1270, 8
        %s1272 = scalar_lea.vmem %s5, %s1271
      $region52: #{generalized_rcnn_forward.6} parent=47 // pred_fallthru
        _
    $region48: #{generalized_rcnn_forward.6} parent=5 // pred_fallthru
      _
  $region6: #{generalized_rcnn_forward.6} parent=0 // loop_footer
    %s15 = sadd.s32 1, %s11
  $region7: #{generalized_rcnn_forward.6} parent=0 // loop_footer_branch
    %10 = sbr.rel target = $region3
  $region8: #{generalized_rcnn_forward.6} parent=0 // loop_exit
    _

// kernel: generalized_rcnn_forward.7
$region0: #{generalized_rcnn_forward.7}
  #allocation0 [shape = 'u32[]', space=smem, size = 0x4, offset = 0x4, fixed_abs, tag = 'smem constant byte address 0x4 - core index']
  #allocation1 [shape = 'u32[72,128]{1,0:T(1,128)}', space=vmem, size = 0x9000, scoped, tag = 'internal scratch']
  %s0 = inlined_call_operand.vmem [shape: f32[4,1536], index: 0, kind: input, shape index: {}]
  %s1 = inlined_call_operand.vmem [shape: f32[4,1536], index: 1, kind: input, shape index: {}]
  %s2 = inlined_call_operand.vmem [shape: f32[4,1536], index: 2, kind: output, shape index: {}]
  %s3 = sld [smem:[#allocation0]]
  $region18: #{generalized_rcnn_forward.7} parent=0
    _
  %s5 = ssub.s32 1, %s3
  %s6 = scalar_select 0, %s5, %s3
  // Predicated region
  $region2: #{generalized_rcnn_forward.7} parent=0 // pred_check
    _
  $region3: #{generalized_rcnn_forward.7} parent=0 // pred_check_branch
    %8 = sbr.rel (0) target = $region5
  $region4: #{generalized_rcnn_forward.7} parent=0 // pred_region
    _
  $region5: #{generalized_rcnn_forward.7} parent=0 // pred_fallthru
    _
  // Predicated region
  $region6: #{generalized_rcnn_forward.7} parent=0 // pred_check
    _
  $region7: #{generalized_rcnn_forward.7} parent=0 // pred_check_branch
    %10 = sbr.rel (0) target = $region9
  $region8: #{generalized_rcnn_forward.7} parent=0 // pred_region
    _
  $region9: #{generalized_rcnn_forward.7} parent=0 // pred_fallthru
    _
  %v11 = vld [vmem:[%s0] ss:$4 sm:$0xff]
  %s12 = scalar_lea.vmem %s0, 32
  %v13 = vld [vmem:[%s12] ss:$4 sm:$0xf]
  %s14 = scalar_lea.vmem %s0, 1
  %v15 = vld [vmem:[%s14] ss:$4 sm:$0xff]
  %s16 = scalar_lea.vmem %s0, 33
  %v17 = vld [vmem:[%s16] ss:$4 sm:$0xf]
  %s18 = scalar_lea.vmem %s0, 2
  %v19 = vld [vmem:[%s18] ss:$4 sm:$0xff]
  %s20 = scalar_lea.vmem %s0, 34
  %v21 = vld [vmem:[%s20] ss:$4 sm:$0xf]
  %s22 = scalar_lea.vmem %s0, 3
  %v23 = vld [vmem:[%s22] ss:$4 sm:$0xff]
  %s24 = scalar_lea.vmem %s0, 35
  %v25 = vld [vmem:[%s24] ss:$4 sm:$0xf]
  %v26 = vsub.f32 %v19, %v11
  %v27 = vsub.f32 %v21, %v13
  %v28 = vadd.f32 %v26, 1.0
  %v29 = vadd.f32 %v27, 1.0
  %v30 = vsub.f32 %v23, %v15
  %v31 = vsub.f32 %v25, %v17
  %v32 = vadd.f32 %v30, 1.0
  %v33 = vadd.f32 %v31, 1.0
  %v34 = vmul.f32 %v28, 0.5
  %v35 = vmul.f32 %v29, 0.5
  %v36 = vadd.f32 %v11, %v34
  %v37 = vadd.f32 %v13, %v35
  %v38 = vmul.f32 %v32, 0.5
  %v39 = vmul.f32 %v33, 0.5
  %v40 = vadd.f32 %v15, %v38
  %v41 = vadd.f32 %v17, %v39
  %v42 = vld [vmem:[%s1] ss:$4 sm:$0xff]
  %s43 = scalar_lea.vmem %s1, 32
  %v44 = vld [vmem:[%s43] ss:$4 sm:$0xf]
  %s45 = scalar_lea.vmem %s1, 1
  %v46 = vld [vmem:[%s45] ss:$4 sm:$0xff]
  %s47 = scalar_lea.vmem %s1, 33
  %v48 = vld [vmem:[%s47] ss:$4 sm:$0xf]
  %s49 = scalar_lea.vmem %s1, 2
  %v50 = vld [vmem:[%s49] ss:$4 sm:$0xff]
  %s51 = scalar_lea.vmem %s1, 34
  %v52 = vld [vmem:[%s51] ss:$4 sm:$0xf]
  %v53 = vmin.f32 %v50, 4.1351666
  %v54 = vmin.f32 %v52, 4.1351666
  %s55 = scalar_lea.vmem %s1, 3
  %v56 = vld [vmem:[%s55] ss:$4 sm:$0xff]
  %s57 = scalar_lea.vmem %s1, 35
  %v58 = vld [vmem:[%s57] ss:$4 sm:$0xf]
  %v59 = vmin.f32 %v56, 4.1351666
  %v60 = vmin.f32 %v58, 4.1351666
  %v61 = vmul.f32 %v42, %v28
  %v62 = vmul.f32 %v44, %v29
  %v63 = vadd.f32 %v61, %v36
  %v64 = vadd.f32 %v62, %v37
  %v65 = vmul.f32 %v46, %v32
  %v66 = vmul.f32 %v48, %v33
  %v67 = vadd.f32 %v65, %v40
  %v68 = vadd.f32 %v66, %v41
  %v69 = vmul.f32 %v53, 1.442695
  %v70 = vpow.pop %v69
  %v71 = vmul.f32 %v54, 1.442695
  %v72 = vpow.pop %v71
  %v73 = vmul.f32 %v70, %v28
  %v74 = vmul.f32 %v72, %v29
  %v75 = vmul.f32 %v59, 1.442695
  %v76 = vpow.pop %v75
  %v77 = vmul.f32 %v60, 1.442695
  %v78 = vpow.pop %v77
  %v79 = vmul.f32 %v76, %v32
  %v80 = vmul.f32 %v78, %v33
  %v81 = vmul.f32 %v73, 0.5
  %v82 = vmul.f32 %v74, 0.5
  %v83 = vsub.f32 %v63, %v81
  %v84 = vsub.f32 %v64, %v82
  %v85 = vmax.f32 %v83, 0.0
  %v86 = vmax.f32 %v84, 0.0
  %v87 = vmin.f32 %v85, 15.0
  %v88 = vmin.f32 %v86, 15.0
  %89 = vst [vmem:[%s2] ss:$4 sm:$0xff] %v87
  %v90 = vlaneseq
  %vm91 = vcmp.ge.s32.totalorder %v90, 0
  %vm92 = vcmp.lt.s32.totalorder %v90, 512
  %vm93 = vmand %vm91, %vm92
  %s94 = scalar_lea.vmem %s2, 32
  %95 = vst.msk [vmem:[%s94] ss:$4 sm:$0xf] %vm93, %v88
  %v96 = vmul.f32 %v79, 0.5
  %v97 = vmul.f32 %v80, 0.5
  %v98 = vsub.f32 %v67, %v96
  %v99 = vsub.f32 %v68, %v97
  %v100 = vmax.f32 %v98, 0.0
  %v101 = vmax.f32 %v99, 0.0
  %v102 = vmin.f32 %v100, 15.0
  %v103 = vmin.f32 %v101, 15.0
  %s104 = scalar_lea.vmem %s2, 1
  %105 = vst [vmem:[%s104] ss:$4 sm:$0xff] %v102
  %s106 = scalar_lea.vmem %s2, 33
  %107 = vst.msk [vmem:[%s106] ss:$4 sm:$0xf] %vm93, %v103
  %v108 = vadd.f32 %v63, %v81
  %v109 = vadd.f32 %v64, %v82
  %v110 = vsub.f32 %v108, 1.0
  %v111 = vsub.f32 %v109, 1.0
  %v112 = vmax.f32 %v110, 0.0
  %v113 = vmax.f32 %v111, 0.0
  %v114 = vmin.f32 %v112, 15.0
  %v115 = vmin.f32 %v113, 15.0
  %s116 = scalar_lea.vmem %s2, 2
  %117 = vst [vmem:[%s116] ss:$4 sm:$0xff] %v114
  %s118 = scalar_lea.vmem %s2, 34
  %119 = vst.msk [vmem:[%s118] ss:$4 sm:$0xf] %vm93, %v115
  %v120 = vadd.f32 %v67, %v96
  %v121 = vadd.f32 %v68, %v97
  %v122 = vsub.f32 %v120, 1.0
  %v123 = vsub.f32 %v121, 1.0
  %v124 = vmax.f32 %v122, 0.0
  %v125 = vmax.f32 %v123, 0.0
  %v126 = vmin.f32 %v124, 15.0
  %v127 = vmin.f32 %v125, 15.0
  %s128 = scalar_lea.vmem %s2, 3
  %129 = vst [vmem:[%s128] ss:$4 sm:$0xff] %v126
  %s130 = scalar_lea.vmem %s2, 35
  %131 = vst.msk [vmem:[%s130] ss:$4 sm:$0xf] %vm93, %v127
  // Predicated region
  $region10: #{generalized_rcnn_forward.7} parent=0 // pred_check
    _
  $region11: #{generalized_rcnn_forward.7} parent=0 // pred_check_branch
    %133 = sbr.rel (0) target = $region13
  $region12: #{generalized_rcnn_forward.7} parent=0 // pred_region
    _
  $region13: #{generalized_rcnn_forward.7} parent=0 // pred_fallthru
    _
  // Predicated region
  $region14: #{generalized_rcnn_forward.7} parent=0 // pred_check
    _
  $region15: #{generalized_rcnn_forward.7} parent=0 // pred_check_branch
    %135 = sbr.rel (0) target = $region17
  $region16: #{generalized_rcnn_forward.7} parent=0 // pred_region
    _
  $region17: #{generalized_rcnn_forward.7} parent=0 // pred_fallthru
    _

// kernel: generalized_rcnn_forward.8
$region0: #{generalized_rcnn_forward.8}
  #allocation0 [shape = 'u32[]', space=smem, size = 0x4, offset = 0x4, fixed_abs, tag = 'smem constant byte address 0x4 - core index']
  #allocation1 [shape = 'u32[72,128]{1,0:T(1,128)}', space=vmem, size = 0x9000, scoped, tag = 'internal scratch']
  %s0 = inlined_call_operand.vmem [shape: f32[32,128], index: 0, kind: input, shape index: {}]
  %s1 = inlined_call_operand.vmem [shape: f32[128,64], index: 1, kind: input, shape index: {}]
  %s2 = inlined_call_operand.vmem [shape: f32[1,64], index: 2, kind: input, shape index: {}]
  %s3 = inlined_call_operand.vmem [shape: f32[64,64], index: 3, kind: input, shape index: {}]
  %s4 = inlined_call_operand.vmem [shape: f32[1,64], index: 4, kind: input, shape index: {}]
  %s5 = inlined_call_operand.vmem [shape: f32[64,128], index: 5, kind: input, shape index: {}]
  %s6 = inlined_call_operand.vmem [shape: f32[1,128], index: 6, kind: input, shape index: {}]
  %s7 = inlined_call_operand.vmem [shape: f32[32,128], index: 7, kind: output, shape index: {}]
  %s8 = sld [smem:[#allocation0]]
  $region38: #{generalized_rcnn_forward.8} parent=0
    _
  %s10 = ssub.s32 1, %s8
  %s11 = scalar_select 0, %s10, %s8
  // Predicated region
  $region2: #{generalized_rcnn_forward.8} parent=0 // pred_check
    _
  $region3: #{generalized_rcnn_forward.8} parent=0 // pred_check_branch
    %13 = sbr.rel (0) target = $region5
  $region4: #{generalized_rcnn_forward.8} parent=0 // pred_region
    _
  $region5: #{generalized_rcnn_forward.8} parent=0 // pred_fallthru
    _
  // Predicated region
  $region6: #{generalized_rcnn_forward.8} parent=0 // pred_check
    _
  $region7: #{generalized_rcnn_forward.8} parent=0 // pred_check_branch
    %15 = sbr.rel (0) target = $region9
  $region8: #{generalized_rcnn_forward.8} parent=0 // pred_region
    _
  $region9: #{generalized_rcnn_forward.8} parent=0 // pred_fallthru
    _
  // Predicated region
  $region10: #{generalized_rcnn_forward.8} parent=0 // pred_check
    _
  $region11: #{generalized_rcnn_forward.8} parent=0 // pred_check_branch
    %17 = sbr.rel (0) target = $region13
  $region12: #{generalized_rcnn_forward.8} parent=0 // pred_region
    _
  $region13: #{generalized_rcnn_forward.8} parent=0 // pred_fallthru
    _
  // Predicated region
  $region14: #{generalized_rcnn_forward.8} parent=0 // pred_check
    _
  $region15: #{generalized_rcnn_forward.8} parent=0 // pred_check_branch
    %19 = sbr.rel (0) target = $region17
  $region16: #{generalized_rcnn_forward.8} parent=0 // pred_region
    _
  $region17: #{generalized_rcnn_forward.8} parent=0 // pred_fallthru
    _
  // Predicated region
  $region18: #{generalized_rcnn_forward.8} parent=0 // pred_check
    _
  $region19: #{generalized_rcnn_forward.8} parent=0 // pred_check_branch
    %21 = sbr.rel (0) target = $region21
  $region20: #{generalized_rcnn_forward.8} parent=0 // pred_region
    _
  $region21: #{generalized_rcnn_forward.8} parent=0 // pred_fallthru
    _
  // Predicated region
  $region22: #{generalized_rcnn_forward.8} parent=0 // pred_check
    _
  $region23: #{generalized_rcnn_forward.8} parent=0 // pred_check_branch
    %23 = sbr.rel (0) target = $region25
  $region24: #{generalized_rcnn_forward.8} parent=0 // pred_region
    _
  $region25: #{generalized_rcnn_forward.8} parent=0 // pred_fallthru
    _
  // Predicated region
  $region26: #{generalized_rcnn_forward.8} parent=0 // pred_check
    _
  $region27: #{generalized_rcnn_forward.8} parent=0 // pred_check_branch
    %25 = sbr.rel (0) target = $region29
  $region28: #{generalized_rcnn_forward.8} parent=0 // pred_region
    _
  $region29: #{generalized_rcnn_forward.8} parent=0 // pred_fallthru
    _
  %v26 = vld [vmem:[%s0] sm:$0xff]
  %v27 = vld [vmem:[%s0 + $0x8] sm:$0xff]
  %v28 = vld [vmem:[%s0 + $0x10] sm:$0xff]
  %v29 = vld [vmem:[%s0 + $0x18] sm:$0xff]
  %v30 = vld [vmem:[%s1] sm:$0xff]
  %v31 = vld [vmem:[%s1 + $0x8] sm:$0xff]
  %v32 = vld [vmem:[%s1 + $0x10] sm:$0xff]
  %v33 = vld [vmem:[%s1 + $0x18] sm:$0xff]
  %v34 = vld [vmem:[%s1 + $0x20] sm:$0xff]
  %v35 = vld [vmem:[%s1 + $0x28] sm:$0xff]
  %v36 = vld [vmem:[%s1 + $0x30] sm:$0xff]
  %v37 = vld [vmem:[%s1 + $0x38] sm:$0xff]
  %v38 = vld [vmem:[%s1 + $0x40] sm:$0xff]
  %v39 = vld [vmem:[%s1 + $0x48] sm:$0xff]
  %v40 = vld [vmem:[%s1 + $0x50] sm:$0xff]
  %v41 = vld [vmem:[%s1 + $0x58] sm:$0xff]
  %v42 = vld [vmem:[%s1 + $0x60] sm:$0xff]
  %v43 = vld [vmem:[%s1 + $0x68] sm:$0xff]
  %v44 = vld [vmem:[%s1 + $0x70] sm:$0xff]
  %v45 = vld [vmem:[%s1 + $0x78] sm:$0xff]
  %v46 = vld [vmem:[%s2] sm:$0x1]
  %v48 = vperm.slane %v46, 0
  %50 = vmatpush.msra.mxu0 %v45
  %51 = vmatpush.msra.mxu0 %v44
  %52 = vmatpush.msra.mxu0 %v43
  %53 = vmatpush.msra.mxu0 %v42
  %54 = vmatpush.msra.mxu0 %v41
  %55 = vmatpush.msra.mxu0 %v40
  %56 = vmatpush.msra.mxu0 %v39
  %57 = vmatpush.msra.mxu0 %v38
  %58 = vmatpush.msra.mxu0 %v37
  %59 = vmatpush.msra.mxu0 %v36
  %60 = vmatpush.msra.mxu0 %v35
  %61 = vmatpush.msra.mxu0 %v34
  %62 = vmatpush.msra.mxu0 %v33
  %63 = vmatpush.msra.mxu0 %v32
  %64 = vmatpush.msra.mxu0 %v31
  %65 = vmatpush.msra.mxu0 %v30
  %66 = vmatmul.f32.gmra.mxu0 %v26
  %v67 = vpop.f32.mrf.mxu0
  %v68 = vadd.f32 %v48, %v67
  %69 = vmatmul.f32.gmra.mxu0 %v27
  %v70 = vpop.f32.mrf.mxu0
  %v71 = vadd.f32 %v48, %v70
  %72 = vmatmul.f32.gmra.mxu0 %v28
  %v73 = vpop.f32.mrf.mxu0
  %v74 = vadd.f32 %v48, %v73
  %75 = vmatmul.f32.gmra.mxu0 %v29
  %v76 = vpop.f32.mrf.mxu0
  %v77 = vadd.f32 %v48, %v76
  %78 = vdwg.mxu0
  %v79 = vmax.f32 %v68, 0.0
  %v80 = vmax.f32 %v71, 0.0
  %v81 = vmax.f32 %v74, 0.0
  %v82 = vmax.f32 %v77, 0.0
  %v83 = vld [vmem:[%s3] sm:$0xff]
  %v84 = vld [vmem:[%s3 + $0x8] sm:$0xff]
  %v85 = vld [vmem:[%s3 + $0x10] sm:$0xff]
  %v86 = vld [vmem:[%s3 + $0x18] sm:$0xff]
  %v87 = vld [vmem:[%s3 + $0x20] sm:$0xff]
  %v88 = vld [vmem:[%s3 + $0x28] sm:$0xff]
  %v89 = vld [vmem:[%s3 + $0x30] sm:$0xff]
  %v90 = vld [vmem:[%s3 + $0x38] sm:$0xff]
  %v91 = vld [vmem:[%s4] sm:$0x1]
  %v93 = vperm.slane %v91, 0
  %vm95 = vcmask 523264
  %v97 = vsel %vm95, %v79, 0
  %v100 = vsel %vm95, %v80, 0
  %v103 = vsel %vm95, %v81, 0
  %v106 = vsel %vm95, %v82, 0
  %108 = vmatpush.msra.mxu0 0.0
  %109 = vmatpush.msra.mxu0 0.0
  %110 = vmatpush.msra.mxu0 0.0
  %111 = vmatpush.msra.mxu0 0.0
  %112 = vmatpush.msra.mxu0 0.0
  %113 = vmatpush.msra.mxu0 0.0
  %114 = vmatpush.msra.mxu0 0.0
  %115 = vmatpush.msra.mxu0 0.0
  %116 = vmatpush.msra.mxu0 %v90
  %117 = vmatpush.msra.mxu0 %v89
  %118 = vmatpush.msra.mxu0 %v88
  %119 = vmatpush.msra.mxu0 %v87
  %120 = vmatpush.msra.mxu0 %v86
  %121 = vmatpush.msra.mxu0 %v85
  %122 = vmatpush.msra.mxu0 %v84
  %123 = vmatpush.msra.mxu0 %v83
  %124 = vmatmul.f32.gmra.mxu0 %v97
  %v125 = vpop.f32.mrf.mxu0
  %v126 = vadd.f32 %v93, %v125
  %127 = vmatmul.f32.gmra.mxu0 %v100
  %v128 = vpop.f32.mrf.mxu0
  %v129 = vadd.f32 %v93, %v128
  %130 = vmatmul.f32.gmra.mxu0 %v103
  %v131 = vpop.f32.mrf.mxu0
  %v132 = vadd.f32 %v93, %v131
  %133 = vmatmul.f32.gmra.mxu0 %v106
  %v134 = vpop.f32.mrf.mxu0
  %v135 = vadd.f32 %v93, %v134
  %136 = vdwg.mxu0
  %v137 = vmax.f32 %v126, 0.0
  %v138 = vmax.f32 %v129, 0.0
  %v139 = vmax.f32 %v132, 0.0
  %v140 = vmax.f32 %v135, 0.0
  %v141 = vld [vmem:[%s5] sm:$0xff]
  %v142 = vld [vmem:[%s5 + $0x8] sm:$0xff]
  %v143 = vld [vmem:[%s5 + $0x10] sm:$0xff]
  %v144 = vld [vmem:[%s5 + $0x18] sm:$0xff]
  %v145 = vld [vmem:[%s5 + $0x20] sm:$0xff]
  %v146 = vld [vmem:[%s5 + $0x28] sm:$0xff]
  %v147 = vld [vmem:[%s5 + $0x30] sm:$0xff]
  %v148 = vld [vmem:[%s5 + $0x38] sm:$0xff]
  %v149 = vld [vmem:[%s6] sm:$0x1]
  %v151 = vperm.slane %v149, 0
  %v154 = vsel %vm95, %v137, 0
  %v157 = vsel %vm95, %v138, 0
  %v160 = vsel %vm95, %v139, 0
  %v163 = vsel %vm95, %v140, 0
  %165 = vmatpush.msra.mxu0 0.0
  %166 = vmatpush.msra.mxu0 0.0
  %167 = vmatpush.msra.mxu0 0.0
  %168 = vmatpush.msra.mxu0 0.0
  %169 = vmatpush.msra.mxu0 0.0
  %170 = vmatpush.msra.mxu0 0.0
  %171 = vmatpush.msra.mxu0 0.0
  %172 = vmatpush.msra.mxu0 0.0
  %173 = vmatpush.msra.mxu0 %v148
  %174 = vmatpush.msra.mxu0 %v147
  %175 = vmatpush.msra.mxu0 %v146
  %176 = vmatpush.msra.mxu0 %v145
  %177 = vmatpush.msra.mxu0 %v144
  %178 = vmatpush.msra.mxu0 %v143
  %179 = vmatpush.msra.mxu0 %v142
  %180 = vmatpush.msra.mxu0 %v141
  %181 = vmatmul.f32.gmra.mxu0 %v154
  %v182 = vpop.f32.mrf.mxu0
  %v183 = vadd.f32 %v151, %v182
  %184 = vmatmul.f32.gmra.mxu0 %v157
  %v185 = vpop.f32.mrf.mxu0
  %v186 = vadd.f32 %v151, %v185
  %187 = vmatmul.f32.gmra.mxu0 %v160
  %v188 = vpop.f32.mrf.mxu0
  %v189 = vadd.f32 %v151, %v188
  %190 = vmatmul.f32.gmra.mxu0 %v163
  %v191 = vpop.f32.mrf.mxu0
  %v192 = vadd.f32 %v151, %v191
  %193 = vdwg.mxu0
  %v194 = vlaneseq
  %v195 = vand.u32 %v194, 127
  %vm196 = vcmp.lt.s32.totalorder %v195, 6
  %v197 = vsel %vm196, %v183, -inf
  %v198 = vsel %vm196, %v186, -inf
  %v199 = vsel %vm196, %v189, -inf
  %v200 = vsel %vm196, %v192, -inf
  %201 = vmax.xlane.f32.xlu0 %v197
  %v202 = vpop.xlane.xlu0 %201
  %203 = vmax.xlane.f32.xlu0 %v198
  %v204 = vpop.xlane.xlu0 %203
  %205 = vmax.xlane.f32.xlu0 %v199
  %v206 = vpop.xlane.xlu0 %205
  %207 = vmax.xlane.f32.xlu0 %v200
  %v208 = vpop.xlane.xlu0 %207
  %v209 = vsub.f32 %v183, %v202
  %v210 = vsub.f32 %v186, %v204
  %v211 = vsub.f32 %v189, %v206
  %v212 = vsub.f32 %v192, %v208
  %v213 = vmul.f32 %v209, 1.442695
  %v214 = vpow.pop %v213
  %v215 = vmul.f32 %v210, 1.442695
  %v216 = vpow.pop %v215
  %v217 = vmul.f32 %v211, 1.442695
  %v218 = vpow.pop %v217
  %v219 = vmul.f32 %v212, 1.442695
  %v220 = vpow.pop %v219
  %v221 = vsel %vm196, %v214, 0.0
  %v222 = vsel %vm196, %v216, 0.0
  %v223 = vsel %vm196, %v218, 0.0
  %v224 = vsel %vm196, %v220, 0.0
  %225 = vadd.xlane.f32.xlu0 %v221
  %v226 = vpop.xlane.xlu0 %225
  %227 = vadd.xlane.f32.xlu0 %v222
  %v228 = vpop.xlane.xlu0 %227
  %229 = vadd.xlane.f32.xlu0 %v223
  %v230 = vpop.xlane.xlu0 %229
  %231 = vadd.xlane.f32.xlu0 %v224
  %v232 = vpop.xlane.xlu0 %231
  %v233 = vrcp.pop %v226
  %v234 = vmul.f32 %v226, %v233
  %v235 = vsub.f32 1.0, %v234
  %v236 = vmul.f32 %v233, %v235
  %v237 = vadd.f32 %v233, %v236
  %vm238 = vweird.f32 %v226
  %vm239 = vweird.f32 %v233
  %vm240 = vmor %vm238, %vm239
  %v241 = vsel %vm240, %v233, %v237
  %v242 = vand.u32 2147483647, %v226
  %vm243 = vcmp.eq.f32.partialorder %v242, 8.507059e+37
  %v244 = vand.u32 %v226, 2147483648
  %v245 = vor.u32 1.1754944e-38, %v244
  %v246 = vsel %vm243, %v245, %v241
  %v247 = vmul.f32 %v221, %v246
  %v248 = vrcp.pop %v228
  %v249 = vmul.f32 %v228, %v248
  %v250 = vsub.f32 1.0, %v249
  %v251 = vmul.f32 %v248, %v250
  %v252 = vadd.f32 %v248, %v251
  %vm253 = vweird.f32 %v228
  %vm254 = vweird.f32 %v248
  %vm255 = vmor %vm253, %vm254
  %v256 = vsel %vm255, %v248, %v252
  %v257 = vand.u32 2147483647, %v228
  %vm258 = vcmp.eq.f32.partialorder %v257, 8.507059e+37
  %v259 = vand.u32 %v228, 2147483648
  %v260 = vor.u32 1.1754944e-38, %v259
  %v261 = vsel %vm258, %v260, %v256
  %v262 = vmul.f32 %v222, %v261
  %v263 = vrcp.pop %v230
  %v264 = vmul.f32 %v230, %v263
  %v265 = vsub.f32 1.0, %v264
  %v266 = vmul.f32 %v263, %v265
  %v267 = vadd.f32 %v263, %v266
  %vm268 = vweird.f32 %v230
  %vm269 = vweird.f32 %v263
  %vm270 = vmor %vm268, %vm269
  %v271 = vsel %vm270, %v263, %v267
  %v272 = vand.u32 2147483647, %v230
  %vm273 = vcmp.eq.f32.partialorder %v272, 8.507059e+37
  %v274 = vand.u32 %v230, 2147483648
  %v275 = vor.u32 1.1754944e-38, %v274
  %v276 = vsel %vm273, %v275, %v271
  %v277 = vmul.f32 %v223, %v276
  %v278 = vrcp.pop %v232
  %v279 = vmul.f32 %v232, %v278
  %v280 = vsub.f32 1.0, %v279
  %v281 = vmul.f32 %v278, %v280
  %v282 = vadd.f32 %v278, %v281
  %vm283 = vweird.f32 %v232
  %vm284 = vweird.f32 %v278
  %vm285 = vmor %vm283, %vm284
  %v286 = vsel %vm285, %v278, %v282
  %v287 = vand.u32 2147483647, %v232
  %vm288 = vcmp.eq.f32.partialorder %v287, 8.507059e+37
  %v289 = vand.u32 %v232, 2147483648
  %v290 = vor.u32 1.1754944e-38, %v289
  %v291 = vsel %vm288, %v290, %v286
  %v292 = vmul.f32 %v224, %v291
  %v293 = vsel %vm196, %v247, %v183
  %v294 = vsel %vm196, %v262, %v186
  %v295 = vsel %vm196, %v277, %v189
  %v296 = vsel %vm196, %v292, %v192
  %297 = vst [vmem:[%s7] sm:$0xff] %v293
  %298 = vst [vmem:[%s7 + $0x8] sm:$0xff] %v294
  %299 = vst [vmem:[%s7 + $0x10] sm:$0xff] %v295
  %300 = vst [vmem:[%s7 + $0x18] sm:$0xff] %v296
  // Predicated region
  $region30: #{generalized_rcnn_forward.8} parent=0 // pred_check
    _
  $region31: #{generalized_rcnn_forward.8} parent=0 // pred_check_branch
    %302 = sbr.rel (0) target = $region33
  $region32: #{generalized_rcnn_forward.8} parent=0 // pred_region
    _
  $region33: #{generalized_rcnn_forward.8} parent=0 // pred_fallthru
    _
  // Predicated region
  $region34: #{generalized_rcnn_forward.8} parent=0 // pred_check
    _
  $region35: #{generalized_rcnn_forward.8} parent=0 // pred_check_branch
    %304 = sbr.rel (0) target = $region37
  $region36: #{generalized_rcnn_forward.8} parent=0 // pred_region
    _
  $region37: #{generalized_rcnn_forward.8} parent=0 // pred_fallthru
    _

// kernel: generalized_rcnn_forward.9
$region0: #{generalized_rcnn_forward.9}
  #allocation0 [shape = 'u32[]', space=smem, size = 0x4, offset = 0x4, fixed_abs, tag = 'smem constant byte address 0x4 - core index']
  #allocation1 [shape = 'u32[72,128]{1,0:T(1,128)}', space=vmem, size = 0x9000, scoped, tag = 'internal scratch']
  %s0 = inlined_call_operand.vmem [shape: f32[4,32], index: 0, kind: input, shape index: {}]
  %s1 = inlined_call_operand.vmem [shape: f32[4,32], index: 1, kind: input, shape index: {}]
  %s2 = inlined_call_operand.vmem [shape: f32[4,32], index: 2, kind: output, shape index: {}]
  %s3 = sld [smem:[#allocation0]]
  $region18: #{generalized_rcnn_forward.9} parent=0
    _
  %s5 = ssub.s32 1, %s3
  %s6 = scalar_select 0, %s5, %s3
  // Predicated region
  $region2: #{generalized_rcnn_forward.9} parent=0 // pred_check
    _
  $region3: #{generalized_rcnn_forward.9} parent=0 // pred_check_branch
    %8 = sbr.rel (0) target = $region5
  $region4: #{generalized_rcnn_forward.9} parent=0 // pred_region
    _
  $region5: #{generalized_rcnn_forward.9} parent=0 // pred_fallthru
    _
  // Predicated region
  $region6: #{generalized_rcnn_forward.9} parent=0 // pred_check
    _
  $region7: #{generalized_rcnn_forward.9} parent=0 // pred_check_branch
    %10 = sbr.rel (0) target = $region9
  $region8: #{generalized_rcnn_forward.9} parent=0 // pred_region
    _
  $region9: #{generalized_rcnn_forward.9} parent=0 // pred_fallthru
    _
  %v11 = vld [vmem:[%s0] sm:$0x1]
  %v12 = vld [vmem:[%s0 + $0x1] sm:$0x1]
  %v13 = vld [vmem:[%s0 + $0x2] sm:$0x1]
  %v14 = vld [vmem:[%s0 + $0x3] sm:$0x1]
  %v15 = vsub.f32 %v13, %v11
  %v16 = vadd.f32 %v15, 1.0
  %v17 = vsub.f32 %v14, %v12
  %v18 = vadd.f32 %v17, 1.0
  %v19 = vmul.f32 %v16, 0.5
  %v20 = vadd.f32 %v11, %v19
  %v21 = vmul.f32 %v18, 0.5
  %v22 = vadd.f32 %v12, %v21
  %v23 = vld [vmem:[%s1] sm:$0x1]
  %v24 = vmul.f32 %v23, 0.1
  %v25 = vld [vmem:[%s1 + $0x1] sm:$0x1]
  %v26 = vmul.f32 %v25, 0.1
  %v27 = vld [vmem:[%s1 + $0x2] sm:$0x1]
  %v28 = vmul.f32 %v27, 0.2
  %v29 = vmin.f32 %v28, 4.1351666
  %v30 = vld [vmem:[%s1 + $0x3] sm:$0x1]
  %v31 = vmul.f32 %v30, 0.2
  %v32 = vmin.f32 %v31, 4.1351666
  %v33 = vmul.f32 %v24, %v16
  %v34 = vadd.f32 %v33, %v20
  %v35 = vmul.f32 %v26, %v18
  %v36 = vadd.f32 %v35, %v22
  %v37 = vmul.f32 %v29, 1.442695
  %v38 = vpow.pop %v37
  %v39 = vmul.f32 %v38, %v16
  %v40 = vmul.f32 %v32, 1.442695
  %v41 = vpow.pop %v40
  %v42 = vmul.f32 %v41, %v18
  %v43 = vmul.f32 %v39, 0.5
  %v44 = vsub.f32 %v34, %v43
  %v45 = vmax.f32 %v44, 0.0
  %v46 = vmin.f32 %v45, 15.0
  %vm47 = vcmask 253952
  %48 = vst.msk [vmem:[%s2] sm:$0x1] %vm47, %v46
  %v49 = vmul.f32 %v42, 0.5
  %v50 = vsub.f32 %v36, %v49
  %v51 = vmax.f32 %v50, 0.0
  %v52 = vmin.f32 %v51, 15.0
  %53 = vst.msk [vmem:[%s2 + $0x1] sm:$0x1] %vm47, %v52
  %v54 = vadd.f32 %v34, %v43
  %v55 = vsub.f32 %v54, 1.0
  %v56 = vmax.f32 %v55, 0.0
  %v57 = vmin.f32 %v56, 15.0
  %58 = vst.msk [vmem:[%s2 + $0x2] sm:$0x1] %vm47, %v57
  %v59 = vadd.f32 %v36, %v49
  %v60 = vsub.f32 %v59, 1.0
  %v61 = vmax.f32 %v60, 0.0
  %v62 = vmin.f32 %v61, 15.0
  %63 = vst.msk [vmem:[%s2 + $0x3] sm:$0x1] %vm47, %v62
  // Predicated region
  $region10: #{generalized_rcnn_forward.9} parent=0 // pred_check
    _
  $region11: #{generalized_rcnn_forward.9} parent=0 // pred_check_branch
    %65 = sbr.rel (0) target = $region13
  $region12: #{generalized_rcnn_forward.9} parent=0 // pred_region
    _
  $region13: #{generalized_rcnn_forward.9} parent=0 // pred_fallthru
    _
  // Predicated region
  $region14: #{generalized_rcnn_forward.9} parent=0 // pred_check
    _
  $region15: #{generalized_rcnn_forward.9} parent=0 // pred_check_branch
    %67 = sbr.rel (0) target = $region17
  $region16: #{generalized_rcnn_forward.9} parent=0 // pred_region
    _
  $region17: #{generalized_rcnn_forward.9} parent=0 // pred_fallthru
    _

</llo_original>
